<compile_context>
chip_gen: v5e
topology: v5e:2x2
jax: 0.10.0
libtpu: 0.0.40
codegen_flags: <defaults>
</compile_context>

<pallas_src>
import functools
import math

import jax
import jax.numpy as jnp
from jax import lax
from jax.experimental import pallas as pl
from jax.experimental.pallas import tpu as pltpu


# ---------------------------------------------------------------------------
# Prologue kernel: 1x1-conv Q / K / V projections (token-major matmuls).
# ---------------------------------------------------------------------------
def _qkv_projection_kernel(xq_ref, xkv_ref, wq_ref, bq_ref, wkv_ref, bkv_ref,
                           q_ref, k_ref, v_ref, *, cp):
    xq = xq_ref[...]                                    # (tp, Cp) bf16
    xkv = xkv_ref[...]                                  # (tp, Cp) bf16
    # Q projection; the 1/sqrt(C) score scale is already folded into wq/bq.
    q = jnp.dot(xq, wq_ref[...],
                preferred_element_type=jnp.float32) + bq_ref[...]
    # Fused K|V projection: one (tp, Cp) x (Cp, 2Cp) matmul, split columns.
    kv = jnp.dot(xkv, wkv_ref[...],
                 preferred_element_type=jnp.float32) + bkv_ref[...]
    q_ref[...] = q.astype(q_ref.dtype)
    k_ref[...] = kv[:, :cp].astype(k_ref.dtype)
    v_ref[...] = kv[:, cp:].astype(v_ref.dtype)


# ---------------------------------------------------------------------------
# Flash-style cross attention + fused output projection.
# ---------------------------------------------------------------------------
def _flash_attention_kernel(q_ref, k_ref, v_ref, wo_ref, bo_ref, out_ref,
                            m_sc, l_sc, acc_sc, *,
                            kv_len, tk, needs_mask, use_bf16_exp):
    ki = pl.program_id(2)
    nk = pl.num_programs(2)

    @pl.when(ki == 0)
    def _init():
        m_sc[...] = jnp.full(m_sc.shape, -jnp.inf, dtype=m_sc.dtype)
        l_sc[...] = jnp.zeros(l_sc.shape, dtype=l_sc.dtype)
        acc_sc[...] = jnp.zeros(acc_sc.shape, dtype=acc_sc.dtype)

    # Scores: contract channel dims directly (no k.T materialization).
    s = lax.dot_general(q_ref[...], k_ref[...], (((1,), (1,)), ((), ())),
                        preferred_element_type=jnp.float32)        # (tq, tk)

    if needs_mask:
        # Mask padded KV positions (HW was rounded up to a multiple of 128).
        pos = ki * tk + lax.broadcasted_iota(jnp.int32, s.shape, 1)
        s = jnp.where(pos < kv_len, s, -jnp.inf)

    # Online softmax with unnormalized accumulation (f32 running stats).
    m_prev = m_sc[...]
    m_new = jnp.maximum(m_prev, jnp.max(s, axis=-1, keepdims=True))
    alpha = jnp.exp(m_prev - m_new)                                 # (tq, 1)

    if use_bf16_exp:
        # bf16 EUP exp (v6e / v7x); p is needed in bf16 for p@v anyway.
        p_b = jnp.exp((s - m_new).astype(jnp.bfloat16))
        p_f = p_b.astype(jnp.float32)
    else:
        p_f = jnp.exp(s - m_new)
        p_b = p_f.astype(jnp.bfloat16)

    l_sc[...] = alpha * l_sc[...] + jnp.sum(p_f, axis=-1, keepdims=True)
    acc_sc[...] = alpha * acc_sc[...] + jnp.dot(
        p_b, v_ref[...], preferred_element_type=jnp.float32)
    m_sc[...] = m_new

    @pl.when(ki == nk - 1)
    def _finalize():
        # Deferred normalization + fused output 1x1-conv projection.
        o = acc_sc[...] * pl.reciprocal(l_sc[...], approx=True)
        y = jnp.dot(o.astype(jnp.bfloat16), wo_ref[...],
                    preferred_element_type=jnp.float32) + bo_ref[...]
        out_ref[...] = y.astype(out_ref.dtype)


# ---------------------------------------------------------------------------
# Wrapper helpers.
# ---------------------------------------------------------------------------
def _round_up(x, m):
    return ((x + m - 1) // m) * m


def _fit_tile(hwp, target):
    """Largest multiple of 128 that divides hwp and is <= target (>= 128)."""
    best = 128
    t = 128
    while t <= min(target, hwp):
        if hwp % t == 0:
            best = t
        t += 128
    return best


def _vmem_limit_bytes():
    """VMEM budget derived from the chip (v7x has only 64 MiB per core)."""
    try:
        cap = int(pltpu.get_tpu_info().vmem_capacity_bytes)
    except Exception:
        cap = 64 * 1024 * 1024            # conservative (v7x-sized) fallback
    return int(min(cap * 6 // 10, 96 * 1024 * 1024))


def _has_bf16_eup():
    """True on chips with a bf16 EUP (v6e and newer)."""
    try:
        kind = jax.devices()[0].device_kind.lower()
    except Exception:
        return False
    return not any(tag in kind for tag in ("v2", "v3", "v4", "v5"))


@functools.partial(jax.jit, static_argnames=("tq", "tk"))
def cross_attention(q_feat, kv_feat, params, *, tq=256, tk=1024):
    """q_feat, kv_feat: (B, C, H, W) float32 (NCHW, like the PyTorch module)."""
    B, C, H, W = q_feat.shape
    HW = H * W
    Cp = _round_up(C, 128)               # lane-dense channel dimension
    HWp = _round_up(HW, 128)             # lane/MXU friendly token count
    needs_mask = HWp != HW
    tq = _fit_tile(HWp, max(int(tq), 128))
    tk = _fit_tile(HWp, max(int(tk), 128))
    tp = _fit_tile(HWp, 512)             # prologue (projection) token tile
    nq, nk, ntp = HWp // tq, HWp // tk, HWp // tp
    scale = 1.0 / math.sqrt(C)           # real channel count, not padded
    use_bf16_exp = _has_bf16_eup()
    vmem_limit = _vmem_limit_bytes()

    # NCHW -> token-major (B, HWp, Cp), zero-pad tokens & channels, bf16.
    # TODO(synk): folding this transpose/pad into the prologue (contracting the
    # sublane C axis of (C, tile) blocks) would remove one XLA pass over the
    # activations for very large feature maps.
    def tokens(x):
        t = jnp.transpose(x, (0, 2, 3, 1)).reshape(B, HW, C)
        t = jnp.pad(t, ((0, 0), (0, HWp - HW), (0, Cp - C)))
        return t.astype(jnp.bfloat16)

    xq = tokens(q_feat)
    xkv = tokens(kv_feat)

    def pad_w(w):                        # (C, C) -> (Cp, Cp) bf16
        return jnp.pad(w, ((0, Cp - C), (0, Cp - C))).astype(jnp.bfloat16)

    def pad_b(b):                        # (C,) -> (1, Cp) f32 (post-matmul add)
        return jnp.pad(b, (0, Cp - C)).reshape(1, Cp).astype(jnp.float32)

    # Conv2d 1x1 weight (C_out, C_in, 1, 1) -> matmul weight (C_in, C_out).
    wq_t = params["wq"].reshape(C, C).T * scale      # fold 1/sqrt(C) into Q
    bq = params["bq"].reshape(C) * scale
    wkv_full = params["wkv"].reshape(2 * C, C)       # [:C] -> K, [C:] -> V
    bkv_full = params["bkv"].reshape(2 * C)
    w_kv = jnp.concatenate([pad_w(wkv_full[:C].T), pad_w(wkv_full[C:].T)], axis=1)
    b_kv = jnp.concatenate([pad_b(bkv_full[:C]), pad_b(bkv_full[C:])], axis=1)
    wo_t = pad_w(params["wo"].reshape(C, C).T)
    bo = pad_b(params["bo"].reshape(C))

    # Constant weights: whole-array VMEM residents (not double-buffered).
    w_spec = pl.BlockSpec(memory_space=pltpu.MemorySpace.VMEM)

    # ---------------- prologue: Q / K / V projections (once per token) ------
    proj_cost = pl.CostEstimate(
        flops=6 * B * HWp * Cp * Cp,
        transcendentals=0,
        bytes_accessed=2 * B * HWp * Cp * 2 + 3 * B * HWp * Cp * 2,
    )
    tok_spec = pl.BlockSpec((pl.Squeezed(), tp, Cp), lambda b, t: (b, t, 0))
    q_tok, k_tok, v_tok = pl.pallas_call(
        functools.partial(_qkv_projection_kernel, cp=Cp),
        out_shape=(jax.ShapeDtypeStruct((B, HWp, Cp), jnp.bfloat16),
                   jax.ShapeDtypeStruct((B, HWp, Cp), jnp.bfloat16),
                   jax.ShapeDtypeStruct((B, HWp, Cp), jnp.bfloat16)),
        grid_spec=pltpu.PrefetchScalarGridSpec(
            num_scalar_prefetch=0,
            grid=(B, ntp),
            in_specs=[tok_spec, tok_spec,          # xq, xkv
                      w_spec, w_spec,              # wq, bq
                      w_spec, w_spec],             # w_kv, b_kv
            out_specs=[tok_spec, tok_spec, tok_spec],
        ),
        compiler_params=pltpu.CompilerParams(
            dimension_semantics=("parallel", "parallel"),
            vmem_limit_bytes=vmem_limit,
        ),
        cost_estimate=proj_cost,
    )(xq, xkv, pad_w(wq_t), pad_b(bq), w_kv, b_kv)

    # ---------------- flash attention + fused output projection -------------
    attn_cost = pl.CostEstimate(
        flops=4 * B * HWp * HWp * Cp + 2 * B * HWp * Cp * Cp,
        transcendentals=B * HWp * HWp,
        bytes_accessed=(B * HWp * Cp * 2                 # q
                        + 2 * nq * B * HWp * Cp * 2      # k, v streamed per q tile
                        + B * HWp * Cp * 4),             # out
    )
    flash_kernel = functools.partial(
        _flash_attention_kernel,
        kv_len=HW, tk=tk, needs_mask=needs_mask, use_bf16_exp=use_bf16_exp)

    out_tok = pl.pallas_call(
        flash_kernel,
        out_shape=jax.ShapeDtypeStruct((B, HWp, Cp), jnp.float32),
        grid_spec=pltpu.PrefetchScalarGridSpec(
            num_scalar_prefetch=0,
            grid=(B, nq, nk),
            in_specs=[
                pl.BlockSpec((pl.Squeezed(), tq, Cp), lambda b, qi, ki: (b, qi, 0)),  # q
                pl.BlockSpec((pl.Squeezed(), tk, Cp), lambda b, qi, ki: (b, ki, 0)),  # k
                pl.BlockSpec((pl.Squeezed(), tk, Cp), lambda b, qi, ki: (b, ki, 0)),  # v
                w_spec, w_spec,    # wo, bo
            ],
            out_specs=pl.BlockSpec((pl.Squeezed(), tq, Cp),
                                   lambda b, qi, ki: (b, qi, 0)),
            scratch_shapes=[
                pltpu.VMEM((tq, 1), jnp.float32),     # running max
                pltpu.VMEM((tq, 1), jnp.float32),     # running sum
                pltpu.VMEM((tq, Cp), jnp.float32),    # unnormalized output acc
            ],
        ),
        compiler_params=pltpu.CompilerParams(
            dimension_semantics=("parallel", "parallel", "arbitrary"),
            vmem_limit_bytes=vmem_limit,
        ),
        cost_estimate=attn_cost,
    )(q_tok, k_tok, v_tok, wo_t, bo)

    # (B, HWp, Cp) -> drop token/channel padding -> NCHW.
    out = out_tok[:, :HW, :C].reshape(B, H, W, C)
    return jnp.transpose(out, (0, 3, 1, 2)).astype(q_feat.dtype)


# ---------------------------------------------------------------------------
# Pure-JAX f32 reference mirroring the PyTorch forward exactly.
# ---------------------------------------------------------------------------
def cross_attention_ref(q_feat, kv_feat, params):
    B, C, H, W = q_feat.shape
    HW = H * W
    w1x1 = lambda x, w, b: (
        jnp.einsum("bchw,oc->bohw", x, w.reshape(w.shape[0], C)) +
        b.reshape(1, -1, 1, 1))
    q = w1x1(q_feat, params["wq"], params["bq"]).reshape(B, C, HW).transpose(0, 2, 1)
    kv = w1x1(kv_feat, params["wkv"], params["bkv"]).reshape(B, 2, C, HW)
    k, v = kv[:, 0], kv[:, 1]
    attn = jnp.einsum("bqc,bck->bqk", q, k) / (C ** 0.5)
    attn = jax.nn.softmax(attn, axis=-1)
    out = jnp.einsum("bqk,bkc->bqc", attn, v.transpose(0, 2, 1))
    out = out.transpose(0, 2, 1).reshape(B, C, H, W)
    return w1x1(out, params["wo"], params["bo"])


def init_params(key, dim):
    ks = jax.random.split(key, 6)
    s = 1.0 / (dim ** 0.5)
    return {
        "wq":  jax.random.normal(ks[0], (dim, dim, 1, 1), jnp.float32) * s,
        "bq":  jax.random.normal(ks[1], (dim,), jnp.float32) * 0.1,
        "wkv": jax.random.normal(ks[2], (2 * dim, dim, 1, 1), jnp.float32) * s,
        "bkv": jax.random.normal(ks[3], (2 * dim,), jnp.float32) * 0.1,
        "wo":  jax.random.normal(ks[4], (dim, dim, 1, 1), jnp.float32) * s,
        "bo":  jax.random.normal(ks[5], (dim,), jnp.float32) * 0.1,
    }


if __name__ == "__main__":
    B, C, H, W = 2, 4, 16, 16
    key = jax.random.PRNGKey(0)
    kq, kkv, kp = jax.random.split(key, 3)
    params = init_params(kp, C)

    # Case 1: HW = 256, divisible tiles; tq=tk=128 forces nq=nk=2 so the
    # multi-tile online-softmax accumulation path is exercised.
    q_feat = jax.random.normal(kq, (B, C, H, W), jnp.float32)
    kv_feat = jax.random.normal(kkv, (B, C, H, W), jnp.float32)
    out = jax.block_until_ready(
        cross_attention(q_feat, kv_feat, params, tq=128, tk=128))
    ref = jax.block_until_ready(cross_attention_ref(q_feat, kv_feat, params))
    assert out.shape == (B, C, H, W)
    err1 = float(jnp.max(jnp.abs(out - ref)))
    assert jnp.allclose(out, ref, atol=5e-2, rtol=5e-2), err1

    # Case 2: non-divisible HW (10*13 = 130 -> padded to 256) exercising the
    # padded-KV masking path.
    q2 = jax.random.normal(kq, (B, C, 10, 13), jnp.float32)
    kv2 = jax.random.normal(kkv, (B, C, 10, 13), jnp.float32)
    out2 = jax.block_until_ready(cross_attention(q2, kv2, params, tq=128, tk=128))
    ref2 = jax.block_until_ready(cross_attention_ref(q2, kv2, params))
    err2 = float(jnp.max(jnp.abs(out2 - ref2)))
    assert jnp.allclose(out2, ref2, atol=5e-2, rtol=5e-2), err2

    print("KERNEL_OK")
</pallas_src>

<mosaic_0001>
module attributes {stable_mosaic.version = 11 : i64} {
  func.func @_flash_attention_kernel(%arg0: i32, %arg1: i32, %arg2: i32, %arg3: memref<1x128x128xbf16, #tpu.memory_space<vmem>>, %arg4: memref<1x128x128xbf16, #tpu.memory_space<vmem>>, %arg5: memref<1x128x128xbf16, #tpu.memory_space<vmem>>, %arg6: memref<128x128xbf16, #tpu.memory_space<vmem>>, %arg7: memref<1x128xf32, #tpu.memory_space<vmem>>, %arg8: memref<1x128x128xf32, #tpu.memory_space<vmem>>, %arg9: memref<128x1xf32, #tpu.memory_space<vmem>>, %arg10: memref<128x1xf32, #tpu.memory_space<vmem>>, %arg11: memref<128x128xf32, #tpu.memory_space<vmem>>) attributes {dimension_semantics = [#tpu.dimension_semantics<parallel>, #tpu.dimension_semantics<parallel>, #tpu.dimension_semantics<arbitrary>], iteration_bounds = array<i64: 2, 2, 2>, scalar_prefetch = 0 : i64, scratch_operands = 3 : i64, tpu.core_type = #tpu.core_type<tc>, window_params = [{transform_indices = @transform_0, window_bounds = array<i64: 1, 128, 128>}, {transform_indices = @transform_1, window_bounds = array<i64: 1, 128, 128>}, {transform_indices = @transform_2, window_bounds = array<i64: 1, 128, 128>}, {pipeline_mode = #tpu.pipeline_mode<synchronous>, transform_indices = @transform_3, window_bounds = array<i64: 128, 128>}, {pipeline_mode = #tpu.pipeline_mode<synchronous>, transform_indices = @transform_4, window_bounds = array<i64: 1, 128>}, {transform_indices = @transform_5, window_bounds = array<i64: 1, 128, 128>}]} {
    %c0_i32 = arith.constant 0 : i32
    %0 = arith.cmpi eq, %arg2, %c0_i32 : i32
    %1 = arith.extui %0 : i1 to i32
    %c0_i32_0 = arith.constant 0 : i32
    %2 = arith.cmpi ne, %1, %c0_i32_0 : i32
    scf.if %2 {
      %cst_25 = arith.constant 0xFF800000 : f32
      %37 = vector.broadcast %cst_25 : f32 to vector<128x1xf32>
      %c0_26 = arith.constant 0 : index
      %c0_27 = arith.constant 0 : index
      %38 = vector.load %arg9[%c0_26, %c0_27] : memref<128x1xf32, #tpu.memory_space<vmem>>, vector<128x1xf32>
      tpu.vector_store %arg9[%c0_26, %c0_27], %37 {strides = array<i32>} : memref<128x1xf32, #tpu.memory_space<vmem>>, vector<128x1xf32>,
      %cst_28 = arith.constant 0.000000e+00 : f32
      %39 = vector.broadcast %cst_28 : f32 to vector<128x1xf32>
      %c0_29 = arith.constant 0 : index
      %c0_30 = arith.constant 0 : index
      %40 = vector.load %arg10[%c0_29, %c0_30] : memref<128x1xf32, #tpu.memory_space<vmem>>, vector<128x1xf32>
      tpu.vector_store %arg10[%c0_29, %c0_30], %39 {strides = array<i32>} : memref<128x1xf32, #tpu.memory_space<vmem>>, vector<128x1xf32>,
      %cst_31 = arith.constant 0.000000e+00 : f32
      %41 = vector.broadcast %cst_31 : f32 to vector<128x128xf32>
      %c0_32 = arith.constant 0 : index
      %c0_33 = arith.constant 0 : index
      %42 = vector.load %arg11[%c0_32, %c0_33] : memref<128x128xf32, #tpu.memory_space<vmem>>, vector<128x128xf32>
      tpu.vector_store %arg11[%c0_32, %c0_33], %41 {strides = array<i32>} : memref<128x128xf32, #tpu.memory_space<vmem>>, vector<128x128xf32>,
    } else {
    }
    %c0 = arith.constant 0 : index
    %c0_1 = arith.constant 0 : index
    %c0_2 = arith.constant 0 : index
    %3 = vector.load %arg3[%c0, %c0_1, %c0_2] : memref<1x128x128xbf16, #tpu.memory_space<vmem>>, vector<1x128x128xbf16>
    %4 = vector.shape_cast %3 : vector<1x128x128xbf16> to vector<128x128xbf16>
    %c0_3 = arith.constant 0 : index
    %c0_4 = arith.constant 0 : index
    %c0_5 = arith.constant 0 : index
    %5 = vector.load %arg4[%c0_3, %c0_4, %c0_5] : memref<1x128x128xbf16, #tpu.memory_space<vmem>>, vector<1x128x128xbf16>
    %6 = vector.shape_cast %5 : vector<1x128x128xbf16> to vector<128x128xbf16>
    %cst = arith.constant dense<0.000000e+00> : vector<128x128xf32>
    %7 = tpu.matmul %4, %6, %cst {dimension_numbers = #tpu.dot_dimension_numbers<[1], [1], [0], [0], [0, 0, 1, 0], [], []>} : vector<128x128xbf16>, vector<128x128xbf16>, vector<128x128xf32> -> vector<128x128xf32>
    %c0_6 = arith.constant 0 : index
    %c0_7 = arith.constant 0 : index
    %8 = vector.load %arg9[%c0_6, %c0_7] : memref<128x1xf32, #tpu.memory_space<vmem>>, vector<128x1xf32>
    %cst_8 = arith.constant dense<0xFF800000> : vector<128xf32>
    %9 = vector.multi_reduction <maximumf>, %7, %cst_8 [1] : vector<128x128xf32> to vector<128xf32>
    %10 = vector.shape_cast %9 : vector<128xf32> to vector<128x1xf32>
    %11 = arith.maximumf %8, %10 : vector<128x1xf32>
    %12 = arith.subf %8, %11 : vector<128x1xf32>
    %13 = math.exp %12 : vector<128x1xf32>
    %14 = vector.broadcast %11 : vector<128x1xf32> to vector<128x128xf32>
    %15 = arith.subf %7, %14 : vector<128x128xf32>
    %16 = arith.truncf %15 : vector<128x128xf32> to vector<128x128xbf16>
    %17 = math.exp %16 : vector<128x128xbf16>
    %18 = arith.extf %17 : vector<128x128xbf16> to vector<128x128xf32>
    %c0_9 = arith.constant 0 : index
    %c0_10 = arith.constant 0 : index
    %19 = vector.load %arg10[%c0_9, %c0_10] : memref<128x1xf32, #tpu.memory_space<vmem>>, vector<128x1xf32>
    %20 = arith.mulf %13, %19 : vector<128x1xf32>
    %cst_11 = arith.constant dense<0.000000e+00> : vector<128xf32>
    %21 = vector.multi_reduction <add>, %18, %cst_11 [1] : vector<128x128xf32> to vector<128xf32>
    %22 = vector.shape_cast %21 : vector<128xf32> to vector<128x1xf32>
    %23 = arith.addf %20, %22 : vector<128x1xf32>
    %c0_12 = arith.constant 0 : index
    %c0_13 = arith.constant 0 : index
    %24 = vector.load %arg10[%c0_12, %c0_13] : memref<128x1xf32, #tpu.memory_space<vmem>>, vector<128x1xf32>
    tpu.vector_store %arg10[%c0_12, %c0_13], %23 {strides = array<i32>} : memref<128x1xf32, #tpu.memory_space<vmem>>, vector<128x1xf32>,
    %c0_14 = arith.constant 0 : index
    %c0_15 = arith.constant 0 : index
    %25 = vector.load %arg11[%c0_14, %c0_15] : memref<128x128xf32, #tpu.memory_space<vmem>>, vector<128x128xf32>
    %26 = vector.broadcast %13 : vector<128x1xf32> to vector<128x128xf32>
    %27 = arith.mulf %26, %25 : vector<128x128xf32>
    %c0_16 = arith.constant 0 : index
    %c0_17 = arith.constant 0 : index
    %c0_18 = arith.constant 0 : index
    %28 = vector.load %arg5[%c0_16, %c0_17, %c0_18] : memref<1x128x128xbf16, #tpu.memory_space<vmem>>, vector<1x128x128xbf16>
    %29 = vector.shape_cast %28 : vector<1x128x128xbf16> to vector<128x128xbf16>
    %cst_19 = arith.constant dense<0.000000e+00> : vector<128x128xf32>
    %30 = tpu.matmul %17, %29, %cst_19 {dimension_numbers = #tpu.dot_dimension_numbers<[1], [0], [0], [1], [0, 0, 1, 1], [], []>} : vector<128x128xbf16>, vector<128x128xbf16>, vector<128x128xf32> -> vector<128x128xf32>
    %31 = arith.addf %27, %30 : vector<128x128xf32>
    %c0_20 = arith.constant 0 : index
    %c0_21 = arith.constant 0 : index
    %32 = vector.load %arg11[%c0_20, %c0_21] : memref<128x128xf32, #tpu.memory_space<vmem>>, vector<128x128xf32>
    tpu.vector_store %arg11[%c0_20, %c0_21], %31 {strides = array<i32>} : memref<128x128xf32, #tpu.memory_space<vmem>>, vector<128x128xf32>,
    %c0_22 = arith.constant 0 : index
    %c0_23 = arith.constant 0 : index
    %33 = vector.load %arg9[%c0_22, %c0_23] : memref<128x1xf32, #tpu.memory_space<vmem>>, vector<128x1xf32>
    tpu.vector_store %arg9[%c0_22, %c0_23], %11 {strides = array<i32>} : memref<128x1xf32, #tpu.memory_space<vmem>>, vector<128x1xf32>,
    %c1_i32 = arith.constant 1 : i32
    %34 = arith.cmpi eq, %arg2, %c1_i32 : i32
    %35 = arith.extui %34 : i1 to i32
    %c0_i32_24 = arith.constant 0 : i32
    %36 = arith.cmpi ne, %35, %c0_i32_24 : i32
    scf.if %36 {
      %c0_25 = arith.constant 0 : index
      %c0_26 = arith.constant 0 : index
      %37 = vector.load %arg11[%c0_25, %c0_26] : memref<128x128xf32, #tpu.memory_space<vmem>>, vector<128x128xf32>
      %c0_27 = arith.constant 0 : index
      %c0_28 = arith.constant 0 : index
      %38 = vector.load %arg10[%c0_27, %c0_28] : memref<128x1xf32, #tpu.memory_space<vmem>>, vector<128x1xf32>
      %39 = tpu.reciprocal %38 {approx = true} : vector<128x1xf32> -> vector<128x1xf32>
      %40 = vector.broadcast %39 : vector<128x1xf32> to vector<128x128xf32>
      %41 = arith.mulf %37, %40 : vector<128x128xf32>
      %42 = arith.truncf %41 : vector<128x128xf32> to vector<128x128xbf16>
      %c0_29 = arith.constant 0 : index
      %c0_30 = arith.constant 0 : index
      %43 = vector.load %arg6[%c0_29, %c0_30] : memref<128x128xbf16, #tpu.memory_space<vmem>>, vector<128x128xbf16>
      %cst_31 = arith.constant dense<0.000000e+00> : vector<128x128xf32>
      %44 = tpu.matmul %42, %43, %cst_31 {dimension_numbers = #tpu.dot_dimension_numbers<[1], [0], [0], [1], [0, 0, 1, 1], [], []>} : vector<128x128xbf16>, vector<128x128xbf16>, vector<128x128xf32> -> vector<128x128xf32>
      %c0_32 = arith.constant 0 : index
      %c0_33 = arith.constant 0 : index
      %45 = vector.load %arg7[%c0_32, %c0_33] : memref<1x128xf32, #tpu.memory_space<vmem>>, vector<1x128xf32>
      %46 = vector.broadcast %45 : vector<1x128xf32> to vector<128x128xf32>
      %47 = arith.addf %44, %46 : vector<128x128xf32>
      %c0_34 = arith.constant 0 : index
      %c0_35 = arith.constant 0 : index
      %c0_36 = arith.constant 0 : index
      %48 = vector.load %arg8[%c0_34, %c0_35, %c0_36] : memref<1x128x128xf32, #tpu.memory_space<vmem>>, vector<1x128x128xf32>
      %49 = vector.shape_cast %48 : vector<1x128x128xf32> to vector<128x128xf32>
      %50 = vector.shape_cast %47 : vector<128x128xf32> to vector<1x128x128xf32>
      tpu.vector_store %arg8[%c0_34, %c0_35, %c0_36], %50 {strides = array<i32>} : memref<1x128x128xf32, #tpu.memory_space<vmem>>, vector<1x128x128xf32>,
    } else {
    }
    return
  }
  func.func @transform_0(%arg0: i32, %arg1: i32, %arg2: i32) -> (i32, i32, i32) {
    %c0_i32 = arith.constant 0 : i32
    %c0_i32_0 = arith.constant 0 : i32
    return %arg0, %arg1, %c0_i32 : i32, i32, i32
  }
  func.func @transform_1(%arg0: i32, %arg1: i32, %arg2: i32) -> (i32, i32, i32) {
    %c0_i32 = arith.constant 0 : i32
    %c0_i32_0 = arith.constant 0 : i32
    return %arg0, %arg2, %c0_i32 : i32, i32, i32
  }
  func.func @transform_2(%arg0: i32, %arg1: i32, %arg2: i32) -> (i32, i32, i32) {
    %c0_i32 = arith.constant 0 : i32
    %c0_i32_0 = arith.constant 0 : i32
    return %arg0, %arg2, %c0_i32 : i32, i32, i32
  }
  func.func @transform_3(%arg0: i32, %arg1: i32, %arg2: i32) -> (i32, i32) {
    %c0_i32 = arith.constant 0 : i32
    %c0_i32_0 = arith.constant 0 : i32
    %c0_i32_1 = arith.constant 0 : i32
    return %c0_i32, %c0_i32_0 : i32, i32
  }
  func.func @transform_4(%arg0: i32, %arg1: i32, %arg2: i32) -> (i32, i32) {
    %c0_i32 = arith.constant 0 : i32
    %c0_i32_0 = arith.constant 0 : i32
    %c0_i32_1 = arith.constant 0 : i32
    return %c0_i32, %c0_i32_0 : i32, i32
  }
  func.func @transform_5(%arg0: i32, %arg1: i32, %arg2: i32) -> (i32, i32, i32) {
    %c0_i32 = arith.constant 0 : i32
    %c0_i32_0 = arith.constant 0 : i32
    return %arg0, %arg1, %c0_i32 : i32, i32, i32
  }
}

module attributes {stable_mosaic.version = 11 : i64} {
  func.func @_qkv_projection_kernel(%arg0: i32, %arg1: i32, %arg2: memref<1x256x128xbf16, #tpu.memory_space<vmem>>, %arg3: memref<1x256x128xbf16, #tpu.memory_space<vmem>>, %arg4: memref<128x128xbf16, #tpu.memory_space<vmem>>, %arg5: memref<1x128xf32, #tpu.memory_space<vmem>>, %arg6: memref<128x256xbf16, #tpu.memory_space<vmem>>, %arg7: memref<1x256xf32, #tpu.memory_space<vmem>>, %arg8: memref<1x256x128xbf16, #tpu.memory_space<vmem>>, %arg9: memref<1x256x128xbf16, #tpu.memory_space<vmem>>, %arg10: memref<1x256x128xbf16, #tpu.memory_space<vmem>>) attributes {dimension_semantics = [#tpu.dimension_semantics<parallel>, #tpu.dimension_semantics<parallel>], iteration_bounds = array<i64: 2, 1>, scalar_prefetch = 0 : i64, scratch_operands = 0 : i64, tpu.core_type = #tpu.core_type<tc>, window_params = [{transform_indices = @transform_0, window_bounds = array<i64: 1, 256, 128>}, {transform_indices = @transform_1, window_bounds = array<i64: 1, 256, 128>}, {pipeline_mode = #tpu.pipeline_mode<synchronous>, transform_indices = @transform_2, window_bounds = array<i64: 128, 128>}, {pipeline_mode = #tpu.pipeline_mode<synchronous>, transform_indices = @transform_3, window_bounds = array<i64: 1, 128>}, {pipeline_mode = #tpu.pipeline_mode<synchronous>, transform_indices = @transform_4, window_bounds = array<i64: 128, 256>}, {pipeline_mode = #tpu.pipeline_mode<synchronous>, transform_indices = @transform_5, window_bounds = array<i64: 1, 256>}, {transform_indices = @transform_6, window_bounds = array<i64: 1, 256, 128>}, {transform_indices = @transform_7, window_bounds = array<i64: 1, 256, 128>}, {transform_indices = @transform_8, window_bounds = array<i64: 1, 256, 128>}]} {
    %c0 = arith.constant 0 : index
    %c0_0 = arith.constant 0 : index
    %c0_1 = arith.constant 0 : index
    %0 = vector.load %arg2[%c0, %c0_0, %c0_1] : memref<1x256x128xbf16, #tpu.memory_space<vmem>>, vector<1x256x128xbf16>
    %1 = vector.shape_cast %0 : vector<1x256x128xbf16> to vector<256x128xbf16>
    %c0_2 = arith.constant 0 : index
    %c0_3 = arith.constant 0 : index
    %c0_4 = arith.constant 0 : index
    %2 = vector.load %arg3[%c0_2, %c0_3, %c0_4] : memref<1x256x128xbf16, #tpu.memory_space<vmem>>, vector<1x256x128xbf16>
    %3 = vector.shape_cast %2 : vector<1x256x128xbf16> to vector<256x128xbf16>
    %c0_5 = arith.constant 0 : index
    %c0_6 = arith.constant 0 : index
    %4 = vector.load %arg4[%c0_5, %c0_6] : memref<128x128xbf16, #tpu.memory_space<vmem>>, vector<128x128xbf16>
    %cst = arith.constant dense<0.000000e+00> : vector<256x128xf32>
    %5 = tpu.matmul %1, %4, %cst {dimension_numbers = #tpu.dot_dimension_numbers<[1], [0], [0], [1], [0, 0, 1, 1], [], []>} : vector<256x128xbf16>, vector<128x128xbf16>, vector<256x128xf32> -> vector<256x128xf32>
    %c0_7 = arith.constant 0 : index
    %c0_8 = arith.constant 0 : index
    %6 = vector.load %arg5[%c0_7, %c0_8] : memref<1x128xf32, #tpu.memory_space<vmem>>, vector<1x128xf32>
    %7 = vector.broadcast %6 : vector<1x128xf32> to vector<256x128xf32>
    %8 = arith.addf %5, %7 : vector<256x128xf32>
    %c0_9 = arith.constant 0 : index
    %c0_10 = arith.constant 0 : index
    %9 = vector.load %arg6[%c0_9, %c0_10] : memref<128x256xbf16, #tpu.memory_space<vmem>>, vector<128x256xbf16>
    %cst_11 = arith.constant dense<0.000000e+00> : vector<256x256xf32>
    %10 = tpu.matmul %3, %9, %cst_11 {dimension_numbers = #tpu.dot_dimension_numbers<[1], [0], [0], [1], [0, 0, 1, 1], [], []>} : vector<256x128xbf16>, vector<128x256xbf16>, vector<256x256xf32> -> vector<256x256xf32>
    %c0_12 = arith.constant 0 : index
    %c0_13 = arith.constant 0 : index
    %11 = vector.load %arg7[%c0_12, %c0_13] : memref<1x256xf32, #tpu.memory_space<vmem>>, vector<1x256xf32>
    %12 = vector.broadcast %11 : vector<1x256xf32> to vector<256x256xf32>
    %13 = arith.addf %10, %12 : vector<256x256xf32>
    %14 = arith.truncf %8 : vector<256x128xf32> to vector<256x128xbf16>
    %c0_14 = arith.constant 0 : index
    %c0_15 = arith.constant 0 : index
    %c0_16 = arith.constant 0 : index
    %15 = vector.load %arg8[%c0_14, %c0_15, %c0_16] : memref<1x256x128xbf16, #tpu.memory_space<vmem>>, vector<1x256x128xbf16>
    %16 = vector.shape_cast %15 : vector<1x256x128xbf16> to vector<256x128xbf16>
    %17 = vector.shape_cast %14 : vector<256x128xbf16> to vector<1x256x128xbf16>
    tpu.vector_store %arg8[%c0_14, %c0_15, %c0_16], %17 {strides = array<i32>} : memref<1x256x128xbf16, #tpu.memory_space<vmem>>, vector<1x256x128xbf16>,
    %18 = vector.extract_strided_slice %13 {offsets = [0, 0], sizes = [256, 128], strides = [1, 1]} : vector<256x256xf32> to vector<256x128xf32>
    %19 = arith.truncf %18 : vector<256x128xf32> to vector<256x128xbf16>
    %c0_17 = arith.constant 0 : index
    %c0_18 = arith.constant 0 : index
    %c0_19 = arith.constant 0 : index
    %20 = vector.load %arg9[%c0_17, %c0_18, %c0_19] : memref<1x256x128xbf16, #tpu.memory_space<vmem>>, vector<1x256x128xbf16>
    %21 = vector.shape_cast %20 : vector<1x256x128xbf16> to vector<256x128xbf16>
    %22 = vector.shape_cast %19 : vector<256x128xbf16> to vector<1x256x128xbf16>
    tpu.vector_store %arg9[%c0_17, %c0_18, %c0_19], %22 {strides = array<i32>} : memref<1x256x128xbf16, #tpu.memory_space<vmem>>, vector<1x256x128xbf16>,
    %23 = vector.extract_strided_slice %13 {offsets = [0, 128], sizes = [256, 128], strides = [1, 1]} : vector<256x256xf32> to vector<256x128xf32>
    %24 = arith.truncf %23 : vector<256x128xf32> to vector<256x128xbf16>
    %c0_20 = arith.constant 0 : index
    %c0_21 = arith.constant 0 : index
    %c0_22 = arith.constant 0 : index
    %25 = vector.load %arg10[%c0_20, %c0_21, %c0_22] : memref<1x256x128xbf16, #tpu.memory_space<vmem>>, vector<1x256x128xbf16>
    %26 = vector.shape_cast %25 : vector<1x256x128xbf16> to vector<256x128xbf16>
    %27 = vector.shape_cast %24 : vector<256x128xbf16> to vector<1x256x128xbf16>
    tpu.vector_store %arg10[%c0_20, %c0_21, %c0_22], %27 {strides = array<i32>} : memref<1x256x128xbf16, #tpu.memory_space<vmem>>, vector<1x256x128xbf16>,
    return
  }
  func.func @transform_0(%arg0: i32, %arg1: i32) -> (i32, i32, i32) {
    %c0_i32 = arith.constant 0 : i32
    %c0_i32_0 = arith.constant 0 : i32
    return %arg0, %arg1, %c0_i32 : i32, i32, i32
  }
  func.func @transform_1(%arg0: i32, %arg1: i32) -> (i32, i32, i32) {
    %c0_i32 = arith.constant 0 : i32
    %c0_i32_0 = arith.constant 0 : i32
    return %arg0, %arg1, %c0_i32 : i32, i32, i32
  }
  func.func @transform_2(%arg0: i32, %arg1: i32) -> (i32, i32) {
    %c0_i32 = arith.constant 0 : i32
    %c0_i32_0 = arith.constant 0 : i32
    %c0_i32_1 = arith.constant 0 : i32
    return %c0_i32, %c0_i32_0 : i32, i32
  }
  func.func @transform_3(%arg0: i32, %arg1: i32) -> (i32, i32) {
    %c0_i32 = arith.constant 0 : i32
    %c0_i32_0 = arith.constant 0 : i32
    %c0_i32_1 = arith.constant 0 : i32
    return %c0_i32, %c0_i32_0 : i32, i32
  }
  func.func @transform_4(%arg0: i32, %arg1: i32) -> (i32, i32) {
    %c0_i32 = arith.constant 0 : i32
    %c0_i32_0 = arith.constant 0 : i32
    %c0_i32_1 = arith.constant 0 : i32
    return %c0_i32, %c0_i32_0 : i32, i32
  }
  func.func @transform_5(%arg0: i32, %arg1: i32) -> (i32, i32) {
    %c0_i32 = arith.constant 0 : i32
    %c0_i32_0 = arith.constant 0 : i32
    %c0_i32_1 = arith.constant 0 : i32
    return %c0_i32, %c0_i32_0 : i32, i32
  }
  func.func @transform_6(%arg0: i32, %arg1: i32) -> (i32, i32, i32) {
    %c0_i32 = arith.constant 0 : i32
    %c0_i32_0 = arith.constant 0 : i32
    return %arg0, %arg1, %c0_i32 : i32, i32, i32
  }
  func.func @transform_7(%arg0: i32, %arg1: i32) -> (i32, i32, i32) {
    %c0_i32 = arith.constant 0 : i32
    %c0_i32_0 = arith.constant 0 : i32
    return %arg0, %arg1, %c0_i32 : i32, i32, i32
  }
  func.func @transform_8(%arg0: i32, %arg1: i32) -> (i32, i32, i32) {
    %c0_i32 = arith.constant 0 : i32
    %c0_i32_0 = arith.constant 0 : i32
    return %arg0, %arg1, %c0_i32 : i32, i32, i32
  }
}

</mosaic_0001>

<llo_original>
// kernel: cross_attention.3
$region0: #{cross_attention.3}
  #allocation0 [shape = 'u32[]', space=smem, size = 0x4, offset = 0x4, fixed_abs, tag = 'smem constant byte address 0x4 - core index']
  #allocation1 [shape = 'u32[72,128]{1,0:T(1,128)}', space=vmem, size = 0x9000, scoped, tag = 'internal scratch']
  #allocation2 [shape = 'f32[128,1]{1,0:T(8,128)}', space=vmem, size = 0x10000, scoped, tag = 'scratch operand']
  #allocation3 [shape = 'f32[128,1]{1,0:T(8,128)}', space=vmem, size = 0x10000, scoped, tag = 'scratch operand']
  #allocation4 [shape = 'f32[128,128]{1,0:T(8,128)}', space=vmem, size = 0x10000, scoped, tag = 'scratch operand']
  %s0 = inlined_call_operand.vmem [shape: bf16[2,256,128], index: 0, kind: input, shape index: {}]
  %s1 = inlined_call_operand.vmem [shape: bf16[2,256,128], index: 1, kind: input, shape index: {}]
  %s2 = inlined_call_operand.vmem [shape: bf16[2,256,128], index: 2, kind: input, shape index: {}]
  %s3 = inlined_call_operand.vmem [shape: bf16[128,128], index: 3, kind: input, shape index: {}]
  %s4 = inlined_call_operand.vmem [shape: f32[1,128], index: 4, kind: input, shape index: {}]
  %s5 = inlined_call_operand.vmem [shape: f32[2,256,128], index: 5, kind: output, shape index: {}]
  %s6 = sld [smem:[#allocation0]]
  $region61: #{cross_attention.3} parent=0
    _
  %s8 = ssub.s32 1, %s6
  %s9 = scalar_select 0, %s8, %s6
  loop: start=0, step=1, limit=10
  $region2: #{cross_attention.3} parent=0 // loop_pre_header
    _
  $region3: #{cross_attention.3} parent=0 // loop_header
    %s11 = sphi 0, %s15
    %p12 = scmp.ge.s32.totalorder %s11, 10
    %s18 = sphi 0, %s37
    %s19 = sphi 0, %s33
    %s20 = sphi 0, %s29
    %s21 = sphi 0, %s18
    %s22 = sphi 0, %s19
    %s23 = sphi 0, %s20
    %s24 = sphi 0, %s21
    %s25 = sphi 0, %s22
    %s26 = sphi 0, %s23
    %s42 = sphi 0, %s44
    %s45 = sphi 0, %s42
    %s46 = sphi 0, %s45
    %s62 = sphi 0, %s46
    %s70 = sphi 0, %s72
    %s73 = sphi 0, %s70
    %s74 = sphi 0, %s73
    %s90 = sphi 0, %s74
    %s98 = sphi 0, %s100
    %s101 = sphi 0, %s98
    %s102 = sphi 0, %s101
    %s118 = sphi 0, %s102
    %s122 = sphi 0, %s122
    %s124 = sphi 0, %s122
    %s125 = sphi 0, %s124
    %s139 = sphi 0, %s125
    %s143 = sphi 0, %s143
    %s145 = sphi 0, %s143
    %s146 = sphi 0, %s145
    %s160 = sphi 0, %s146
    %s168 = sphi 0, %s170
    %s171 = sphi 0, %s168
    %s172 = sphi 0, %s171
    %s188 = sphi 0, %s172
  $region4: #{cross_attention.3} parent=0 // loop_header_branch
    %14 = sbr.rel (%p12) target = $region8
  $region5: #{cross_attention.3} parent=0 // loop_body
    %s16 = ssub.s32 %s11, 1
    %s17 = ssub.s32 %s11, 2
    %s27 = sadd.s32 1, %s20
    %p28 = scmp.ge.s32.totalorder %s27, 2
    %s29 = scalar_select %p28, 0, %s27
    %s30 = sadd.s32 1, %s19
    %s31 = scalar_select %p28, %s30, %s19
    %p32 = scmp.ge.s32.totalorder %s31, 2
    %s33 = scalar_select %p32, 0, %s31
    %s34 = sadd.s32 1, %s18
    %s35 = scalar_select %p32, %s34, %s18
    %p36 = scmp.ge.s32.totalorder %s35, 2
    %s37 = scalar_select %p36, 0, %s35
    %s38 = ssub.s32 %s18, %s37
    %s39 = ssub.s32 %s19, %s33
    %s40 = sor.u32 %s38, %s39
    %p41 = scmp.eq.s32.totalorder %s40, 0
    %s43 = sadd.s32 %s42, 1
    %s44 = scalar_select %p41, %s42, %s43
    %p47 = pneg %p41
    %p48 = scmp.eq.s32.totalorder %s11, 7
    %p49 = por %p47, %p48
    %p50 = scmp.ne.s32.totalorder %s42, %s45
    %p51 = scmp.eq.s32.totalorder %s11, 0
    %p52 = por %p50, %p51
    %p53 = scmp.ne.s32.totalorder %s42, %s45
    %p54 = scmp.eq.s32.totalorder %s16, 7
    %p55 = por %p53, %p54
    %p56 = scmp.ne.s32.totalorder %s45, %s46
    %p57 = scmp.eq.s32.totalorder %s16, 0
    %p58 = por %p56, %p57
    %p59 = scmp.ne.s32.totalorder %s45, %s46
    %p60 = scmp.eq.s32.totalorder %s17, 7
    %p61 = por %p59, %p60
    %p63 = scmp.ne.s32.totalorder %s46, %s62
    %p64 = scmp.eq.s32.totalorder %s17, 0
    %p65 = por %p63, %p64
    %s66 = ssub.s32 %s18, %s37
    %s67 = ssub.s32 %s20, %s29
    %s68 = sor.u32 %s66, %s67
    %p69 = scmp.eq.s32.totalorder %s68, 0
    %s71 = sadd.s32 %s70, 1
    %s72 = scalar_select %p69, %s70, %s71
    %p75 = pneg %p69
    %p76 = scmp.eq.s32.totalorder %s11, 7
    %p77 = por %p75, %p76
    %p78 = scmp.ne.s32.totalorder %s70, %s73
    %p79 = scmp.eq.s32.totalorder %s11, 0
    %p80 = por %p78, %p79
    %p81 = scmp.ne.s32.totalorder %s70, %s73
    %p82 = scmp.eq.s32.totalorder %s16, 7
    %p83 = por %p81, %p82
    %p84 = scmp.ne.s32.totalorder %s73, %s74
    %p85 = scmp.eq.s32.totalorder %s16, 0
    %p86 = por %p84, %p85
    %p87 = scmp.ne.s32.totalorder %s73, %s74
    %p88 = scmp.eq.s32.totalorder %s17, 7
    %p89 = por %p87, %p88
    %p91 = scmp.ne.s32.totalorder %s74, %s90
    %p92 = scmp.eq.s32.totalorder %s17, 0
    %p93 = por %p91, %p92
    %s94 = ssub.s32 %s18, %s37
    %s95 = ssub.s32 %s20, %s29
    %s96 = sor.u32 %s94, %s95
    %p97 = scmp.eq.s32.totalorder %s96, 0
    %s99 = sadd.s32 %s98, 1
    %s100 = scalar_select %p97, %s98, %s99
    %p103 = pneg %p97
    %p104 = scmp.eq.s32.totalorder %s11, 7
    %p105 = por %p103, %p104
    %p106 = scmp.ne.s32.totalorder %s98, %s101
    %p107 = scmp.eq.s32.totalorder %s11, 0
    %p108 = por %p106, %p107
    %p109 = scmp.ne.s32.totalorder %s98, %s101
    %p110 = scmp.eq.s32.totalorder %s16, 7
    %p111 = por %p109, %p110
    %p112 = scmp.ne.s32.totalorder %s101, %s102
    %p113 = scmp.eq.s32.totalorder %s16, 0
    %p114 = por %p112, %p113
    %p115 = scmp.ne.s32.totalorder %s101, %s102
    %p116 = scmp.eq.s32.totalorder %s17, 7
    %p117 = por %p115, %p116
    %p119 = scmp.ne.s32.totalorder %s102, %s118
    %p120 = scmp.eq.s32.totalorder %s17, 0
    %p121 = por %p119, %p120
    %s123 = sadd.s32 %s122, 1
    %p126 = scmp.eq.s32.totalorder %s11, 7
    %p127 = scmp.ne.s32.totalorder %s122, %s124
    %p128 = scmp.eq.s32.totalorder %s11, 0
    %p129 = por %p127, %p128
    %p130 = scmp.ne.s32.totalorder %s122, %s124
    %p131 = scmp.eq.s32.totalorder %s16, 7
    %p132 = por %p130, %p131
    %p133 = scmp.ne.s32.totalorder %s124, %s125
    %p134 = scmp.eq.s32.totalorder %s16, 0
    %p135 = por %p133, %p134
    %p136 = scmp.ne.s32.totalorder %s124, %s125
    %p137 = scmp.eq.s32.totalorder %s17, 7
    %p138 = por %p136, %p137
    %p140 = scmp.ne.s32.totalorder %s125, %s139
    %p141 = scmp.eq.s32.totalorder %s17, 0
    %p142 = por %p140, %p141
    %s144 = sadd.s32 %s143, 1
    %p147 = scmp.eq.s32.totalorder %s11, 7
    %p148 = scmp.ne.s32.totalorder %s143, %s145
    %p149 = scmp.eq.s32.totalorder %s11, 0
    %p150 = por %p148, %p149
    %p151 = scmp.ne.s32.totalorder %s143, %s145
    %p152 = scmp.eq.s32.totalorder %s16, 7
    %p153 = por %p151, %p152
    %p154 = scmp.ne.s32.totalorder %s145, %s146
    %p155 = scmp.eq.s32.totalorder %s16, 0
    %p156 = por %p154, %p155
    %p157 = scmp.ne.s32.totalorder %s145, %s146
    %p158 = scmp.eq.s32.totalorder %s17, 7
    %p159 = por %p157, %p158
    %p161 = scmp.ne.s32.totalorder %s146, %s160
    %p162 = scmp.eq.s32.totalorder %s17, 0
    %p163 = por %p161, %p162
    %s164 = ssub.s32 %s18, %s37
    %s165 = ssub.s32 %s19, %s33
    %s166 = sor.u32 %s164, %s165
    %p167 = scmp.eq.s32.totalorder %s166, 0
    %s169 = sadd.s32 %s168, 1
    %s170 = scalar_select %p167, %s168, %s169
    %p173 = pneg %p167
    %p174 = scmp.eq.s32.totalorder %s11, 7
    %p175 = por %p173, %p174
    %p176 = scmp.ne.s32.totalorder %s168, %s171
    %p177 = scmp.eq.s32.totalorder %s11, 0
    %p178 = por %p176, %p177
    %p179 = scmp.ne.s32.totalorder %s168, %s171
    %p180 = scmp.eq.s32.totalorder %s16, 7
    %p181 = por %p179, %p180
    %p182 = scmp.ne.s32.totalorder %s171, %s172
    %p183 = scmp.eq.s32.totalorder %s16, 0
    %p184 = por %p182, %p183
    %p185 = scmp.ne.s32.totalorder %s171, %s172
    %p186 = scmp.eq.s32.totalorder %s17, 7
    %p187 = por %p185, %p186
    %p189 = scmp.ne.s32.totalorder %s172, %s188
    %p190 = scmp.eq.s32.totalorder %s17, 0
    %p191 = por %p189, %p190
    %p192 = scmp.le.s32.totalorder 1, %s11
    %p193 = scmp.lt.s32.totalorder %s11, 9
    %p194 = pnand %p192, %p193
    %p195 = pneg %p194
    // Predicated region
    $region9: #{cross_attention.3} parent=5 // pred_check
      _
    $region10: #{cross_attention.3} parent=5 // pred_check_branch
      %197 = sbr.rel (%p194) target = $region12
    $region11: #{cross_attention.3} parent=5 // pred_region
      %s198 = ssub.s32 %s11, 1
      // Predicated region
      $region13: #{cross_attention.3} parent=11 // pred_check
        %p199 = pneg %p135
      $region14: #{cross_attention.3} parent=11 // pred_check_branch
        %201 = sbr.rel (%p199) target = $region16
      $region15: #{cross_attention.3} parent=11 // pred_region
        _
      $region16: #{cross_attention.3} parent=11 // pred_fallthru
        _
      // Predicated region
      $region17: #{cross_attention.3} parent=11 // pred_check
        %p202 = pneg %p156
      $region18: #{cross_attention.3} parent=11 // pred_check_branch
        %204 = sbr.rel (%p202) target = $region20
      $region19: #{cross_attention.3} parent=11 // pred_region
        _
      $region20: #{cross_attention.3} parent=11 // pred_fallthru
        _
    $region12: #{cross_attention.3} parent=5 // pred_fallthru
      _
    %p205 = scmp.lt.s32.totalorder %s11, 8
    // Predicated region
    $region21: #{cross_attention.3} parent=5 // pred_check
      %p206 = pneg %p205
    $region22: #{cross_attention.3} parent=5 // pred_check_branch
      %208 = sbr.rel (%p206) target = $region24
    $region23: #{cross_attention.3} parent=5 // pred_region
      // Predicated region
      $region25: #{cross_attention.3} parent=23 // pred_check
        %p209 = pneg %p52
      $region26: #{cross_attention.3} parent=23 // pred_check_branch
        %211 = sbr.rel (%p209) target = $region28
      $region27: #{cross_attention.3} parent=23 // pred_region
        %s212 = smul.u32 16, %s19
        %p213 = scmp.lt.s32.totalorder %s18, 1
        %s214 = scalar_select %p213, %s18, 1
        %p215 = scmp.lt.s32.totalorder %s212, 31
        %s216 = scalar_select %p215, %s212, 31
        %s217 = smul.addr %s214, 32
        %s218 = sadd.s32 %s216, %s217
        %s219 = smul.addr %s218, 4
        %s220 = scalar_lea.vmem %s0, %s219
        %s221 = smul.u32 16, %s19
      $region28: #{cross_attention.3} parent=23 // pred_fallthru
        _
      // Predicated region
      $region29: #{cross_attention.3} parent=23 // pred_check
        %p222 = pneg %p80
      $region30: #{cross_attention.3} parent=23 // pred_check_branch
        %224 = sbr.rel (%p222) target = $region32
      $region31: #{cross_attention.3} parent=23 // pred_region
        %s225 = smul.u32 16, %s20
        %p226 = scmp.lt.s32.totalorder %s18, 1
        %s227 = scalar_select %p226, %s18, 1
        %p228 = scmp.lt.s32.totalorder %s225, 31
        %s229 = scalar_select %p228, %s225, 31
        %s230 = smul.addr %s227, 32
        %s231 = sadd.s32 %s229, %s230
        %s232 = smul.addr %s231, 4
        %s233 = scalar_lea.vmem %s1, %s232
        %s234 = smul.u32 16, %s20
      $region32: #{cross_attention.3} parent=23 // pred_fallthru
        _
      // Predicated region
      $region33: #{cross_attention.3} parent=23 // pred_check
        %p235 = pneg %p108
      $region34: #{cross_attention.3} parent=23 // pred_check_branch
        %237 = sbr.rel (%p235) target = $region36
      $region35: #{cross_attention.3} parent=23 // pred_region
        %s238 = smul.u32 16, %s20
        %p239 = scmp.lt.s32.totalorder %s18, 1
        %s240 = scalar_select %p239, %s18, 1
        %p241 = scmp.lt.s32.totalorder %s238, 31
        %s242 = scalar_select %p241, %s238, 31
        %s243 = smul.addr %s240, 32
        %s244 = sadd.s32 %s242, %s243
        %s245 = smul.addr %s244, 4
        %s246 = scalar_lea.vmem %s2, %s245
        %s247 = smul.u32 16, %s20
      $region36: #{cross_attention.3} parent=23 // pred_fallthru
        _
    $region24: #{cross_attention.3} parent=5 // pred_fallthru
      _
    %p248 = scmp.le.s32.totalorder 1, %s11
    %p249 = scmp.lt.s32.totalorder %s11, 9
    %p250 = pnand %p248, %p249
    %p251 = pneg %p250
    // Predicated region
    $region37: #{cross_attention.3} parent=5 // pred_check
      _
    $region38: #{cross_attention.3} parent=5 // pred_check_branch
      %253 = sbr.rel (%p250) target = $region40
    $region39: #{cross_attention.3} parent=5 // pred_region
      %s254 = ssub.s32 %s11, 1
      %s255 = smul.u32 16, %s22
      %p256 = scmp.lt.s32.totalorder %s21, 1
      %s257 = scalar_select %p256, %s21, 1
      %p258 = scmp.lt.s32.totalorder %s255, 31
      %s259 = scalar_select %p258, %s255, 31
      %s260 = smul.addr %s257, 32
      %s261 = sadd.s32 %s259, %s260
      %s262 = smul.addr %s261, 4
      %s263 = scalar_lea.vmem %s0, %s262
      %p264 = pneg %p58
      %p265 = pneg %p55
      %s266 = smul.u32 16, %s23
      %p267 = scmp.lt.s32.totalorder %s21, 1
      %s268 = scalar_select %p267, %s21, 1
      %p269 = scmp.lt.s32.totalorder %s266, 31
      %s270 = scalar_select %p269, %s266, 31
      %s271 = smul.addr %s268, 32
      %s272 = sadd.s32 %s270, %s271
      %s273 = smul.addr %s272, 4
      %s274 = scalar_lea.vmem %s1, %s273
      %p275 = pneg %p86
      %p276 = pneg %p83
      %s277 = smul.u32 16, %s23
      %p278 = scmp.lt.s32.totalorder %s21, 1
      %s279 = scalar_select %p278, %s21, 1
      %p280 = scmp.lt.s32.totalorder %s277, 31
      %s281 = scalar_select %p280, %s277, 31
      %s282 = smul.addr %s279, 32
      %s283 = sadd.s32 %s281, %s282
      %s284 = smul.addr %s283, 4
      %s285 = scalar_lea.vmem %s2, %s284
      %p286 = pneg %p114
      %p287 = pneg %p111
      %p288 = pneg %p135
      %p289 = pneg %p132
      %p290 = pneg %p156
      %p291 = pneg %p153
      %p292 = pneg %p184
      %p293 = pneg %p181
      %s294 = smul.u32 16, %s22
      %p295 = scmp.lt.s32.totalorder %s21, 1
      %s296 = scalar_select %p295, %s21, 1
      %p297 = scmp.lt.s32.totalorder %s294, 31
      %s298 = scalar_select %p297, %s294, 31
      %s299 = smul.addr %s296, 32
      %s300 = sadd.s32 %s298, %s299
      %s301 = smul.addr %s300, 8
      %s302 = scalar_lea.vmem %s5, %s301
      %s303 = smul.u32 16, %s22
      %p304 = scmp.lt.s32.totalorder %s21, 1
      %s305 = scalar_select %p304, %s21, 1
      %p306 = scmp.lt.s32.totalorder %s303, 31
      %s307 = scalar_select %p306, %s303, 31
      %s308 = smul.addr %s305, 32
      %s309 = sadd.s32 %s307, %s308
      %s310 = smul.addr %s309, 4
      %s311 = scalar_lea.vmem %s0, %s310
      %s312 = smul.u32 16, %s22
      %s313 = smul.u32 16, %s23
      %p314 = scmp.lt.s32.totalorder %s21, 1
      %s315 = scalar_select %p314, %s21, 1
      %p316 = scmp.lt.s32.totalorder %s313, 31
      %s317 = scalar_select %p316, %s313, 31
      %s318 = smul.addr %s315, 32
      %s319 = sadd.s32 %s317, %s318
      %s320 = smul.addr %s319, 4
      %s321 = scalar_lea.vmem %s1, %s320
      %s322 = smul.u32 16, %s23
      %s323 = smul.u32 16, %s23
      %p324 = scmp.lt.s32.totalorder %s21, 1
      %s325 = scalar_select %p324, %s21, 1
      %p326 = scmp.lt.s32.totalorder %s323, 31
      %s327 = scalar_select %p326, %s323, 31
      %s328 = smul.addr %s325, 32
      %s329 = sadd.s32 %s327, %s328
      %s330 = smul.addr %s329, 4
      %s331 = scalar_lea.vmem %s2, %s330
      %s332 = smul.u32 16, %s23
      %s333 = smul.u32 16, %s22
      %p334 = scmp.lt.s32.totalorder %s21, 1
      %s335 = scalar_select %p334, %s21, 1
      %p336 = scmp.lt.s32.totalorder %s333, 31
      %s337 = scalar_select %p336, %s333, 31
      %s338 = smul.addr %s335, 32
      %s339 = sadd.s32 %s337, %s338
      %s340 = smul.addr %s339, 8
      %s341 = scalar_lea.vmem %s5, %s340
      %s342 = smul.u32 16, %s22
      %p343 = scmp.eq.s32.totalorder %s23, 0
      // Predicated region
      $region41: #{cross_attention.3} parent=39 // pred_check
        %p344 = pneg %p343
      $region42: #{cross_attention.3} parent=39 // pred_check_branch
        %346 = sbr.rel (%p344) target = $region44
      $region43: #{cross_attention.3} parent=39 // pred_region
        %vm347 = vcmask 7168
        %348 = vst.msk [vmem:[#allocation2] sm:$0xff] %vm347, -inf
        %349 = vst.msk [vmem:[#allocation2 + $0x8] sm:$0xff] %vm347, -inf
        %350 = vst.msk [vmem:[#allocation2 + $0x10] sm:$0xff] %vm347, -inf
        %351 = vst.msk [vmem:[#allocation2 + $0x18] sm:$0xff] %vm347, -inf
        %352 = vst.msk [vmem:[#allocation2 + $0x20] sm:$0xff] %vm347, -inf
        %353 = vst.msk [vmem:[#allocation2 + $0x28] sm:$0xff] %vm347, -inf
        %354 = vst.msk [vmem:[#allocation2 + $0x30] sm:$0xff] %vm347, -inf
        %355 = vst.msk [vmem:[#allocation2 + $0x38] sm:$0xff] %vm347, -inf
        %356 = vst.msk [vmem:[#allocation2 + $0x40] sm:$0xff] %vm347, -inf
        %357 = vst.msk [vmem:[#allocation2 + $0x48] sm:$0xff] %vm347, -inf
        %358 = vst.msk [vmem:[#allocation2 + $0x50] sm:$0xff] %vm347, -inf
        %359 = vst.msk [vmem:[#allocation2 + $0x58] sm:$0xff] %vm347, -inf
        %360 = vst.msk [vmem:[#allocation2 + $0x60] sm:$0xff] %vm347, -inf
        %361 = vst.msk [vmem:[#allocation2 + $0x68] sm:$0xff] %vm347, -inf
        %362 = vst.msk [vmem:[#allocation2 + $0x70] sm:$0xff] %vm347, -inf
        %363 = vst.msk [vmem:[#allocation2 + $0x78] sm:$0xff] %vm347, -inf
        %364 = vst.msk [vmem:[#allocation3] sm:$0xff] %vm347, 0.0
        %365 = vst.msk [vmem:[#allocation3 + $0x8] sm:$0xff] %vm347, 0.0
        %366 = vst.msk [vmem:[#allocation3 + $0x10] sm:$0xff] %vm347, 0.0
        %367 = vst.msk [vmem:[#allocation3 + $0x18] sm:$0xff] %vm347, 0.0
        %368 = vst.msk [vmem:[#allocation3 + $0x20] sm:$0xff] %vm347, 0.0
        %369 = vst.msk [vmem:[#allocation3 + $0x28] sm:$0xff] %vm347, 0.0
        %370 = vst.msk [vmem:[#allocation3 + $0x30] sm:$0xff] %vm347, 0.0
        %371 = vst.msk [vmem:[#allocation3 + $0x38] sm:$0xff] %vm347, 0.0
        %372 = vst.msk [vmem:[#allocation3 + $0x40] sm:$0xff] %vm347, 0.0
        %373 = vst.msk [vmem:[#allocation3 + $0x48] sm:$0xff] %vm347, 0.0
        %374 = vst.msk [vmem:[#allocation3 + $0x50] sm:$0xff] %vm347, 0.0
        %375 = vst.msk [vmem:[#allocation3 + $0x58] sm:$0xff] %vm347, 0.0
        %376 = vst.msk [vmem:[#allocation3 + $0x60] sm:$0xff] %vm347, 0.0
        %377 = vst.msk [vmem:[#allocation3 + $0x68] sm:$0xff] %vm347, 0.0
        %378 = vst.msk [vmem:[#allocation3 + $0x70] sm:$0xff] %vm347, 0.0
        %379 = vst.msk [vmem:[#allocation3 + $0x78] sm:$0xff] %vm347, 0.0
        %380 = vst [vmem:[#allocation4] sm:$0xff] 0.0
        %381 = vst [vmem:[#allocation4 + $0x8] sm:$0xff] 0.0
        %382 = vst [vmem:[#allocation4 + $0x10] sm:$0xff] 0.0
        %383 = vst [vmem:[#allocation4 + $0x18] sm:$0xff] 0.0
        %384 = vst [vmem:[#allocation4 + $0x20] sm:$0xff] 0.0
        %385 = vst [vmem:[#allocation4 + $0x28] sm:$0xff] 0.0
        %386 = vst [vmem:[#allocation4 + $0x30] sm:$0xff] 0.0
        %387 = vst [vmem:[#allocation4 + $0x38] sm:$0xff] 0.0
        %388 = vst [vmem:[#allocation4 + $0x40] sm:$0xff] 0.0
        %389 = vst [vmem:[#allocation4 + $0x48] sm:$0xff] 0.0
        %390 = vst [vmem:[#allocation4 + $0x50] sm:$0xff] 0.0
        %391 = vst [vmem:[#allocation4 + $0x58] sm:$0xff] 0.0
        %392 = vst [vmem:[#allocation4 + $0x60] sm:$0xff] 0.0
        %393 = vst [vmem:[#allocation4 + $0x68] sm:$0xff] 0.0
        %394 = vst [vmem:[#allocation4 + $0x70] sm:$0xff] 0.0
        %395 = vst [vmem:[#allocation4 + $0x78] sm:$0xff] 0.0
      $region44: #{cross_attention.3} parent=39 // pred_fallthru
        _
      %v396 = vld [vmem:[%s311] sm:$0xf]
      %v397 = vld [vmem:[%s311 + $0x4] sm:$0xf]
      %v398 = vld [vmem:[%s311 + $0x8] sm:$0xf]
      %v399 = vld [vmem:[%s311 + $0xc] sm:$0xf]
      %v400 = vld [vmem:[%s311 + $0x10] sm:$0xf]
      %v401 = vld [vmem:[%s311 + $0x14] sm:$0xf]
      %v402 = vld [vmem:[%s311 + $0x18] sm:$0xf]
      %v403 = vld [vmem:[%s311 + $0x1c] sm:$0xf]
      %v404 = vld [vmem:[%s311 + $0x20] sm:$0xf]
      %v405 = vld [vmem:[%s311 + $0x24] sm:$0xf]
      %v406 = vld [vmem:[%s311 + $0x28] sm:$0xf]
      %v407 = vld [vmem:[%s311 + $0x2c] sm:$0xf]
      %v408 = vld [vmem:[%s311 + $0x30] sm:$0xf]
      %v409 = vld [vmem:[%s311 + $0x34] sm:$0xf]
      %v410 = vld [vmem:[%s311 + $0x38] sm:$0xf]
      %v411 = vld [vmem:[%s311 + $0x3c] sm:$0xf]
      %v412 = vld [vmem:[%s321] sm:$0xf]
      %v413 = vld [vmem:[%s321 + $0x4] sm:$0xf]
      %v414 = vld [vmem:[%s321 + $0x8] sm:$0xf]
      %v415 = vld [vmem:[%s321 + $0xc] sm:$0xf]
      %v416 = vld [vmem:[%s321 + $0x10] sm:$0xf]
      %v417 = vld [vmem:[%s321 + $0x14] sm:$0xf]
      %v418 = vld [vmem:[%s321 + $0x18] sm:$0xf]
      %v419 = vld [vmem:[%s321 + $0x1c] sm:$0xf]
      %v420 = vld [vmem:[%s321 + $0x20] sm:$0xf]
      %v421 = vld [vmem:[%s321 + $0x24] sm:$0xf]
      %v422 = vld [vmem:[%s321 + $0x28] sm:$0xf]
      %v423 = vld [vmem:[%s321 + $0x2c] sm:$0xf]
      %v424 = vld [vmem:[%s321 + $0x30] sm:$0xf]
      %v425 = vld [vmem:[%s321 + $0x34] sm:$0xf]
      %v426 = vld [vmem:[%s321 + $0x38] sm:$0xf]
      %v427 = vld [vmem:[%s321 + $0x3c] sm:$0xf]
      %v444 = vunpack.c.l.b16 %v396
      %v445 = vunpack.c.l.b16 %v397
      %v446 = vunpack.c.l.b16 %v398
      %v447 = vunpack.c.l.b16 %v399
      %v448 = vunpack.c.l.b16 %v400
      %v449 = vunpack.c.l.b16 %v401
      %v450 = vunpack.c.l.b16 %v402
      %v451 = vunpack.c.l.b16 %v403
      %v452 = vunpack.c.l.b16 %v404
      %v453 = vunpack.c.l.b16 %v405
      %v454 = vunpack.c.l.b16 %v406
      %v455 = vunpack.c.l.b16 %v407
      %v456 = vunpack.c.l.b16 %v408
      %v457 = vunpack.c.l.b16 %v409
      %v458 = vunpack.c.l.b16 %v410
      %v459 = vunpack.c.l.b16 %v411
      %v460 = vpack.c.b16 %v445, %v444
      %v461 = vpack.c.b16 %v447, %v446
      %v462 = vpack.c.b16 %v449, %v448
      %v463 = vpack.c.b16 %v451, %v450
      %v464 = vpack.c.b16 %v453, %v452
      %v465 = vpack.c.b16 %v455, %v454
      %v466 = vpack.c.b16 %v457, %v456
      %v467 = vpack.c.b16 %v459, %v458
      %v492 = vunpack.c.l.b16 %v412
      %v493 = vunpack.c.l.b16 %v413
      %v494 = vunpack.c.l.b16 %v414
      %v495 = vunpack.c.l.b16 %v415
      %v496 = vunpack.c.l.b16 %v416
      %v497 = vunpack.c.l.b16 %v417
      %v498 = vunpack.c.l.b16 %v418
      %v499 = vunpack.c.l.b16 %v419
      %v500 = vunpack.c.l.b16 %v420
      %v501 = vunpack.c.l.b16 %v421
      %v502 = vunpack.c.l.b16 %v422
      %v503 = vunpack.c.l.b16 %v423
      %v504 = vunpack.c.l.b16 %v424
      %v505 = vunpack.c.l.b16 %v425
      %v506 = vunpack.c.l.b16 %v426
      %v507 = vunpack.c.l.b16 %v427
      %v508 = vpack.c.b16 %v493, %v492
      %v509 = vpack.c.b16 %v495, %v494
      %v510 = vpack.c.b16 %v497, %v496
      %v511 = vpack.c.b16 %v499, %v498
      %v512 = vpack.c.b16 %v501, %v500
      %v513 = vpack.c.b16 %v503, %v502
      %v514 = vpack.c.b16 %v505, %v504
      %v515 = vpack.c.b16 %v507, %v506
      %524 = vmatpush.bf16.xpose.msra.mxu0 %v515
      %525 = vmatpush.bf16.xpose.msra.mxu0 %v514
      %526 = vmatpush.bf16.xpose.msra.mxu0 %v513
      %527 = vmatpush.bf16.xpose.msra.mxu0 %v512
      %528 = vmatpush.bf16.xpose.msra.mxu0 %v511
      %529 = vmatpush.bf16.xpose.msra.mxu0 %v510
      %530 = vmatpush.bf16.xpose.msra.mxu0 %v509
      %531 = vmatpush.bf16.xpose.msra.mxu0 %v508
      %532 = vmatmul.bf16.gmra.mxu0 %v460
      %v533 = vpop.f32.mrf.mxu0
      %v534 = vadd.f32 0.0, %v533
      %v535 = vpop.f32.mrf.mxu0
      %v536 = vadd.f32 0.0, %v535
      %537 = vmatmul.bf16.gmra.mxu0 %v461
      %v538 = vpop.f32.mrf.mxu0
      %v539 = vadd.f32 0.0, %v538
      %v540 = vpop.f32.mrf.mxu0
      %v541 = vadd.f32 0.0, %v540
      %542 = vmatmul.bf16.gmra.mxu0 %v462
      %v543 = vpop.f32.mrf.mxu0
      %v544 = vadd.f32 0.0, %v543
      %v545 = vpop.f32.mrf.mxu0
      %v546 = vadd.f32 0.0, %v545
      %547 = vmatmul.bf16.gmra.mxu0 %v463
      %v548 = vpop.f32.mrf.mxu0
      %v549 = vadd.f32 0.0, %v548
      %v550 = vpop.f32.mrf.mxu0
      %v551 = vadd.f32 0.0, %v550
      %552 = vmatmul.bf16.gmra.mxu0 %v464
      %v553 = vpop.f32.mrf.mxu0
      %v554 = vadd.f32 0.0, %v553
      %v555 = vpop.f32.mrf.mxu0
      %v556 = vadd.f32 0.0, %v555
      %557 = vmatmul.bf16.gmra.mxu0 %v465
      %v558 = vpop.f32.mrf.mxu0
      %v559 = vadd.f32 0.0, %v558
      %v560 = vpop.f32.mrf.mxu0
      %v561 = vadd.f32 0.0, %v560
      %562 = vmatmul.bf16.gmra.mxu0 %v466
      %v563 = vpop.f32.mrf.mxu0
      %v564 = vadd.f32 0.0, %v563
      %v565 = vpop.f32.mrf.mxu0
      %v566 = vadd.f32 0.0, %v565
      %567 = vmatmul.bf16.gmra.mxu0 %v467
      %v568 = vpop.f32.mrf.mxu0
      %v569 = vadd.f32 0.0, %v568
      %v570 = vpop.f32.mrf.mxu0
      %v571 = vadd.f32 0.0, %v570
      %572 = vdwg.mxu0
      %v573 = vld [vmem:[#allocation2] sm:$0xff]
      %v574 = vld [vmem:[#allocation2 + $0x8] sm:$0xff]
      %v575 = vld [vmem:[#allocation2 + $0x10] sm:$0xff]
      %v576 = vld [vmem:[#allocation2 + $0x18] sm:$0xff]
      %v577 = vld [vmem:[#allocation2 + $0x20] sm:$0xff]
      %v578 = vld [vmem:[#allocation2 + $0x28] sm:$0xff]
      %v579 = vld [vmem:[#allocation2 + $0x30] sm:$0xff]
      %v580 = vld [vmem:[#allocation2 + $0x38] sm:$0xff]
      %v581 = vld [vmem:[#allocation2 + $0x40] sm:$0xff]
      %v582 = vld [vmem:[#allocation2 + $0x48] sm:$0xff]
      %v583 = vld [vmem:[#allocation2 + $0x50] sm:$0xff]
      %v584 = vld [vmem:[#allocation2 + $0x58] sm:$0xff]
      %v585 = vld [vmem:[#allocation2 + $0x60] sm:$0xff]
      %v586 = vld [vmem:[#allocation2 + $0x68] sm:$0xff]
      %v587 = vld [vmem:[#allocation2 + $0x70] sm:$0xff]
      %v588 = vld [vmem:[#allocation2 + $0x78] sm:$0xff]
      %589 = vmax.xlane.f32.xlu0 %v534
      %v590 = vpop.xlane.xlu0 %589
      %591 = vmax.xlane.f32.xlu0 %v536
      %v592 = vpop.xlane.xlu0 %591
      %593 = vmax.xlane.f32.xlu0 %v539
      %v594 = vpop.xlane.xlu0 %593
      %595 = vmax.xlane.f32.xlu0 %v541
      %v596 = vpop.xlane.xlu0 %595
      %597 = vmax.xlane.f32.xlu0 %v544
      %v598 = vpop.xlane.xlu0 %597
      %599 = vmax.xlane.f32.xlu0 %v546
      %v600 = vpop.xlane.xlu0 %599
      %601 = vmax.xlane.f32.xlu0 %v549
      %v602 = vpop.xlane.xlu0 %601
      %603 = vmax.xlane.f32.xlu0 %v551
      %v604 = vpop.xlane.xlu0 %603
      %605 = vmax.xlane.f32.xlu0 %v554
      %v606 = vpop.xlane.xlu0 %605
      %607 = vmax.xlane.f32.xlu0 %v556
      %v608 = vpop.xlane.xlu0 %607
      %609 = vmax.xlane.f32.xlu0 %v559
      %v610 = vpop.xlane.xlu0 %609
      %611 = vmax.xlane.f32.xlu0 %v561
      %v612 = vpop.xlane.xlu0 %611
      %613 = vmax.xlane.f32.xlu0 %v564
      %v614 = vpop.xlane.xlu0 %613
      %615 = vmax.xlane.f32.xlu0 %v566
      %v616 = vpop.xlane.xlu0 %615
      %617 = vmax.xlane.f32.xlu0 %v569
      %v618 = vpop.xlane.xlu0 %617
      %619 = vmax.xlane.f32.xlu0 %v571
      %v620 = vpop.xlane.xlu0 %619
      %v621 = vmax.f32 %v573, %v590
      %v622 = vmax.f32 %v574, %v592
      %v623 = vmax.f32 %v575, %v594
      %v624 = vmax.f32 %v576, %v596
      %v625 = vmax.f32 %v577, %v598
      %v626 = vmax.f32 %v578, %v600
      %v627 = vmax.f32 %v579, %v602
      %v628 = vmax.f32 %v580, %v604
      %v629 = vmax.f32 %v581, %v606
      %v630 = vmax.f32 %v582, %v608
      %v631 = vmax.f32 %v583, %v610
      %v632 = vmax.f32 %v584, %v612
      %v633 = vmax.f32 %v585, %v614
      %v634 = vmax.f32 %v586, %v616
      %v635 = vmax.f32 %v587, %v618
      %v636 = vmax.f32 %v588, %v620
      %v637 = vsub.f32 %v573, %v621
      %v638 = vsub.f32 %v574, %v622
      %v639 = vsub.f32 %v575, %v623
      %v640 = vsub.f32 %v576, %v624
      %v641 = vsub.f32 %v577, %v625
      %v642 = vsub.f32 %v578, %v626
      %v643 = vsub.f32 %v579, %v627
      %v644 = vsub.f32 %v580, %v628
      %v645 = vsub.f32 %v581, %v629
      %v646 = vsub.f32 %v582, %v630
      %v647 = vsub.f32 %v583, %v631
      %v648 = vsub.f32 %v584, %v632
      %v649 = vsub.f32 %v585, %v633
      %v650 = vsub.f32 %v586, %v634
      %v651 = vsub.f32 %v587, %v635
      %v652 = vsub.f32 %v588, %v636
      %v653 = vmul.f32 %v637, 1.442695
      %v654 = vpow.pop %v653
      %v655 = vmul.f32 %v638, 1.442695
      %v656 = vpow.pop %v655
      %v657 = vmul.f32 %v639, 1.442695
      %v658 = vpow.pop %v657
      %v659 = vmul.f32 %v640, 1.442695
      %v660 = vpow.pop %v659
      %v661 = vmul.f32 %v641, 1.442695
      %v662 = vpow.pop %v661
      %v663 = vmul.f32 %v642, 1.442695
      %v664 = vpow.pop %v663
      %v665 = vmul.f32 %v643, 1.442695
      %v666 = vpow.pop %v665
      %v667 = vmul.f32 %v644, 1.442695
      %v668 = vpow.pop %v667
      %v669 = vmul.f32 %v645, 1.442695
      %v670 = vpow.pop %v669
      %v671 = vmul.f32 %v646, 1.442695
      %v672 = vpow.pop %v671
      %v673 = vmul.f32 %v647, 1.442695
      %v674 = vpow.pop %v673
      %v675 = vmul.f32 %v648, 1.442695
      %v676 = vpow.pop %v675
      %v677 = vmul.f32 %v649, 1.442695
      %v678 = vpow.pop %v677
      %v679 = vmul.f32 %v650, 1.442695
      %v680 = vpow.pop %v679
      %v681 = vmul.f32 %v651, 1.442695
      %v682 = vpow.pop %v681
      %v683 = vmul.f32 %v652, 1.442695
      %v684 = vpow.pop %v683
      %686 = vset.pattern.permute.xlu0 0
      %687 = vperm.xlu0 %686, %v621
      %v688 = vpop.permute.xlu0 %687
      %691 = vset.pattern.permute.xlu0 0
      %692 = vperm.xlu0 %691, %v622
      %v693 = vpop.permute.xlu0 %692
      %696 = vset.pattern.permute.xlu0 0
      %697 = vperm.xlu0 %696, %v623
      %v698 = vpop.permute.xlu0 %697
      %701 = vset.pattern.permute.xlu0 0
      %702 = vperm.xlu0 %701, %v624
      %v703 = vpop.permute.xlu0 %702
      %706 = vset.pattern.permute.xlu0 0
      %707 = vperm.xlu0 %706, %v625
      %v708 = vpop.permute.xlu0 %707
      %711 = vset.pattern.permute.xlu0 0
      %712 = vperm.xlu0 %711, %v626
      %v713 = vpop.permute.xlu0 %712
      %716 = vset.pattern.permute.xlu0 0
      %717 = vperm.xlu0 %716, %v627
      %v718 = vpop.permute.xlu0 %717
      %721 = vset.pattern.permute.xlu0 0
      %722 = vperm.xlu0 %721, %v628
      %v723 = vpop.permute.xlu0 %722
      %726 = vset.pattern.permute.xlu0 0
      %727 = vperm.xlu0 %726, %v629
      %v728 = vpop.permute.xlu0 %727
      %731 = vset.pattern.permute.xlu0 0
      %732 = vperm.xlu0 %731, %v630
      %v733 = vpop.permute.xlu0 %732
      %736 = vset.pattern.permute.xlu0 0
      %737 = vperm.xlu0 %736, %v631
      %v738 = vpop.permute.xlu0 %737
      %741 = vset.pattern.permute.xlu0 0
      %742 = vperm.xlu0 %741, %v632
      %v743 = vpop.permute.xlu0 %742
      %746 = vset.pattern.permute.xlu0 0
      %747 = vperm.xlu0 %746, %v633
      %v748 = vpop.permute.xlu0 %747
      %751 = vset.pattern.permute.xlu0 0
      %752 = vperm.xlu0 %751, %v634
      %v753 = vpop.permute.xlu0 %752
      %756 = vset.pattern.permute.xlu0 0
      %757 = vperm.xlu0 %756, %v635
      %v758 = vpop.permute.xlu0 %757
      %761 = vset.pattern.permute.xlu0 0
      %762 = vperm.xlu0 %761, %v636
      %v763 = vpop.permute.xlu0 %762
      %v765 = vsub.f32 %v534, %v688
      %v766 = vsub.f32 %v536, %v693
      %v767 = vsub.f32 %v539, %v698
      %v768 = vsub.f32 %v541, %v703
      %v769 = vsub.f32 %v544, %v708
      %v770 = vsub.f32 %v546, %v713
      %v771 = vsub.f32 %v549, %v718
      %v772 = vsub.f32 %v551, %v723
      %v773 = vsub.f32 %v554, %v728
      %v774 = vsub.f32 %v556, %v733
      %v775 = vsub.f32 %v559, %v738
      %v776 = vsub.f32 %v561, %v743
      %v777 = vsub.f32 %v564, %v748
      %v778 = vsub.f32 %v566, %v753
      %v779 = vsub.f32 %v569, %v758
      %v780 = vsub.f32 %v571, %v763
      %v781 = vpack.c.bf16 %v766, %v765
      %v782 = vpack.c.bf16 %v768, %v767
      %v783 = vpack.c.bf16 %v770, %v769
      %v784 = vpack.c.bf16 %v772, %v771
      %v785 = vpack.c.bf16 %v774, %v773
      %v786 = vpack.c.bf16 %v776, %v775
      %v787 = vpack.c.bf16 %v778, %v777
      %v788 = vpack.c.bf16 %v780, %v779
      %v789 = vunpack.c.l.bf16 %v781
      %v790 = vunpack.c.h.bf16 %v781
      %v791 = vunpack.c.l.bf16 %v782
      %v792 = vunpack.c.h.bf16 %v782
      %v793 = vunpack.c.l.bf16 %v783
      %v794 = vunpack.c.h.bf16 %v783
      %v795 = vunpack.c.l.bf16 %v784
      %v796 = vunpack.c.h.bf16 %v784
      %v797 = vunpack.c.l.bf16 %v785
      %v798 = vunpack.c.h.bf16 %v785
      %v799 = vunpack.c.l.bf16 %v786
      %v800 = vunpack.c.h.bf16 %v786
      %v801 = vunpack.c.l.bf16 %v787
      %v802 = vunpack.c.h.bf16 %v787
      %v803 = vunpack.c.l.bf16 %v788
      %v804 = vunpack.c.h.bf16 %v788
      %v805 = vmul.f32 %v789, 1.442695
      %v806 = vpow.pop %v805
      %v807 = vmul.f32 %v790, 1.442695
      %v808 = vpow.pop %v807
      %v809 = vmul.f32 %v791, 1.442695
      %v810 = vpow.pop %v809
      %v811 = vmul.f32 %v792, 1.442695
      %v812 = vpow.pop %v811
      %v813 = vmul.f32 %v793, 1.442695
      %v814 = vpow.pop %v813
      %v815 = vmul.f32 %v794, 1.442695
      %v816 = vpow.pop %v815
      %v817 = vmul.f32 %v795, 1.442695
      %v818 = vpow.pop %v817
      %v819 = vmul.f32 %v796, 1.442695
      %v820 = vpow.pop %v819
      %v821 = vmul.f32 %v797, 1.442695
      %v822 = vpow.pop %v821
      %v823 = vmul.f32 %v798, 1.442695
      %v824 = vpow.pop %v823
      %v825 = vmul.f32 %v799, 1.442695
      %v826 = vpow.pop %v825
      %v827 = vmul.f32 %v800, 1.442695
      %v828 = vpow.pop %v827
      %v829 = vmul.f32 %v801, 1.442695
      %v830 = vpow.pop %v829
      %v831 = vmul.f32 %v802, 1.442695
      %v832 = vpow.pop %v831
      %v833 = vmul.f32 %v803, 1.442695
      %v834 = vpow.pop %v833
      %v835 = vmul.f32 %v804, 1.442695
      %v836 = vpow.pop %v835
      %v837 = vpack.c.bf16 %v808, %v806
      %v838 = vpack.c.bf16 %v812, %v810
      %v839 = vpack.c.bf16 %v816, %v814
      %v840 = vpack.c.bf16 %v820, %v818
      %v841 = vpack.c.bf16 %v824, %v822
      %v842 = vpack.c.bf16 %v828, %v826
      %v843 = vpack.c.bf16 %v832, %v830
      %v844 = vpack.c.bf16 %v836, %v834
      %v845 = vunpack.c.l.bf16 %v837
      %v846 = vunpack.c.h.bf16 %v837
      %v847 = vunpack.c.l.bf16 %v838
      %v848 = vunpack.c.h.bf16 %v838
      %v849 = vunpack.c.l.bf16 %v839
      %v850 = vunpack.c.h.bf16 %v839
      %v851 = vunpack.c.l.bf16 %v840
      %v852 = vunpack.c.h.bf16 %v840
      %v853 = vunpack.c.l.bf16 %v841
      %v854 = vunpack.c.h.bf16 %v841
      %v855 = vunpack.c.l.bf16 %v842
      %v856 = vunpack.c.h.bf16 %v842
      %v857 = vunpack.c.l.bf16 %v843
      %v858 = vunpack.c.h.bf16 %v843
      %v859 = vunpack.c.l.bf16 %v844
      %v860 = vunpack.c.h.bf16 %v844
      %v861 = vld [vmem:[#allocation3] sm:$0xff]
      %v862 = vld [vmem:[#allocation3 + $0x8] sm:$0xff]
      %v863 = vld [vmem:[#allocation3 + $0x10] sm:$0xff]
      %v864 = vld [vmem:[#allocation3 + $0x18] sm:$0xff]
      %v865 = vld [vmem:[#allocation3 + $0x20] sm:$0xff]
      %v866 = vld [vmem:[#allocation3 + $0x28] sm:$0xff]
      %v867 = vld [vmem:[#allocation3 + $0x30] sm:$0xff]
      %v868 = vld [vmem:[#allocation3 + $0x38] sm:$0xff]
      %v869 = vld [vmem:[#allocation3 + $0x40] sm:$0xff]
      %v870 = vld [vmem:[#allocation3 + $0x48] sm:$0xff]
      %v871 = vld [vmem:[#allocation3 + $0x50] sm:$0xff]
      %v872 = vld [vmem:[#allocation3 + $0x58] sm:$0xff]
      %v873 = vld [vmem:[#allocation3 + $0x60] sm:$0xff]
      %v874 = vld [vmem:[#allocation3 + $0x68] sm:$0xff]
      %v875 = vld [vmem:[#allocation3 + $0x70] sm:$0xff]
      %v876 = vld [vmem:[#allocation3 + $0x78] sm:$0xff]
      %v877 = vmul.f32 %v654, %v861
      %v878 = vmul.f32 %v656, %v862
      %v879 = vmul.f32 %v658, %v863
      %v880 = vmul.f32 %v660, %v864
      %v881 = vmul.f32 %v662, %v865
      %v882 = vmul.f32 %v664, %v866
      %v883 = vmul.f32 %v666, %v867
      %v884 = vmul.f32 %v668, %v868
      %v885 = vmul.f32 %v670, %v869
      %v886 = vmul.f32 %v672, %v870
      %v887 = vmul.f32 %v674, %v871
      %v888 = vmul.f32 %v676, %v872
      %v889 = vmul.f32 %v678, %v873
      %v890 = vmul.f32 %v680, %v874
      %v891 = vmul.f32 %v682, %v875
      %v892 = vmul.f32 %v684, %v876
      %893 = vadd.xlane.f32.xlu0 %v845
      %v894 = vpop.xlane.xlu0 %893
      %895 = vadd.xlane.f32.xlu0 %v846
      %v896 = vpop.xlane.xlu0 %895
      %897 = vadd.xlane.f32.xlu0 %v847
      %v898 = vpop.xlane.xlu0 %897
      %899 = vadd.xlane.f32.xlu0 %v848
      %v900 = vpop.xlane.xlu0 %899
      %901 = vadd.xlane.f32.xlu0 %v849
      %v902 = vpop.xlane.xlu0 %901
      %903 = vadd.xlane.f32.xlu0 %v850
      %v904 = vpop.xlane.xlu0 %903
      %905 = vadd.xlane.f32.xlu0 %v851
      %v906 = vpop.xlane.xlu0 %905
      %907 = vadd.xlane.f32.xlu0 %v852
      %v908 = vpop.xlane.xlu0 %907
      %909 = vadd.xlane.f32.xlu0 %v853
      %v910 = vpop.xlane.xlu0 %909
      %911 = vadd.xlane.f32.xlu0 %v854
      %v912 = vpop.xlane.xlu0 %911
      %913 = vadd.xlane.f32.xlu0 %v855
      %v914 = vpop.xlane.xlu0 %913
      %915 = vadd.xlane.f32.xlu0 %v856
      %v916 = vpop.xlane.xlu0 %915
      %917 = vadd.xlane.f32.xlu0 %v857
      %v918 = vpop.xlane.xlu0 %917
      %919 = vadd.xlane.f32.xlu0 %v858
      %v920 = vpop.xlane.xlu0 %919
      %921 = vadd.xlane.f32.xlu0 %v859
      %v922 = vpop.xlane.xlu0 %921
      %923 = vadd.xlane.f32.xlu0 %v860
      %v924 = vpop.xlane.xlu0 %923
      %v925 = vadd.f32 %v877, %v894
      %v926 = vadd.f32 %v878, %v896
      %v927 = vadd.f32 %v879, %v898
      %v928 = vadd.f32 %v880, %v900
      %v929 = vadd.f32 %v881, %v902
      %v930 = vadd.f32 %v882, %v904
      %v931 = vadd.f32 %v883, %v906
      %v932 = vadd.f32 %v884, %v908
      %v933 = vadd.f32 %v885, %v910
      %v934 = vadd.f32 %v886, %v912
      %v935 = vadd.f32 %v887, %v914
      %v936 = vadd.f32 %v888, %v916
      %v937 = vadd.f32 %v889, %v918
      %v938 = vadd.f32 %v890, %v920
      %v939 = vadd.f32 %v891, %v922
      %v940 = vadd.f32 %v892, %v924
      %vm941 = vcmask 7168
      %942 = vst.msk [vmem:[#allocation3] sm:$0xff] %vm941, %v925
      %943 = vst.msk [vmem:[#allocation3 + $0x8] sm:$0xff] %vm941, %v926
      %944 = vst.msk [vmem:[#allocation3 + $0x10] sm:$0xff] %vm941, %v927
      %945 = vst.msk [vmem:[#allocation3 + $0x18] sm:$0xff] %vm941, %v928
      %946 = vst.msk [vmem:[#allocation3 + $0x20] sm:$0xff] %vm941, %v929
      %947 = vst.msk [vmem:[#allocation3 + $0x28] sm:$0xff] %vm941, %v930
      %948 = vst.msk [vmem:[#allocation3 + $0x30] sm:$0xff] %vm941, %v931
      %949 = vst.msk [vmem:[#allocation3 + $0x38] sm:$0xff] %vm941, %v932
      %950 = vst.msk [vmem:[#allocation3 + $0x40] sm:$0xff] %vm941, %v933
      %951 = vst.msk [vmem:[#allocation3 + $0x48] sm:$0xff] %vm941, %v934
      %952 = vst.msk [vmem:[#allocation3 + $0x50] sm:$0xff] %vm941, %v935
      %953 = vst.msk [vmem:[#allocation3 + $0x58] sm:$0xff] %vm941, %v936
      %954 = vst.msk [vmem:[#allocation3 + $0x60] sm:$0xff] %vm941, %v937
      %955 = vst.msk [vmem:[#allocation3 + $0x68] sm:$0xff] %vm941, %v938
      %956 = vst.msk [vmem:[#allocation3 + $0x70] sm:$0xff] %vm941, %v939
      %957 = vst.msk [vmem:[#allocation3 + $0x78] sm:$0xff] %vm941, %v940
      %v958 = vld [vmem:[#allocation4] sm:$0xff]
      %v959 = vld [vmem:[#allocation4 + $0x8] sm:$0xff]
      %v960 = vld [vmem:[#allocation4 + $0x10] sm:$0xff]
      %v961 = vld [vmem:[#allocation4 + $0x18] sm:$0xff]
      %v962 = vld [vmem:[#allocation4 + $0x20] sm:$0xff]
      %v963 = vld [vmem:[#allocation4 + $0x28] sm:$0xff]
      %v964 = vld [vmem:[#allocation4 + $0x30] sm:$0xff]
      %v965 = vld [vmem:[#allocation4 + $0x38] sm:$0xff]
      %v966 = vld [vmem:[#allocation4 + $0x40] sm:$0xff]
      %v967 = vld [vmem:[#allocation4 + $0x48] sm:$0xff]
      %v968 = vld [vmem:[#allocation4 + $0x50] sm:$0xff]
      %v969 = vld [vmem:[#allocation4 + $0x58] sm:$0xff]
      %v970 = vld [vmem:[#allocation4 + $0x60] sm:$0xff]
      %v971 = vld [vmem:[#allocation4 + $0x68] sm:$0xff]
      %v972 = vld [vmem:[#allocation4 + $0x70] sm:$0xff]
      %v973 = vld [vmem:[#allocation4 + $0x78] sm:$0xff]
      %975 = vset.pattern.permute.xlu0 0
      %976 = vperm.xlu0 %975, %v654
      %v977 = vpop.permute.xlu0 %976
      %980 = vset.pattern.permute.xlu0 0
      %981 = vperm.xlu0 %980, %v656
      %v982 = vpop.permute.xlu0 %981
      %985 = vset.pattern.permute.xlu0 0
      %986 = vperm.xlu0 %985, %v658
      %v987 = vpop.permute.xlu0 %986
      %990 = vset.pattern.permute.xlu0 0
      %991 = vperm.xlu0 %990, %v660
      %v992 = vpop.permute.xlu0 %991
      %995 = vset.pattern.permute.xlu0 0
      %996 = vperm.xlu0 %995, %v662
      %v997 = vpop.permute.xlu0 %996
      %1000 = vset.pattern.permute.xlu0 0
      %1001 = vperm.xlu0 %1000, %v664
      %v1002 = vpop.permute.xlu0 %1001
      %1005 = vset.pattern.permute.xlu0 0
      %1006 = vperm.xlu0 %1005, %v666
      %v1007 = vpop.permute.xlu0 %1006
      %1010 = vset.pattern.permute.xlu0 0
      %1011 = vperm.xlu0 %1010, %v668
      %v1012 = vpop.permute.xlu0 %1011
      %1015 = vset.pattern.permute.xlu0 0
      %1016 = vperm.xlu0 %1015, %v670
      %v1017 = vpop.permute.xlu0 %1016
      %1020 = vset.pattern.permute.xlu0 0
      %1021 = vperm.xlu0 %1020, %v672
      %v1022 = vpop.permute.xlu0 %1021
      %1025 = vset.pattern.permute.xlu0 0
      %1026 = vperm.xlu0 %1025, %v674
      %v1027 = vpop.permute.xlu0 %1026
      %1030 = vset.pattern.permute.xlu0 0
      %1031 = vperm.xlu0 %1030, %v676
      %v1032 = vpop.permute.xlu0 %1031
      %1035 = vset.pattern.permute.xlu0 0
      %1036 = vperm.xlu0 %1035, %v678
      %v1037 = vpop.permute.xlu0 %1036
      %1040 = vset.pattern.permute.xlu0 0
      %1041 = vperm.xlu0 %1040, %v680
      %v1042 = vpop.permute.xlu0 %1041
      %1045 = vset.pattern.permute.xlu0 0
      %1046 = vperm.xlu0 %1045, %v682
      %v1047 = vpop.permute.xlu0 %1046
      %1050 = vset.pattern.permute.xlu0 0
      %1051 = vperm.xlu0 %1050, %v684
      %v1052 = vpop.permute.xlu0 %1051
      %v1054 = vmul.f32 %v977, %v958
      %v1055 = vmul.f32 %v982, %v959
      %v1056 = vmul.f32 %v987, %v960
      %v1057 = vmul.f32 %v992, %v961
      %v1058 = vmul.f32 %v997, %v962
      %v1059 = vmul.f32 %v1002, %v963
      %v1060 = vmul.f32 %v1007, %v964
      %v1061 = vmul.f32 %v1012, %v965
      %v1062 = vmul.f32 %v1017, %v966
      %v1063 = vmul.f32 %v1022, %v967
      %v1064 = vmul.f32 %v1027, %v968
      %v1065 = vmul.f32 %v1032, %v969
      %v1066 = vmul.f32 %v1037, %v970
      %v1067 = vmul.f32 %v1042, %v971
      %v1068 = vmul.f32 %v1047, %v972
      %v1069 = vmul.f32 %v1052, %v973
      %v1070 = vld [vmem:[%s331] sm:$0xf]
      %v1071 = vld [vmem:[%s331 + $0x4] sm:$0xf]
      %v1072 = vld [vmem:[%s331 + $0x8] sm:$0xf]
      %v1073 = vld [vmem:[%s331 + $0xc] sm:$0xf]
      %v1074 = vld [vmem:[%s331 + $0x10] sm:$0xf]
      %v1075 = vld [vmem:[%s331 + $0x14] sm:$0xf]
      %v1076 = vld [vmem:[%s331 + $0x18] sm:$0xf]
      %v1077 = vld [vmem:[%s331 + $0x1c] sm:$0xf]
      %v1078 = vld [vmem:[%s331 + $0x20] sm:$0xf]
      %v1079 = vld [vmem:[%s331 + $0x24] sm:$0xf]
      %v1080 = vld [vmem:[%s331 + $0x28] sm:$0xf]
      %v1081 = vld [vmem:[%s331 + $0x2c] sm:$0xf]
      %v1082 = vld [vmem:[%s331 + $0x30] sm:$0xf]
      %v1083 = vld [vmem:[%s331 + $0x34] sm:$0xf]
      %v1084 = vld [vmem:[%s331 + $0x38] sm:$0xf]
      %v1085 = vld [vmem:[%s331 + $0x3c] sm:$0xf]
      %v1102 = vunpack.c.l.b16 %v1070
      %v1103 = vunpack.c.l.b16 %v1071
      %v1104 = vunpack.c.l.b16 %v1072
      %v1105 = vunpack.c.l.b16 %v1073
      %v1106 = vunpack.c.l.b16 %v1074
      %v1107 = vunpack.c.l.b16 %v1075
      %v1108 = vunpack.c.l.b16 %v1076
      %v1109 = vunpack.c.l.b16 %v1077
      %v1110 = vunpack.c.l.b16 %v1078
      %v1111 = vunpack.c.l.b16 %v1079
      %v1112 = vunpack.c.l.b16 %v1080
      %v1113 = vunpack.c.l.b16 %v1081
      %v1114 = vunpack.c.l.b16 %v1082
      %v1115 = vunpack.c.l.b16 %v1083
      %v1116 = vunpack.c.l.b16 %v1084
      %v1117 = vunpack.c.l.b16 %v1085
      %v1118 = vpack.c.b16 %v1103, %v1102
      %v1119 = vpack.c.b16 %v1105, %v1104
      %v1120 = vpack.c.b16 %v1107, %v1106
      %v1121 = vpack.c.b16 %v1109, %v1108
      %v1122 = vpack.c.b16 %v1111, %v1110
      %v1123 = vpack.c.b16 %v1113, %v1112
      %v1124 = vpack.c.b16 %v1115, %v1114
      %v1125 = vpack.c.b16 %v1117, %v1116
      %1134 = vmatpush.bf16.msra.mxu0 %v1125
      %1135 = vmatpush.bf16.msra.mxu0 %v1124
      %1136 = vmatpush.bf16.msra.mxu0 %v1123
      %1137 = vmatpush.bf16.msra.mxu0 %v1122
      %1138 = vmatpush.bf16.msra.mxu0 %v1121
      %1139 = vmatpush.bf16.msra.mxu0 %v1120
      %1140 = vmatpush.bf16.msra.mxu0 %v1119
      %1141 = vmatpush.bf16.msra.mxu0 %v1118
      %1142 = vmatmul.bf16.gmra.mxu0 %v837
      %v1143 = vpop.f32.mrf.mxu0
      %v1144 = vadd.f32 0.0, %v1143
      %v1145 = vpop.f32.mrf.mxu0
      %v1146 = vadd.f32 0.0, %v1145
      %1147 = vmatmul.bf16.gmra.mxu0 %v838
      %v1148 = vpop.f32.mrf.mxu0
      %v1149 = vadd.f32 0.0, %v1148
      %v1150 = vpop.f32.mrf.mxu0
      %v1151 = vadd.f32 0.0, %v1150
      %1152 = vmatmul.bf16.gmra.mxu0 %v839
      %v1153 = vpop.f32.mrf.mxu0
      %v1154 = vadd.f32 0.0, %v1153
      %v1155 = vpop.f32.mrf.mxu0
      %v1156 = vadd.f32 0.0, %v1155
      %1157 = vmatmul.bf16.gmra.mxu0 %v840
      %v1158 = vpop.f32.mrf.mxu0
      %v1159 = vadd.f32 0.0, %v1158
      %v1160 = vpop.f32.mrf.mxu0
      %v1161 = vadd.f32 0.0, %v1160
      %1162 = vmatmul.bf16.gmra.mxu0 %v841
      %v1163 = vpop.f32.mrf.mxu0
      %v1164 = vadd.f32 0.0, %v1163
      %v1165 = vpop.f32.mrf.mxu0
      %v1166 = vadd.f32 0.0, %v1165
      %1167 = vmatmul.bf16.gmra.mxu0 %v842
      %v1168 = vpop.f32.mrf.mxu0
      %v1169 = vadd.f32 0.0, %v1168
      %v1170 = vpop.f32.mrf.mxu0
      %v1171 = vadd.f32 0.0, %v1170
      %1172 = vmatmul.bf16.gmra.mxu0 %v843
      %v1173 = vpop.f32.mrf.mxu0
      %v1174 = vadd.f32 0.0, %v1173
      %v1175 = vpop.f32.mrf.mxu0
      %v1176 = vadd.f32 0.0, %v1175
      %1177 = vmatmul.bf16.gmra.mxu0 %v844
      %v1178 = vpop.f32.mrf.mxu0
      %v1179 = vadd.f32 0.0, %v1178
      %v1180 = vpop.f32.mrf.mxu0
      %v1181 = vadd.f32 0.0, %v1180
      %1182 = vdwg.mxu0
      %v1183 = vadd.f32 %v1054, %v1144
      %v1184 = vadd.f32 %v1055, %v1146
      %v1185 = vadd.f32 %v1056, %v1149
      %v1186 = vadd.f32 %v1057, %v1151
      %v1187 = vadd.f32 %v1058, %v1154
      %v1188 = vadd.f32 %v1059, %v1156
      %v1189 = vadd.f32 %v1060, %v1159
      %v1190 = vadd.f32 %v1061, %v1161
      %v1191 = vadd.f32 %v1062, %v1164
      %v1192 = vadd.f32 %v1063, %v1166
      %v1193 = vadd.f32 %v1064, %v1169
      %v1194 = vadd.f32 %v1065, %v1171
      %v1195 = vadd.f32 %v1066, %v1174
      %v1196 = vadd.f32 %v1067, %v1176
      %v1197 = vadd.f32 %v1068, %v1179
      %v1198 = vadd.f32 %v1069, %v1181
      %1199 = vst [vmem:[#allocation4] sm:$0xff] %v1183
      %1200 = vst [vmem:[#allocation4 + $0x8] sm:$0xff] %v1184
      %1201 = vst [vmem:[#allocation4 + $0x10] sm:$0xff] %v1185
      %1202 = vst [vmem:[#allocation4 + $0x18] sm:$0xff] %v1186
      %1203 = vst [vmem:[#allocation4 + $0x20] sm:$0xff] %v1187
      %1204 = vst [vmem:[#allocation4 + $0x28] sm:$0xff] %v1188
      %1205 = vst [vmem:[#allocation4 + $0x30] sm:$0xff] %v1189
      %1206 = vst [vmem:[#allocation4 + $0x38] sm:$0xff] %v1190
      %1207 = vst [vmem:[#allocation4 + $0x40] sm:$0xff] %v1191
      %1208 = vst [vmem:[#allocation4 + $0x48] sm:$0xff] %v1192
      %1209 = vst [vmem:[#allocation4 + $0x50] sm:$0xff] %v1193
      %1210 = vst [vmem:[#allocation4 + $0x58] sm:$0xff] %v1194
      %1211 = vst [vmem:[#allocation4 + $0x60] sm:$0xff] %v1195
      %1212 = vst [vmem:[#allocation4 + $0x68] sm:$0xff] %v1196
      %1213 = vst [vmem:[#allocation4 + $0x70] sm:$0xff] %v1197
      %1214 = vst [vmem:[#allocation4 + $0x78] sm:$0xff] %v1198
      %1215 = vst.msk [vmem:[#allocation2] sm:$0xff] %vm941, %v621
      %1216 = vst.msk [vmem:[#allocation2 + $0x8] sm:$0xff] %vm941, %v622
      %1217 = vst.msk [vmem:[#allocation2 + $0x10] sm:$0xff] %vm941, %v623
      %1218 = vst.msk [vmem:[#allocation2 + $0x18] sm:$0xff] %vm941, %v624
      %1219 = vst.msk [vmem:[#allocation2 + $0x20] sm:$0xff] %vm941, %v625
      %1220 = vst.msk [vmem:[#allocation2 + $0x28] sm:$0xff] %vm941, %v626
      %1221 = vst.msk [vmem:[#allocation2 + $0x30] sm:$0xff] %vm941, %v627
      %1222 = vst.msk [vmem:[#allocation2 + $0x38] sm:$0xff] %vm941, %v628
      %1223 = vst.msk [vmem:[#allocation2 + $0x40] sm:$0xff] %vm941, %v629
      %1224 = vst.msk [vmem:[#allocation2 + $0x48] sm:$0xff] %vm941, %v630
      %1225 = vst.msk [vmem:[#allocation2 + $0x50] sm:$0xff] %vm941, %v631
      %1226 = vst.msk [vmem:[#allocation2 + $0x58] sm:$0xff] %vm941, %v632
      %1227 = vst.msk [vmem:[#allocation2 + $0x60] sm:$0xff] %vm941, %v633
      %1228 = vst.msk [vmem:[#allocation2 + $0x68] sm:$0xff] %vm941, %v634
      %1229 = vst.msk [vmem:[#allocation2 + $0x70] sm:$0xff] %vm941, %v635
      %1230 = vst.msk [vmem:[#allocation2 + $0x78] sm:$0xff] %vm941, %v636
      %p1231 = scmp.eq.s32.totalorder %s23, 1
      // Predicated region
      $region45: #{cross_attention.3} parent=39 // pred_check
        %p1232 = pneg %p1231
      $region46: #{cross_attention.3} parent=39 // pred_check_branch
        %1234 = sbr.rel (%p1232) target = $region48
      $region47: #{cross_attention.3} parent=39 // pred_region
        %v1235 = vld [vmem:[#allocation4] sm:$0xff]
        %v1236 = vld [vmem:[#allocation4 + $0x8] sm:$0xff]
        %v1237 = vld [vmem:[#allocation4 + $0x10] sm:$0xff]
        %v1238 = vld [vmem:[#allocation4 + $0x18] sm:$0xff]
        %v1239 = vld [vmem:[#allocation4 + $0x20] sm:$0xff]
        %v1240 = vld [vmem:[#allocation4 + $0x28] sm:$0xff]
        %v1241 = vld [vmem:[#allocation4 + $0x30] sm:$0xff]
        %v1242 = vld [vmem:[#allocation4 + $0x38] sm:$0xff]
        %v1243 = vld [vmem:[#allocation4 + $0x40] sm:$0xff]
        %v1244 = vld [vmem:[#allocation4 + $0x48] sm:$0xff]
        %v1245 = vld [vmem:[#allocation4 + $0x50] sm:$0xff]
        %v1246 = vld [vmem:[#allocation4 + $0x58] sm:$0xff]
        %v1247 = vld [vmem:[#allocation4 + $0x60] sm:$0xff]
        %v1248 = vld [vmem:[#allocation4 + $0x68] sm:$0xff]
        %v1249 = vld [vmem:[#allocation4 + $0x70] sm:$0xff]
        %v1250 = vld [vmem:[#allocation4 + $0x78] sm:$0xff]
        %v1251 = vld [vmem:[#allocation3] sm:$0xff]
        %v1252 = vld [vmem:[#allocation3 + $0x8] sm:$0xff]
        %v1253 = vld [vmem:[#allocation3 + $0x10] sm:$0xff]
        %v1254 = vld [vmem:[#allocation3 + $0x18] sm:$0xff]
        %v1255 = vld [vmem:[#allocation3 + $0x20] sm:$0xff]
        %v1256 = vld [vmem:[#allocation3 + $0x28] sm:$0xff]
        %v1257 = vld [vmem:[#allocation3 + $0x30] sm:$0xff]
        %v1258 = vld [vmem:[#allocation3 + $0x38] sm:$0xff]
        %v1259 = vld [vmem:[#allocation3 + $0x40] sm:$0xff]
        %v1260 = vld [vmem:[#allocation3 + $0x48] sm:$0xff]
        %v1261 = vld [vmem:[#allocation3 + $0x50] sm:$0xff]
        %v1262 = vld [vmem:[#allocation3 + $0x58] sm:$0xff]
        %v1263 = vld [vmem:[#allocation3 + $0x60] sm:$0xff]
        %v1264 = vld [vmem:[#allocation3 + $0x68] sm:$0xff]
        %v1265 = vld [vmem:[#allocation3 + $0x70] sm:$0xff]
        %v1266 = vld [vmem:[#allocation3 + $0x78] sm:$0xff]
        %v1267 = vrcp.pop %v1251
        %v1268 = vrcp.pop %v1252
        %v1269 = vrcp.pop %v1253
        %v1270 = vrcp.pop %v1254
        %v1271 = vrcp.pop %v1255
        %v1272 = vrcp.pop %v1256
        %v1273 = vrcp.pop %v1257
        %v1274 = vrcp.pop %v1258
        %v1275 = vrcp.pop %v1259
        %v1276 = vrcp.pop %v1260
        %v1277 = vrcp.pop %v1261
        %v1278 = vrcp.pop %v1262
        %v1279 = vrcp.pop %v1263
        %v1280 = vrcp.pop %v1264
        %v1281 = vrcp.pop %v1265
        %v1282 = vrcp.pop %v1266
        %1284 = vset.pattern.permute.xlu0 0
        %1285 = vperm.xlu0 %1284, %v1267
        %v1286 = vpop.permute.xlu0 %1285
        %1289 = vset.pattern.permute.xlu0 0
        %1290 = vperm.xlu0 %1289, %v1268
        %v1291 = vpop.permute.xlu0 %1290
        %1294 = vset.pattern.permute.xlu0 0
        %1295 = vperm.xlu0 %1294, %v1269
        %v1296 = vpop.permute.xlu0 %1295
        %1299 = vset.pattern.permute.xlu0 0
        %1300 = vperm.xlu0 %1299, %v1270
        %v1301 = vpop.permute.xlu0 %1300
        %1304 = vset.pattern.permute.xlu0 0
        %1305 = vperm.xlu0 %1304, %v1271
        %v1306 = vpop.permute.xlu0 %1305
        %1309 = vset.pattern.permute.xlu0 0
        %1310 = vperm.xlu0 %1309, %v1272
        %v1311 = vpop.permute.xlu0 %1310
        %1314 = vset.pattern.permute.xlu0 0
        %1315 = vperm.xlu0 %1314, %v1273
        %v1316 = vpop.permute.xlu0 %1315
        %1319 = vset.pattern.permute.xlu0 0
        %1320 = vperm.xlu0 %1319, %v1274
        %v1321 = vpop.permute.xlu0 %1320
        %1324 = vset.pattern.permute.xlu0 0
        %1325 = vperm.xlu0 %1324, %v1275
        %v1326 = vpop.permute.xlu0 %1325
        %1329 = vset.pattern.permute.xlu0 0
        %1330 = vperm.xlu0 %1329, %v1276
        %v1331 = vpop.permute.xlu0 %1330
        %1334 = vset.pattern.permute.xlu0 0
        %1335 = vperm.xlu0 %1334, %v1277
        %v1336 = vpop.permute.xlu0 %1335
        %1339 = vset.pattern.permute.xlu0 0
        %1340 = vperm.xlu0 %1339, %v1278
        %v1341 = vpop.permute.xlu0 %1340
        %1344 = vset.pattern.permute.xlu0 0
        %1345 = vperm.xlu0 %1344, %v1279
        %v1346 = vpop.permute.xlu0 %1345
        %1349 = vset.pattern.permute.xlu0 0
        %1350 = vperm.xlu0 %1349, %v1280
        %v1351 = vpop.permute.xlu0 %1350
        %1354 = vset.pattern.permute.xlu0 0
        %1355 = vperm.xlu0 %1354, %v1281
        %v1356 = vpop.permute.xlu0 %1355
        %1359 = vset.pattern.permute.xlu0 0
        %1360 = vperm.xlu0 %1359, %v1282
        %v1361 = vpop.permute.xlu0 %1360
        %v1363 = vmul.f32 %v1235, %v1286
        %v1364 = vmul.f32 %v1236, %v1291
        %v1365 = vmul.f32 %v1237, %v1296
        %v1366 = vmul.f32 %v1238, %v1301
        %v1367 = vmul.f32 %v1239, %v1306
        %v1368 = vmul.f32 %v1240, %v1311
        %v1369 = vmul.f32 %v1241, %v1316
        %v1370 = vmul.f32 %v1242, %v1321
        %v1371 = vmul.f32 %v1243, %v1326
        %v1372 = vmul.f32 %v1244, %v1331
        %v1373 = vmul.f32 %v1245, %v1336
        %v1374 = vmul.f32 %v1246, %v1341
        %v1375 = vmul.f32 %v1247, %v1346
        %v1376 = vmul.f32 %v1248, %v1351
        %v1377 = vmul.f32 %v1249, %v1356
        %v1378 = vmul.f32 %v1250, %v1361
        %v1379 = vpack.c.bf16 %v1364, %v1363
        %v1380 = vpack.c.bf16 %v1366, %v1365
        %v1381 = vpack.c.bf16 %v1368, %v1367
        %v1382 = vpack.c.bf16 %v1370, %v1369
        %v1383 = vpack.c.bf16 %v1372, %v1371
        %v1384 = vpack.c.bf16 %v1374, %v1373
        %v1385 = vpack.c.bf16 %v1376, %v1375
        %v1386 = vpack.c.bf16 %v1378, %v1377
        %v1387 = vld [vmem:[%s3] sm:$0xf]
        %v1388 = vld [vmem:[%s3 + $0x4] sm:$0xf]
        %v1389 = vld [vmem:[%s3 + $0x8] sm:$0xf]
        %v1390 = vld [vmem:[%s3 + $0xc] sm:$0xf]
        %v1391 = vld [vmem:[%s3 + $0x10] sm:$0xf]
        %v1392 = vld [vmem:[%s3 + $0x14] sm:$0xf]
        %v1393 = vld [vmem:[%s3 + $0x18] sm:$0xf]
        %v1394 = vld [vmem:[%s3 + $0x1c] sm:$0xf]
        %v1395 = vld [vmem:[%s3 + $0x20] sm:$0xf]
        %v1396 = vld [vmem:[%s3 + $0x24] sm:$0xf]
        %v1397 = vld [vmem:[%s3 + $0x28] sm:$0xf]
        %v1398 = vld [vmem:[%s3 + $0x2c] sm:$0xf]
        %v1399 = vld [vmem:[%s3 + $0x30] sm:$0xf]
        %v1400 = vld [vmem:[%s3 + $0x34] sm:$0xf]
        %v1401 = vld [vmem:[%s3 + $0x38] sm:$0xf]
        %v1402 = vld [vmem:[%s3 + $0x3c] sm:$0xf]
        %v1403 = vld [vmem:[%s4] sm:$0x1]
        %v1405 = vperm.slane %v1403, 0
        %v1423 = vunpack.c.l.b16 %v1387
        %v1424 = vunpack.c.l.b16 %v1388
        %v1425 = vunpack.c.l.b16 %v1389
        %v1426 = vunpack.c.l.b16 %v1390
        %v1427 = vunpack.c.l.b16 %v1391
        %v1428 = vunpack.c.l.b16 %v1392
        %v1429 = vunpack.c.l.b16 %v1393
        %v1430 = vunpack.c.l.b16 %v1394
        %v1431 = vunpack.c.l.b16 %v1395
        %v1432 = vunpack.c.l.b16 %v1396
        %v1433 = vunpack.c.l.b16 %v1397
        %v1434 = vunpack.c.l.b16 %v1398
        %v1435 = vunpack.c.l.b16 %v1399
        %v1436 = vunpack.c.l.b16 %v1400
        %v1437 = vunpack.c.l.b16 %v1401
        %v1438 = vunpack.c.l.b16 %v1402
        %v1439 = vpack.c.b16 %v1424, %v1423
        %v1440 = vpack.c.b16 %v1426, %v1425
        %v1441 = vpack.c.b16 %v1428, %v1427
        %v1442 = vpack.c.b16 %v1430, %v1429
        %v1443 = vpack.c.b16 %v1432, %v1431
        %v1444 = vpack.c.b16 %v1434, %v1433
        %v1445 = vpack.c.b16 %v1436, %v1435
        %v1446 = vpack.c.b16 %v1438, %v1437
        %1455 = vmatpush.bf16.msra.mxu0 %v1446
        %1456 = vmatpush.bf16.msra.mxu0 %v1445
        %1457 = vmatpush.bf16.msra.mxu0 %v1444
        %1458 = vmatpush.bf16.msra.mxu0 %v1443
        %1459 = vmatpush.bf16.msra.mxu0 %v1442
        %1460 = vmatpush.bf16.msra.mxu0 %v1441
        %1461 = vmatpush.bf16.msra.mxu0 %v1440
        %1462 = vmatpush.bf16.msra.mxu0 %v1439
        %1463 = vmatmul.bf16.gmra.mxu0 %v1379
        %v1464 = vpop.f32.mrf.mxu0
        %v1465 = vadd.f32 %v1405, %v1464
        %v1466 = vpop.f32.mrf.mxu0
        %v1467 = vadd.f32 %v1405, %v1466
        %1468 = vmatmul.bf16.gmra.mxu0 %v1380
        %v1469 = vpop.f32.mrf.mxu0
        %v1470 = vadd.f32 %v1405, %v1469
        %v1471 = vpop.f32.mrf.mxu0
        %v1472 = vadd.f32 %v1405, %v1471
        %1473 = vmatmul.bf16.gmra.mxu0 %v1381
        %v1474 = vpop.f32.mrf.mxu0
        %v1475 = vadd.f32 %v1405, %v1474
        %v1476 = vpop.f32.mrf.mxu0
        %v1477 = vadd.f32 %v1405, %v1476
        %1478 = vmatmul.bf16.gmra.mxu0 %v1382
        %v1479 = vpop.f32.mrf.mxu0
        %v1480 = vadd.f32 %v1405, %v1479
        %v1481 = vpop.f32.mrf.mxu0
        %v1482 = vadd.f32 %v1405, %v1481
        %1483 = vmatmul.bf16.gmra.mxu0 %v1383
        %v1484 = vpop.f32.mrf.mxu0
        %v1485 = vadd.f32 %v1405, %v1484
        %v1486 = vpop.f32.mrf.mxu0
        %v1487 = vadd.f32 %v1405, %v1486
        %1488 = vmatmul.bf16.gmra.mxu0 %v1384
        %v1489 = vpop.f32.mrf.mxu0
        %v1490 = vadd.f32 %v1405, %v1489
        %v1491 = vpop.f32.mrf.mxu0
        %v1492 = vadd.f32 %v1405, %v1491
        %1493 = vmatmul.bf16.gmra.mxu0 %v1385
        %v1494 = vpop.f32.mrf.mxu0
        %v1495 = vadd.f32 %v1405, %v1494
        %v1496 = vpop.f32.mrf.mxu0
        %v1497 = vadd.f32 %v1405, %v1496
        %1498 = vmatmul.bf16.gmra.mxu0 %v1386
        %v1499 = vpop.f32.mrf.mxu0
        %v1500 = vadd.f32 %v1405, %v1499
        %v1501 = vpop.f32.mrf.mxu0
        %v1502 = vadd.f32 %v1405, %v1501
        %1503 = vdwg.mxu0
        %1504 = vst [vmem:[%s341] sm:$0xff] %v1465
        %1505 = vst [vmem:[%s341 + $0x8] sm:$0xff] %v1467
        %1506 = vst [vmem:[%s341 + $0x10] sm:$0xff] %v1470
        %1507 = vst [vmem:[%s341 + $0x18] sm:$0xff] %v1472
        %1508 = vst [vmem:[%s341 + $0x20] sm:$0xff] %v1475
        %1509 = vst [vmem:[%s341 + $0x28] sm:$0xff] %v1477
        %1510 = vst [vmem:[%s341 + $0x30] sm:$0xff] %v1480
        %1511 = vst [vmem:[%s341 + $0x38] sm:$0xff] %v1482
        %1512 = vst [vmem:[%s341 + $0x40] sm:$0xff] %v1485
        %1513 = vst [vmem:[%s341 + $0x48] sm:$0xff] %v1487
        %1514 = vst [vmem:[%s341 + $0x50] sm:$0xff] %v1490
        %1515 = vst [vmem:[%s341 + $0x58] sm:$0xff] %v1492
        %1516 = vst [vmem:[%s341 + $0x60] sm:$0xff] %v1495
        %1517 = vst [vmem:[%s341 + $0x68] sm:$0xff] %v1497
        %1518 = vst [vmem:[%s341 + $0x70] sm:$0xff] %v1500
        %1519 = vst [vmem:[%s341 + $0x78] sm:$0xff] %v1502
      $region48: #{cross_attention.3} parent=39 // pred_fallthru
        _
      %s1520 = smul.u32 16, %s22
      %p1521 = scmp.lt.s32.totalorder %s21, 1
      %s1522 = scalar_select %p1521, %s21, 1
      %p1523 = scmp.lt.s32.totalorder %s1520, 31
      %s1524 = scalar_select %p1523, %s1520, 31
      %s1525 = smul.addr %s1522, 32
      %s1526 = sadd.s32 %s1524, %s1525
      %s1527 = smul.addr %s1526, 8
      %s1528 = scalar_lea.vmem %s5, %s1527
      // Predicated region
      $region49: #{cross_attention.3} parent=39 // pred_check
        %p1529 = pneg %p181
      $region50: #{cross_attention.3} parent=39 // pred_check_branch
        %1531 = sbr.rel (%p1529) target = $region52
      $region51: #{cross_attention.3} parent=39 // pred_region
        %s1532 = smul.u32 16, %s22
      $region52: #{cross_attention.3} parent=39 // pred_fallthru
        _
    $region40: #{cross_attention.3} parent=5 // pred_fallthru
      _
    %p1533 = scmp.le.s32.totalorder 2, %s11
    // Predicated region
    $region53: #{cross_attention.3} parent=5 // pred_check
      %p1534 = pneg %p1533
    $region54: #{cross_attention.3} parent=5 // pred_check_branch
      %1536 = sbr.rel (%p1534) target = $region56
    $region55: #{cross_attention.3} parent=5 // pred_region
      %s1537 = ssub.s32 %s11, 2
      // Predicated region
      $region57: #{cross_attention.3} parent=55 // pred_check
        %p1538 = pneg %p187
      $region58: #{cross_attention.3} parent=55 // pred_check_branch
        %1540 = sbr.rel (%p1538) target = $region60
      $region59: #{cross_attention.3} parent=55 // pred_region
        %s1541 = smul.u32 16, %s25
        %p1542 = scmp.lt.s32.totalorder %s24, 1
        %s1543 = scalar_select %p1542, %s24, 1
        %p1544 = scmp.lt.s32.totalorder %s1541, 31
        %s1545 = scalar_select %p1544, %s1541, 31
        %s1546 = smul.addr %s1543, 32
        %s1547 = sadd.s32 %s1545, %s1546
        %s1548 = smul.addr %s1547, 8
        %s1549 = scalar_lea.vmem %s5, %s1548
      $region60: #{cross_attention.3} parent=55 // pred_fallthru
        _
    $region56: #{cross_attention.3} parent=5 // pred_fallthru
      _
  $region6: #{cross_attention.3} parent=0 // loop_footer
    %s15 = sadd.s32 1, %s11
  $region7: #{cross_attention.3} parent=0 // loop_footer_branch
    %10 = sbr.rel target = $region3
  $region8: #{cross_attention.3} parent=0 // loop_exit
    _

// kernel: cross_attention.2
$region0: #{cross_attention.2}
  #allocation0 [shape = 'u32[]', space=smem, size = 0x4, offset = 0x4, fixed_abs, tag = 'smem constant byte address 0x4 - core index']
  #allocation1 [shape = 'u32[72,128]{1,0:T(1,128)}', space=vmem, size = 0x9000, scoped, tag = 'internal scratch']
  %s0 = inlined_call_operand.vmem [shape: bf16[2,256,128], index: 0, kind: input, shape index: {}]
  %s1 = inlined_call_operand.vmem [shape: bf16[2,256,128], index: 1, kind: input, shape index: {}]
  %s2 = inlined_call_operand.vmem [shape: bf16[128,128], index: 2, kind: input, shape index: {}]
  %s3 = inlined_call_operand.vmem [shape: f32[1,128], index: 3, kind: input, shape index: {}]
  %s4 = inlined_call_operand.vmem [shape: bf16[128,256], index: 4, kind: input, shape index: {}]
  %s5 = inlined_call_operand.vmem [shape: f32[1,256], index: 5, kind: input, shape index: {}]
  %s6 = inlined_call_operand.vmem [shape: bf16[2,256,128], index: 6, kind: output, shape index: {0}]
  %s7 = inlined_call_operand.vmem [shape: bf16[2,256,128], index: 7, kind: output, shape index: {1}]
  %s8 = inlined_call_operand.vmem [shape: bf16[2,256,128], index: 8, kind: output, shape index: {2}]
  %9 = xla_tuple %s6, %s7, %s8
  %s10 = sld [smem:[#allocation0]]
  $region73: #{cross_attention.2} parent=0
    _
  %s12 = ssub.s32 1, %s10
  %s13 = scalar_select 0, %s12, %s10
  loop: start=0, step=1, limit=4
  $region2: #{cross_attention.2} parent=0 // loop_pre_header
    _
  $region3: #{cross_attention.2} parent=0 // loop_header
    %s15 = sphi 0, %s19
    %p16 = scmp.ge.s32.totalorder %s15, 4
    %s22 = sphi 0, %s34
    %s23 = sphi 0, %s30
    %s24 = sphi 0, %s22
    %s25 = sphi 0, %s23
    %s26 = sphi 0, %s24
    %s27 = sphi 0, %s25
    %s39 = sphi 0, %s41
    %s42 = sphi 0, %s39
    %s43 = sphi 0, %s42
    %s59 = sphi 0, %s43
    %s67 = sphi 0, %s69
    %s70 = sphi 0, %s67
    %s71 = sphi 0, %s70
    %s87 = sphi 0, %s71
    %s91 = sphi 0, %s91
    %s93 = sphi 0, %s91
    %s94 = sphi 0, %s93
    %s108 = sphi 0, %s94
    %s112 = sphi 0, %s112
    %s114 = sphi 0, %s112
    %s115 = sphi 0, %s114
    %s129 = sphi 0, %s115
    %s133 = sphi 0, %s133
    %s135 = sphi 0, %s133
    %s136 = sphi 0, %s135
    %s150 = sphi 0, %s136
    %s154 = sphi 0, %s154
    %s156 = sphi 0, %s154
    %s157 = sphi 0, %s156
    %s171 = sphi 0, %s157
    %s179 = sphi 0, %s181
    %s182 = sphi 0, %s179
    %s183 = sphi 0, %s182
    %s199 = sphi 0, %s183
    %s207 = sphi 0, %s209
    %s210 = sphi 0, %s207
    %s211 = sphi 0, %s210
    %s227 = sphi 0, %s211
    %s235 = sphi 0, %s237
    %s238 = sphi 0, %s235
    %s239 = sphi 0, %s238
    %s255 = sphi 0, %s239
  $region4: #{cross_attention.2} parent=0 // loop_header_branch
    %18 = sbr.rel (%p16) target = $region8
  $region5: #{cross_attention.2} parent=0 // loop_body
    %s20 = ssub.s32 %s15, 1
    %s21 = ssub.s32 %s15, 2
    %s28 = sadd.s32 1, %s23
    %p29 = scmp.ge.s32.totalorder %s28, 1
    %s30 = scalar_select %p29, 0, %s28
    %s31 = sadd.s32 1, %s22
    %s32 = scalar_select %p29, %s31, %s22
    %p33 = scmp.ge.s32.totalorder %s32, 2
    %s34 = scalar_select %p33, 0, %s32
    %s35 = ssub.s32 %s22, %s34
    %s36 = ssub.s32 %s23, %s30
    %s37 = sor.u32 %s35, %s36
    %p38 = scmp.eq.s32.totalorder %s37, 0
    %s40 = sadd.s32 %s39, 1
    %s41 = scalar_select %p38, %s39, %s40
    %p44 = pneg %p38
    %p45 = scmp.eq.s32.totalorder %s15, 1
    %p46 = por %p44, %p45
    %p47 = scmp.ne.s32.totalorder %s39, %s42
    %p48 = scmp.eq.s32.totalorder %s15, 0
    %p49 = por %p47, %p48
    %p50 = scmp.ne.s32.totalorder %s39, %s42
    %p51 = scmp.eq.s32.totalorder %s20, 1
    %p52 = por %p50, %p51
    %p53 = scmp.ne.s32.totalorder %s42, %s43
    %p54 = scmp.eq.s32.totalorder %s20, 0
    %p55 = por %p53, %p54
    %p56 = scmp.ne.s32.totalorder %s42, %s43
    %p57 = scmp.eq.s32.totalorder %s21, 1
    %p58 = por %p56, %p57
    %p60 = scmp.ne.s32.totalorder %s43, %s59
    %p61 = scmp.eq.s32.totalorder %s21, 0
    %p62 = por %p60, %p61
    %s63 = ssub.s32 %s22, %s34
    %s64 = ssub.s32 %s23, %s30
    %s65 = sor.u32 %s63, %s64
    %p66 = scmp.eq.s32.totalorder %s65, 0
    %s68 = sadd.s32 %s67, 1
    %s69 = scalar_select %p66, %s67, %s68
    %p72 = pneg %p66
    %p73 = scmp.eq.s32.totalorder %s15, 1
    %p74 = por %p72, %p73
    %p75 = scmp.ne.s32.totalorder %s67, %s70
    %p76 = scmp.eq.s32.totalorder %s15, 0
    %p77 = por %p75, %p76
    %p78 = scmp.ne.s32.totalorder %s67, %s70
    %p79 = scmp.eq.s32.totalorder %s20, 1
    %p80 = por %p78, %p79
    %p81 = scmp.ne.s32.totalorder %s70, %s71
    %p82 = scmp.eq.s32.totalorder %s20, 0
    %p83 = por %p81, %p82
    %p84 = scmp.ne.s32.totalorder %s70, %s71
    %p85 = scmp.eq.s32.totalorder %s21, 1
    %p86 = por %p84, %p85
    %p88 = scmp.ne.s32.totalorder %s71, %s87
    %p89 = scmp.eq.s32.totalorder %s21, 0
    %p90 = por %p88, %p89
    %s92 = sadd.s32 %s91, 1
    %p95 = scmp.eq.s32.totalorder %s15, 1
    %p96 = scmp.ne.s32.totalorder %s91, %s93
    %p97 = scmp.eq.s32.totalorder %s15, 0
    %p98 = por %p96, %p97
    %p99 = scmp.ne.s32.totalorder %s91, %s93
    %p100 = scmp.eq.s32.totalorder %s20, 1
    %p101 = por %p99, %p100
    %p102 = scmp.ne.s32.totalorder %s93, %s94
    %p103 = scmp.eq.s32.totalorder %s20, 0
    %p104 = por %p102, %p103
    %p105 = scmp.ne.s32.totalorder %s93, %s94
    %p106 = scmp.eq.s32.totalorder %s21, 1
    %p107 = por %p105, %p106
    %p109 = scmp.ne.s32.totalorder %s94, %s108
    %p110 = scmp.eq.s32.totalorder %s21, 0
    %p111 = por %p109, %p110
    %s113 = sadd.s32 %s112, 1
    %p116 = scmp.eq.s32.totalorder %s15, 1
    %p117 = scmp.ne.s32.totalorder %s112, %s114
    %p118 = scmp.eq.s32.totalorder %s15, 0
    %p119 = por %p117, %p118
    %p120 = scmp.ne.s32.totalorder %s112, %s114
    %p121 = scmp.eq.s32.totalorder %s20, 1
    %p122 = por %p120, %p121
    %p123 = scmp.ne.s32.totalorder %s114, %s115
    %p124 = scmp.eq.s32.totalorder %s20, 0
    %p125 = por %p123, %p124
    %p126 = scmp.ne.s32.totalorder %s114, %s115
    %p127 = scmp.eq.s32.totalorder %s21, 1
    %p128 = por %p126, %p127
    %p130 = scmp.ne.s32.totalorder %s115, %s129
    %p131 = scmp.eq.s32.totalorder %s21, 0
    %p132 = por %p130, %p131
    %s134 = sadd.s32 %s133, 1
    %p137 = scmp.eq.s32.totalorder %s15, 1
    %p138 = scmp.ne.s32.totalorder %s133, %s135
    %p139 = scmp.eq.s32.totalorder %s15, 0
    %p140 = por %p138, %p139
    %p141 = scmp.ne.s32.totalorder %s133, %s135
    %p142 = scmp.eq.s32.totalorder %s20, 1
    %p143 = por %p141, %p142
    %p144 = scmp.ne.s32.totalorder %s135, %s136
    %p145 = scmp.eq.s32.totalorder %s20, 0
    %p146 = por %p144, %p145
    %p147 = scmp.ne.s32.totalorder %s135, %s136
    %p148 = scmp.eq.s32.totalorder %s21, 1
    %p149 = por %p147, %p148
    %p151 = scmp.ne.s32.totalorder %s136, %s150
    %p152 = scmp.eq.s32.totalorder %s21, 0
    %p153 = por %p151, %p152
    %s155 = sadd.s32 %s154, 1
    %p158 = scmp.eq.s32.totalorder %s15, 1
    %p159 = scmp.ne.s32.totalorder %s154, %s156
    %p160 = scmp.eq.s32.totalorder %s15, 0
    %p161 = por %p159, %p160
    %p162 = scmp.ne.s32.totalorder %s154, %s156
    %p163 = scmp.eq.s32.totalorder %s20, 1
    %p164 = por %p162, %p163
    %p165 = scmp.ne.s32.totalorder %s156, %s157
    %p166 = scmp.eq.s32.totalorder %s20, 0
    %p167 = por %p165, %p166
    %p168 = scmp.ne.s32.totalorder %s156, %s157
    %p169 = scmp.eq.s32.totalorder %s21, 1
    %p170 = por %p168, %p169
    %p172 = scmp.ne.s32.totalorder %s157, %s171
    %p173 = scmp.eq.s32.totalorder %s21, 0
    %p174 = por %p172, %p173
    %s175 = ssub.s32 %s22, %s34
    %s176 = ssub.s32 %s23, %s30
    %s177 = sor.u32 %s175, %s176
    %p178 = scmp.eq.s32.totalorder %s177, 0
    %s180 = sadd.s32 %s179, 1
    %s181 = scalar_select %p178, %s179, %s180
    %p184 = pneg %p178
    %p185 = scmp.eq.s32.totalorder %s15, 1
    %p186 = por %p184, %p185
    %p187 = scmp.ne.s32.totalorder %s179, %s182
    %p188 = scmp.eq.s32.totalorder %s15, 0
    %p189 = por %p187, %p188
    %p190 = scmp.ne.s32.totalorder %s179, %s182
    %p191 = scmp.eq.s32.totalorder %s20, 1
    %p192 = por %p190, %p191
    %p193 = scmp.ne.s32.totalorder %s182, %s183
    %p194 = scmp.eq.s32.totalorder %s20, 0
    %p195 = por %p193, %p194
    %p196 = scmp.ne.s32.totalorder %s182, %s183
    %p197 = scmp.eq.s32.totalorder %s21, 1
    %p198 = por %p196, %p197
    %p200 = scmp.ne.s32.totalorder %s183, %s199
    %p201 = scmp.eq.s32.totalorder %s21, 0
    %p202 = por %p200, %p201
    %s203 = ssub.s32 %s22, %s34
    %s204 = ssub.s32 %s23, %s30
    %s205 = sor.u32 %s203, %s204
    %p206 = scmp.eq.s32.totalorder %s205, 0
    %s208 = sadd.s32 %s207, 1
    %s209 = scalar_select %p206, %s207, %s208
    %p212 = pneg %p206
    %p213 = scmp.eq.s32.totalorder %s15, 1
    %p214 = por %p212, %p213
    %p215 = scmp.ne.s32.totalorder %s207, %s210
    %p216 = scmp.eq.s32.totalorder %s15, 0
    %p217 = por %p215, %p216
    %p218 = scmp.ne.s32.totalorder %s207, %s210
    %p219 = scmp.eq.s32.totalorder %s20, 1
    %p220 = por %p218, %p219
    %p221 = scmp.ne.s32.totalorder %s210, %s211
    %p222 = scmp.eq.s32.totalorder %s20, 0
    %p223 = por %p221, %p222
    %p224 = scmp.ne.s32.totalorder %s210, %s211
    %p225 = scmp.eq.s32.totalorder %s21, 1
    %p226 = por %p224, %p225
    %p228 = scmp.ne.s32.totalorder %s211, %s227
    %p229 = scmp.eq.s32.totalorder %s21, 0
    %p230 = por %p228, %p229
    %s231 = ssub.s32 %s22, %s34
    %s232 = ssub.s32 %s23, %s30
    %s233 = sor.u32 %s231, %s232
    %p234 = scmp.eq.s32.totalorder %s233, 0
    %s236 = sadd.s32 %s235, 1
    %s237 = scalar_select %p234, %s235, %s236
    %p240 = pneg %p234
    %p241 = scmp.eq.s32.totalorder %s15, 1
    %p242 = por %p240, %p241
    %p243 = scmp.ne.s32.totalorder %s235, %s238
    %p244 = scmp.eq.s32.totalorder %s15, 0
    %p245 = por %p243, %p244
    %p246 = scmp.ne.s32.totalorder %s235, %s238
    %p247 = scmp.eq.s32.totalorder %s20, 1
    %p248 = por %p246, %p247
    %p249 = scmp.ne.s32.totalorder %s238, %s239
    %p250 = scmp.eq.s32.totalorder %s20, 0
    %p251 = por %p249, %p250
    %p252 = scmp.ne.s32.totalorder %s238, %s239
    %p253 = scmp.eq.s32.totalorder %s21, 1
    %p254 = por %p252, %p253
    %p256 = scmp.ne.s32.totalorder %s239, %s255
    %p257 = scmp.eq.s32.totalorder %s21, 0
    %p258 = por %p256, %p257
    %p259 = scmp.le.s32.totalorder 1, %s15
    %p260 = scmp.lt.s32.totalorder %s15, 3
    %p261 = pnand %p259, %p260
    %p262 = pneg %p261
    // Predicated region
    $region9: #{cross_attention.2} parent=5 // pred_check
      _
    $region10: #{cross_attention.2} parent=5 // pred_check_branch
      %264 = sbr.rel (%p261) target = $region12
    $region11: #{cross_attention.2} parent=5 // pred_region
      %s265 = ssub.s32 %s15, 1
      // Predicated region
      $region13: #{cross_attention.2} parent=11 // pred_check
        %p266 = pneg %p104
      $region14: #{cross_attention.2} parent=11 // pred_check_branch
        %268 = sbr.rel (%p266) target = $region16
      $region15: #{cross_attention.2} parent=11 // pred_region
        _
      $region16: #{cross_attention.2} parent=11 // pred_fallthru
        _
      // Predicated region
      $region17: #{cross_attention.2} parent=11 // pred_check
        %p269 = pneg %p125
      $region18: #{cross_attention.2} parent=11 // pred_check_branch
        %271 = sbr.rel (%p269) target = $region20
      $region19: #{cross_attention.2} parent=11 // pred_region
        _
      $region20: #{cross_attention.2} parent=11 // pred_fallthru
        _
      // Predicated region
      $region21: #{cross_attention.2} parent=11 // pred_check
        %p272 = pneg %p146
      $region22: #{cross_attention.2} parent=11 // pred_check_branch
        %274 = sbr.rel (%p272) target = $region24
      $region23: #{cross_attention.2} parent=11 // pred_region
        _
      $region24: #{cross_attention.2} parent=11 // pred_fallthru
        _
      // Predicated region
      $region25: #{cross_attention.2} parent=11 // pred_check
        %p275 = pneg %p167
      $region26: #{cross_attention.2} parent=11 // pred_check_branch
        %277 = sbr.rel (%p275) target = $region28
      $region27: #{cross_attention.2} parent=11 // pred_region
        _
      $region28: #{cross_attention.2} parent=11 // pred_fallthru
        _
    $region12: #{cross_attention.2} parent=5 // pred_fallthru
      _
    %p278 = scmp.lt.s32.totalorder %s15, 2
    // Predicated region
    $region29: #{cross_attention.2} parent=5 // pred_check
      %p279 = pneg %p278
    $region30: #{cross_attention.2} parent=5 // pred_check_branch
      %281 = sbr.rel (%p279) target = $region32
    $region31: #{cross_attention.2} parent=5 // pred_region
      // Predicated region
      $region33: #{cross_attention.2} parent=31 // pred_check
        %p282 = pneg %p49
      $region34: #{cross_attention.2} parent=31 // pred_check_branch
        %284 = sbr.rel (%p282) target = $region36
      $region35: #{cross_attention.2} parent=31 // pred_region
        %s285 = smul.u32 32, %s23
        %p286 = scmp.lt.s32.totalorder %s22, 1
        %s287 = scalar_select %p286, %s22, 1
        %p288 = scmp.lt.s32.totalorder %s285, 31
        %s289 = scalar_select %p288, %s285, 31
        %s290 = smul.addr %s287, 32
        %s291 = sadd.s32 %s289, %s290
        %s292 = smul.addr %s291, 4
        %s293 = scalar_lea.vmem %s0, %s292
        %s294 = smul.u32 32, %s23
      $region36: #{cross_attention.2} parent=31 // pred_fallthru
        _
      // Predicated region
      $region37: #{cross_attention.2} parent=31 // pred_check
        %p295 = pneg %p77
      $region38: #{cross_attention.2} parent=31 // pred_check_branch
        %297 = sbr.rel (%p295) target = $region40
      $region39: #{cross_attention.2} parent=31 // pred_region
        %s298 = smul.u32 32, %s23
        %p299 = scmp.lt.s32.totalorder %s22, 1
        %s300 = scalar_select %p299, %s22, 1
        %p301 = scmp.lt.s32.totalorder %s298, 31
        %s302 = scalar_select %p301, %s298, 31
        %s303 = smul.addr %s300, 32
        %s304 = sadd.s32 %s302, %s303
        %s305 = smul.addr %s304, 4
        %s306 = scalar_lea.vmem %s1, %s305
        %s307 = smul.u32 32, %s23
      $region40: #{cross_attention.2} parent=31 // pred_fallthru
        _
    $region32: #{cross_attention.2} parent=5 // pred_fallthru
      _
    %p308 = scmp.le.s32.totalorder 1, %s15
    %p309 = scmp.lt.s32.totalorder %s15, 3
    %p310 = pnand %p308, %p309
    %p311 = pneg %p310
    // Predicated region
    $region41: #{cross_attention.2} parent=5 // pred_check
      _
    $region42: #{cross_attention.2} parent=5 // pred_check_branch
      %313 = sbr.rel (%p310) target = $region44
    $region43: #{cross_attention.2} parent=5 // pred_region
      %s314 = ssub.s32 %s15, 1
      %s315 = smul.u32 32, %s25
      %p316 = scmp.lt.s32.totalorder %s24, 1
      %s317 = scalar_select %p316, %s24, 1
      %p318 = scmp.lt.s32.totalorder %s315, 31
      %s319 = scalar_select %p318, %s315, 31
      %s320 = smul.addr %s317, 32
      %s321 = sadd.s32 %s319, %s320
      %s322 = smul.addr %s321, 4
      %s323 = scalar_lea.vmem %s0, %s322
      %p324 = pneg %p55
      %p325 = pneg %p52
      %s326 = smul.u32 32, %s25
      %p327 = scmp.lt.s32.totalorder %s24, 1
      %s328 = scalar_select %p327, %s24, 1
      %p329 = scmp.lt.s32.totalorder %s326, 31
      %s330 = scalar_select %p329, %s326, 31
      %s331 = smul.addr %s328, 32
      %s332 = sadd.s32 %s330, %s331
      %s333 = smul.addr %s332, 4
      %s334 = scalar_lea.vmem %s1, %s333
      %p335 = pneg %p83
      %p336 = pneg %p80
      %p337 = pneg %p104
      %p338 = pneg %p101
      %p339 = pneg %p125
      %p340 = pneg %p122
      %p341 = pneg %p146
      %p342 = pneg %p143
      %p343 = pneg %p167
      %p344 = pneg %p164
      %p345 = pneg %p195
      %p346 = pneg %p192
      %s347 = smul.u32 32, %s25
      %p348 = scmp.lt.s32.totalorder %s24, 1
      %s349 = scalar_select %p348, %s24, 1
      %p350 = scmp.lt.s32.totalorder %s347, 31
      %s351 = scalar_select %p350, %s347, 31
      %s352 = smul.addr %s349, 32
      %s353 = sadd.s32 %s351, %s352
      %s354 = smul.addr %s353, 4
      %s355 = scalar_lea.vmem %s6, %s354
      %p356 = pneg %p223
      %p357 = pneg %p220
      %s358 = smul.u32 32, %s25
      %p359 = scmp.lt.s32.totalorder %s24, 1
      %s360 = scalar_select %p359, %s24, 1
      %p361 = scmp.lt.s32.totalorder %s358, 31
      %s362 = scalar_select %p361, %s358, 31
      %s363 = smul.addr %s360, 32
      %s364 = sadd.s32 %s362, %s363
      %s365 = smul.addr %s364, 4
      %s366 = scalar_lea.vmem %s7, %s365
      %p367 = pneg %p251
      %p368 = pneg %p248
      %s369 = smul.u32 32, %s25
      %p370 = scmp.lt.s32.totalorder %s24, 1
      %s371 = scalar_select %p370, %s24, 1
      %p372 = scmp.lt.s32.totalorder %s369, 31
      %s373 = scalar_select %p372, %s369, 31
      %s374 = smul.addr %s371, 32
      %s375 = sadd.s32 %s373, %s374
      %s376 = smul.addr %s375, 4
      %s377 = scalar_lea.vmem %s8, %s376
      %s378 = smul.u32 32, %s25
      %p379 = scmp.lt.s32.totalorder %s24, 1
      %s380 = scalar_select %p379, %s24, 1
      %p381 = scmp.lt.s32.totalorder %s378, 31
      %s382 = scalar_select %p381, %s378, 31
      %s383 = smul.addr %s380, 32
      %s384 = sadd.s32 %s382, %s383
      %s385 = smul.addr %s384, 4
      %s386 = scalar_lea.vmem %s0, %s385
      %s387 = smul.u32 32, %s25
      %s388 = smul.u32 32, %s25
      %p389 = scmp.lt.s32.totalorder %s24, 1
      %s390 = scalar_select %p389, %s24, 1
      %p391 = scmp.lt.s32.totalorder %s388, 31
      %s392 = scalar_select %p391, %s388, 31
      %s393 = smul.addr %s390, 32
      %s394 = sadd.s32 %s392, %s393
      %s395 = smul.addr %s394, 4
      %s396 = scalar_lea.vmem %s1, %s395
      %s397 = smul.u32 32, %s25
      %s398 = smul.u32 32, %s25
      %p399 = scmp.lt.s32.totalorder %s24, 1
      %s400 = scalar_select %p399, %s24, 1
      %p401 = scmp.lt.s32.totalorder %s398, 31
      %s402 = scalar_select %p401, %s398, 31
      %s403 = smul.addr %s400, 32
      %s404 = sadd.s32 %s402, %s403
      %s405 = smul.addr %s404, 4
      %s406 = scalar_lea.vmem %s6, %s405
      %s407 = smul.u32 32, %s25
      %s408 = smul.u32 32, %s25
      %p409 = scmp.lt.s32.totalorder %s24, 1
      %s410 = scalar_select %p409, %s24, 1
      %p411 = scmp.lt.s32.totalorder %s408, 31
      %s412 = scalar_select %p411, %s408, 31
      %s413 = smul.addr %s410, 32
      %s414 = sadd.s32 %s412, %s413
      %s415 = smul.addr %s414, 4
      %s416 = scalar_lea.vmem %s7, %s415
      %s417 = smul.u32 32, %s25
      %s418 = smul.u32 32, %s25
      %p419 = scmp.lt.s32.totalorder %s24, 1
      %s420 = scalar_select %p419, %s24, 1
      %p421 = scmp.lt.s32.totalorder %s418, 31
      %s422 = scalar_select %p421, %s418, 31
      %s423 = smul.addr %s420, 32
      %s424 = sadd.s32 %s422, %s423
      %s425 = smul.addr %s424, 4
      %s426 = scalar_lea.vmem %s8, %s425
      %s427 = smul.u32 32, %s25
      %v428 = vld [vmem:[%s386] sm:$0xf]
      %v429 = vld [vmem:[%s386 + $0x4] sm:$0xf]
      %v430 = vld [vmem:[%s386 + $0x8] sm:$0xf]
      %v431 = vld [vmem:[%s386 + $0xc] sm:$0xf]
      %v432 = vld [vmem:[%s386 + $0x10] sm:$0xf]
      %v433 = vld [vmem:[%s386 + $0x14] sm:$0xf]
      %v434 = vld [vmem:[%s386 + $0x18] sm:$0xf]
      %v435 = vld [vmem:[%s386 + $0x1c] sm:$0xf]
      %v436 = vld [vmem:[%s386 + $0x20] sm:$0xf]
      %v437 = vld [vmem:[%s386 + $0x24] sm:$0xf]
      %v438 = vld [vmem:[%s386 + $0x28] sm:$0xf]
      %v439 = vld [vmem:[%s386 + $0x2c] sm:$0xf]
      %v440 = vld [vmem:[%s386 + $0x30] sm:$0xf]
      %v441 = vld [vmem:[%s386 + $0x34] sm:$0xf]
      %v442 = vld [vmem:[%s386 + $0x38] sm:$0xf]
      %v443 = vld [vmem:[%s386 + $0x3c] sm:$0xf]
      %v444 = vld [vmem:[%s386 + $0x40] sm:$0xf]
      %v445 = vld [vmem:[%s386 + $0x44] sm:$0xf]
      %v446 = vld [vmem:[%s386 + $0x48] sm:$0xf]
      %v447 = vld [vmem:[%s386 + $0x4c] sm:$0xf]
      %v448 = vld [vmem:[%s386 + $0x50] sm:$0xf]
      %v449 = vld [vmem:[%s386 + $0x54] sm:$0xf]
      %v450 = vld [vmem:[%s386 + $0x58] sm:$0xf]
      %v451 = vld [vmem:[%s386 + $0x5c] sm:$0xf]
      %v452 = vld [vmem:[%s386 + $0x60] sm:$0xf]
      %v453 = vld [vmem:[%s386 + $0x64] sm:$0xf]
      %v454 = vld [vmem:[%s386 + $0x68] sm:$0xf]
      %v455 = vld [vmem:[%s386 + $0x6c] sm:$0xf]
      %v456 = vld [vmem:[%s386 + $0x70] sm:$0xf]
      %v457 = vld [vmem:[%s386 + $0x74] sm:$0xf]
      %v458 = vld [vmem:[%s386 + $0x78] sm:$0xf]
      %v459 = vld [vmem:[%s386 + $0x7c] sm:$0xf]
      %v460 = vld [vmem:[%s396] sm:$0xf]
      %v461 = vld [vmem:[%s396 + $0x4] sm:$0xf]
      %v462 = vld [vmem:[%s396 + $0x8] sm:$0xf]
      %v463 = vld [vmem:[%s396 + $0xc] sm:$0xf]
      %v464 = vld [vmem:[%s396 + $0x10] sm:$0xf]
      %v465 = vld [vmem:[%s396 + $0x14] sm:$0xf]
      %v466 = vld [vmem:[%s396 + $0x18] sm:$0xf]
      %v467 = vld [vmem:[%s396 + $0x1c] sm:$0xf]
      %v468 = vld [vmem:[%s396 + $0x20] sm:$0xf]
      %v469 = vld [vmem:[%s396 + $0x24] sm:$0xf]
      %v470 = vld [vmem:[%s396 + $0x28] sm:$0xf]
      %v471 = vld [vmem:[%s396 + $0x2c] sm:$0xf]
      %v472 = vld [vmem:[%s396 + $0x30] sm:$0xf]
      %v473 = vld [vmem:[%s396 + $0x34] sm:$0xf]
      %v474 = vld [vmem:[%s396 + $0x38] sm:$0xf]
      %v475 = vld [vmem:[%s396 + $0x3c] sm:$0xf]
      %v476 = vld [vmem:[%s396 + $0x40] sm:$0xf]
      %v477 = vld [vmem:[%s396 + $0x44] sm:$0xf]
      %v478 = vld [vmem:[%s396 + $0x48] sm:$0xf]
      %v479 = vld [vmem:[%s396 + $0x4c] sm:$0xf]
      %v480 = vld [vmem:[%s396 + $0x50] sm:$0xf]
      %v481 = vld [vmem:[%s396 + $0x54] sm:$0xf]
      %v482 = vld [vmem:[%s396 + $0x58] sm:$0xf]
      %v483 = vld [vmem:[%s396 + $0x5c] sm:$0xf]
      %v484 = vld [vmem:[%s396 + $0x60] sm:$0xf]
      %v485 = vld [vmem:[%s396 + $0x64] sm:$0xf]
      %v486 = vld [vmem:[%s396 + $0x68] sm:$0xf]
      %v487 = vld [vmem:[%s396 + $0x6c] sm:$0xf]
      %v488 = vld [vmem:[%s396 + $0x70] sm:$0xf]
      %v489 = vld [vmem:[%s396 + $0x74] sm:$0xf]
      %v490 = vld [vmem:[%s396 + $0x78] sm:$0xf]
      %v491 = vld [vmem:[%s396 + $0x7c] sm:$0xf]
      %v492 = vld [vmem:[%s2] sm:$0xf]
      %v493 = vld [vmem:[%s2 + $0x4] sm:$0xf]
      %v494 = vld [vmem:[%s2 + $0x8] sm:$0xf]
      %v495 = vld [vmem:[%s2 + $0xc] sm:$0xf]
      %v496 = vld [vmem:[%s2 + $0x10] sm:$0xf]
      %v497 = vld [vmem:[%s2 + $0x14] sm:$0xf]
      %v498 = vld [vmem:[%s2 + $0x18] sm:$0xf]
      %v499 = vld [vmem:[%s2 + $0x1c] sm:$0xf]
      %v500 = vld [vmem:[%s2 + $0x20] sm:$0xf]
      %v501 = vld [vmem:[%s2 + $0x24] sm:$0xf]
      %v502 = vld [vmem:[%s2 + $0x28] sm:$0xf]
      %v503 = vld [vmem:[%s2 + $0x2c] sm:$0xf]
      %v504 = vld [vmem:[%s2 + $0x30] sm:$0xf]
      %v505 = vld [vmem:[%s2 + $0x34] sm:$0xf]
      %v506 = vld [vmem:[%s2 + $0x38] sm:$0xf]
      %v507 = vld [vmem:[%s2 + $0x3c] sm:$0xf]
      %v508 = vld [vmem:[%s3] sm:$0x1]
      %v510 = vperm.slane %v508, 0
      %v544 = vunpack.c.l.b16 %v428
      %v545 = vunpack.c.l.b16 %v429
      %v546 = vunpack.c.l.b16 %v430
      %v547 = vunpack.c.l.b16 %v431
      %v548 = vunpack.c.l.b16 %v432
      %v549 = vunpack.c.l.b16 %v433
      %v550 = vunpack.c.l.b16 %v434
      %v551 = vunpack.c.l.b16 %v435
      %v552 = vunpack.c.l.b16 %v436
      %v553 = vunpack.c.l.b16 %v437
      %v554 = vunpack.c.l.b16 %v438
      %v555 = vunpack.c.l.b16 %v439
      %v556 = vunpack.c.l.b16 %v440
      %v557 = vunpack.c.l.b16 %v441
      %v558 = vunpack.c.l.b16 %v442
      %v559 = vunpack.c.l.b16 %v443
      %v560 = vunpack.c.l.b16 %v444
      %v561 = vunpack.c.l.b16 %v445
      %v562 = vunpack.c.l.b16 %v446
      %v563 = vunpack.c.l.b16 %v447
      %v564 = vunpack.c.l.b16 %v448
      %v565 = vunpack.c.l.b16 %v449
      %v566 = vunpack.c.l.b16 %v450
      %v567 = vunpack.c.l.b16 %v451
      %v568 = vunpack.c.l.b16 %v452
      %v569 = vunpack.c.l.b16 %v453
      %v570 = vunpack.c.l.b16 %v454
      %v571 = vunpack.c.l.b16 %v455
      %v572 = vunpack.c.l.b16 %v456
      %v573 = vunpack.c.l.b16 %v457
      %v574 = vunpack.c.l.b16 %v458
      %v575 = vunpack.c.l.b16 %v459
      %v576 = vpack.c.b16 %v545, %v544
      %v577 = vpack.c.b16 %v547, %v546
      %v578 = vpack.c.b16 %v549, %v548
      %v579 = vpack.c.b16 %v551, %v550
      %v580 = vpack.c.b16 %v553, %v552
      %v581 = vpack.c.b16 %v555, %v554
      %v582 = vpack.c.b16 %v557, %v556
      %v583 = vpack.c.b16 %v559, %v558
      %v584 = vpack.c.b16 %v561, %v560
      %v585 = vpack.c.b16 %v563, %v562
      %v586 = vpack.c.b16 %v565, %v564
      %v587 = vpack.c.b16 %v567, %v566
      %v588 = vpack.c.b16 %v569, %v568
      %v589 = vpack.c.b16 %v571, %v570
      %v590 = vpack.c.b16 %v573, %v572
      %v591 = vpack.c.b16 %v575, %v574
      %v624 = vunpack.c.l.b16 %v492
      %v625 = vunpack.c.l.b16 %v493
      %v626 = vunpack.c.l.b16 %v494
      %v627 = vunpack.c.l.b16 %v495
      %v628 = vunpack.c.l.b16 %v496
      %v629 = vunpack.c.l.b16 %v497
      %v630 = vunpack.c.l.b16 %v498
      %v631 = vunpack.c.l.b16 %v499
      %v632 = vunpack.c.l.b16 %v500
      %v633 = vunpack.c.l.b16 %v501
      %v634 = vunpack.c.l.b16 %v502
      %v635 = vunpack.c.l.b16 %v503
      %v636 = vunpack.c.l.b16 %v504
      %v637 = vunpack.c.l.b16 %v505
      %v638 = vunpack.c.l.b16 %v506
      %v639 = vunpack.c.l.b16 %v507
      %v640 = vpack.c.b16 %v625, %v624
      %v641 = vpack.c.b16 %v627, %v626
      %v642 = vpack.c.b16 %v629, %v628
      %v643 = vpack.c.b16 %v631, %v630
      %v644 = vpack.c.b16 %v633, %v632
      %v645 = vpack.c.b16 %v635, %v634
      %v646 = vpack.c.b16 %v637, %v636
      %v647 = vpack.c.b16 %v639, %v638
      %656 = vmatpush.bf16.msra.mxu0 %v647
      %657 = vmatpush.bf16.msra.mxu0 %v646
      %658 = vmatpush.bf16.msra.mxu0 %v645
      %659 = vmatpush.bf16.msra.mxu0 %v644
      %660 = vmatpush.bf16.msra.mxu0 %v643
      %661 = vmatpush.bf16.msra.mxu0 %v642
      %662 = vmatpush.bf16.msra.mxu0 %v641
      %663 = vmatpush.bf16.msra.mxu0 %v640
      %664 = vmatmul.bf16.gmra.mxu0 %v576
      %v665 = vpop.f32.mrf.mxu0
      %v666 = vadd.f32 %v510, %v665
      %v667 = vpop.f32.mrf.mxu0
      %v668 = vadd.f32 %v510, %v667
      %669 = vmatmul.bf16.gmra.mxu0 %v577
      %v670 = vpop.f32.mrf.mxu0
      %v671 = vadd.f32 %v510, %v670
      %v672 = vpop.f32.mrf.mxu0
      %v673 = vadd.f32 %v510, %v672
      %674 = vmatmul.bf16.gmra.mxu0 %v578
      %v675 = vpop.f32.mrf.mxu0
      %v676 = vadd.f32 %v510, %v675
      %v677 = vpop.f32.mrf.mxu0
      %v678 = vadd.f32 %v510, %v677
      %679 = vmatmul.bf16.gmra.mxu0 %v579
      %v680 = vpop.f32.mrf.mxu0
      %v681 = vadd.f32 %v510, %v680
      %v682 = vpop.f32.mrf.mxu0
      %v683 = vadd.f32 %v510, %v682
      %684 = vmatmul.bf16.gmra.mxu0 %v580
      %v685 = vpop.f32.mrf.mxu0
      %v686 = vadd.f32 %v510, %v685
      %v687 = vpop.f32.mrf.mxu0
      %v688 = vadd.f32 %v510, %v687
      %689 = vmatmul.bf16.gmra.mxu0 %v581
      %v690 = vpop.f32.mrf.mxu0
      %v691 = vadd.f32 %v510, %v690
      %v692 = vpop.f32.mrf.mxu0
      %v693 = vadd.f32 %v510, %v692
      %694 = vmatmul.bf16.gmra.mxu0 %v582
      %v695 = vpop.f32.mrf.mxu0
      %v696 = vadd.f32 %v510, %v695
      %v697 = vpop.f32.mrf.mxu0
      %v698 = vadd.f32 %v510, %v697
      %699 = vmatmul.bf16.gmra.mxu0 %v583
      %v700 = vpop.f32.mrf.mxu0
      %v701 = vadd.f32 %v510, %v700
      %v702 = vpop.f32.mrf.mxu0
      %v703 = vadd.f32 %v510, %v702
      %704 = vmatmul.bf16.gmra.mxu0 %v584
      %v705 = vpop.f32.mrf.mxu0
      %v706 = vadd.f32 %v510, %v705
      %v707 = vpop.f32.mrf.mxu0
      %v708 = vadd.f32 %v510, %v707
      %709 = vmatmul.bf16.gmra.mxu0 %v585
      %v710 = vpop.f32.mrf.mxu0
      %v711 = vadd.f32 %v510, %v710
      %v712 = vpop.f32.mrf.mxu0
      %v713 = vadd.f32 %v510, %v712
      %714 = vmatmul.bf16.gmra.mxu0 %v586
      %v715 = vpop.f32.mrf.mxu0
      %v716 = vadd.f32 %v510, %v715
      %v717 = vpop.f32.mrf.mxu0
      %v718 = vadd.f32 %v510, %v717
      %719 = vmatmul.bf16.gmra.mxu0 %v587
      %v720 = vpop.f32.mrf.mxu0
      %v721 = vadd.f32 %v510, %v720
      %v722 = vpop.f32.mrf.mxu0
      %v723 = vadd.f32 %v510, %v722
      %724 = vmatmul.bf16.gmra.mxu0 %v588
      %v725 = vpop.f32.mrf.mxu0
      %v726 = vadd.f32 %v510, %v725
      %v727 = vpop.f32.mrf.mxu0
      %v728 = vadd.f32 %v510, %v727
      %729 = vmatmul.bf16.gmra.mxu0 %v589
      %v730 = vpop.f32.mrf.mxu0
      %v731 = vadd.f32 %v510, %v730
      %v732 = vpop.f32.mrf.mxu0
      %v733 = vadd.f32 %v510, %v732
      %734 = vmatmul.bf16.gmra.mxu0 %v590
      %v735 = vpop.f32.mrf.mxu0
      %v736 = vadd.f32 %v510, %v735
      %v737 = vpop.f32.mrf.mxu0
      %v738 = vadd.f32 %v510, %v737
      %739 = vmatmul.bf16.gmra.mxu0 %v591
      %v740 = vpop.f32.mrf.mxu0
      %v741 = vadd.f32 %v510, %v740
      %v742 = vpop.f32.mrf.mxu0
      %v743 = vadd.f32 %v510, %v742
      %744 = vdwg.mxu0
      %v745 = vld [vmem:[%s4] sm:$0xff]
      %v746 = vld [vmem:[%s4 + $0x8] sm:$0xff]
      %v747 = vld [vmem:[%s4 + $0x10] sm:$0xff]
      %v748 = vld [vmem:[%s4 + $0x18] sm:$0xff]
      %v749 = vld [vmem:[%s4 + $0x20] sm:$0xff]
      %v750 = vld [vmem:[%s4 + $0x28] sm:$0xff]
      %v751 = vld [vmem:[%s4 + $0x30] sm:$0xff]
      %v752 = vld [vmem:[%s4 + $0x38] sm:$0xff]
      %v753 = vld [vmem:[%s4 + $0x40] sm:$0xff]
      %v754 = vld [vmem:[%s4 + $0x48] sm:$0xff]
      %v755 = vld [vmem:[%s4 + $0x50] sm:$0xff]
      %v756 = vld [vmem:[%s4 + $0x58] sm:$0xff]
      %v757 = vld [vmem:[%s4 + $0x60] sm:$0xff]
      %v758 = vld [vmem:[%s4 + $0x68] sm:$0xff]
      %v759 = vld [vmem:[%s4 + $0x70] sm:$0xff]
      %v760 = vld [vmem:[%s4 + $0x78] sm:$0xff]
      %v761 = vld [vmem:[%s5] sm:$0x3]
      %v763 = vperm.slane %v761, 0
      %v764 = vperm.slane %v761, 1
      %v799 = vunpack.c.l.b16 %v460
      %v800 = vunpack.c.l.b16 %v461
      %v801 = vunpack.c.l.b16 %v462
      %v802 = vunpack.c.l.b16 %v463
      %v803 = vunpack.c.l.b16 %v464
      %v804 = vunpack.c.l.b16 %v465
      %v805 = vunpack.c.l.b16 %v466
      %v806 = vunpack.c.l.b16 %v467
      %v807 = vunpack.c.l.b16 %v468
      %v808 = vunpack.c.l.b16 %v469
      %v809 = vunpack.c.l.b16 %v470
      %v810 = vunpack.c.l.b16 %v471
      %v811 = vunpack.c.l.b16 %v472
      %v812 = vunpack.c.l.b16 %v473
      %v813 = vunpack.c.l.b16 %v474
      %v814 = vunpack.c.l.b16 %v475
      %v815 = vunpack.c.l.b16 %v476
      %v816 = vunpack.c.l.b16 %v477
      %v817 = vunpack.c.l.b16 %v478
      %v818 = vunpack.c.l.b16 %v479
      %v819 = vunpack.c.l.b16 %v480
      %v820 = vunpack.c.l.b16 %v481
      %v821 = vunpack.c.l.b16 %v482
      %v822 = vunpack.c.l.b16 %v483
      %v823 = vunpack.c.l.b16 %v484
      %v824 = vunpack.c.l.b16 %v485
      %v825 = vunpack.c.l.b16 %v486
      %v826 = vunpack.c.l.b16 %v487
      %v827 = vunpack.c.l.b16 %v488
      %v828 = vunpack.c.l.b16 %v489
      %v829 = vunpack.c.l.b16 %v490
      %v830 = vunpack.c.l.b16 %v491
      %v831 = vpack.c.b16 %v800, %v799
      %v832 = vpack.c.b16 %v802, %v801
      %v833 = vpack.c.b16 %v804, %v803
      %v834 = vpack.c.b16 %v806, %v805
      %v835 = vpack.c.b16 %v808, %v807
      %v836 = vpack.c.b16 %v810, %v809
      %v837 = vpack.c.b16 %v812, %v811
      %v838 = vpack.c.b16 %v814, %v813
      %v839 = vpack.c.b16 %v816, %v815
      %v840 = vpack.c.b16 %v818, %v817
      %v841 = vpack.c.b16 %v820, %v819
      %v842 = vpack.c.b16 %v822, %v821
      %v843 = vpack.c.b16 %v824, %v823
      %v844 = vpack.c.b16 %v826, %v825
      %v845 = vpack.c.b16 %v828, %v827
      %v846 = vpack.c.b16 %v830, %v829
      %v879 = vunpack.c.l.b16 %v745
      %v880 = vunpack.c.h.b16 %v745
      %v881 = vunpack.c.l.b16 %v746
      %v882 = vunpack.c.h.b16 %v746
      %v883 = vunpack.c.l.b16 %v747
      %v884 = vunpack.c.h.b16 %v747
      %v885 = vunpack.c.l.b16 %v748
      %v886 = vunpack.c.h.b16 %v748
      %v887 = vunpack.c.l.b16 %v749
      %v888 = vunpack.c.h.b16 %v749
      %v889 = vunpack.c.l.b16 %v750
      %v890 = vunpack.c.h.b16 %v750
      %v891 = vunpack.c.l.b16 %v751
      %v892 = vunpack.c.h.b16 %v751
      %v893 = vunpack.c.l.b16 %v752
      %v894 = vunpack.c.h.b16 %v752
      %v895 = vunpack.c.l.b16 %v753
      %v896 = vunpack.c.h.b16 %v753
      %v897 = vunpack.c.l.b16 %v754
      %v898 = vunpack.c.h.b16 %v754
      %v899 = vunpack.c.l.b16 %v755
      %v900 = vunpack.c.h.b16 %v755
      %v901 = vunpack.c.l.b16 %v756
      %v902 = vunpack.c.h.b16 %v756
      %v903 = vunpack.c.l.b16 %v757
      %v904 = vunpack.c.h.b16 %v757
      %v905 = vunpack.c.l.b16 %v758
      %v906 = vunpack.c.h.b16 %v758
      %v907 = vunpack.c.l.b16 %v759
      %v908 = vunpack.c.h.b16 %v759
      %v909 = vunpack.c.l.b16 %v760
      %v910 = vunpack.c.h.b16 %v760
      %v911 = vpack.c.b16 %v881, %v879
      %v912 = vpack.c.b16 %v882, %v880
      %v913 = vpack.c.b16 %v885, %v883
      %v914 = vpack.c.b16 %v886, %v884
      %v915 = vpack.c.b16 %v889, %v887
      %v916 = vpack.c.b16 %v890, %v888
      %v917 = vpack.c.b16 %v893, %v891
      %v918 = vpack.c.b16 %v894, %v892
      %v919 = vpack.c.b16 %v897, %v895
      %v920 = vpack.c.b16 %v898, %v896
      %v921 = vpack.c.b16 %v901, %v899
      %v922 = vpack.c.b16 %v902, %v900
      %v923 = vpack.c.b16 %v905, %v903
      %v924 = vpack.c.b16 %v906, %v904
      %v925 = vpack.c.b16 %v909, %v907
      %v926 = vpack.c.b16 %v910, %v908
      %943 = vmatpush.bf16.msra.mxu0 %v925
      %944 = vmatpush.bf16.msra.mxu0 %v923
      %945 = vmatpush.bf16.msra.mxu0 %v921
      %946 = vmatpush.bf16.msra.mxu0 %v919
      %947 = vmatpush.bf16.msra.mxu0 %v917
      %948 = vmatpush.bf16.msra.mxu0 %v915
      %949 = vmatpush.bf16.msra.mxu0 %v913
      %950 = vmatpush.bf16.msra.mxu0 %v911
      %951 = vmatmul.bf16.gmra.mxu0 %v831
      %v952 = vpop.f32.mrf.mxu0
      %v953 = vadd.f32 %v763, %v952
      %v954 = vpop.f32.mrf.mxu0
      %v955 = vadd.f32 %v763, %v954
      %956 = vmatmul.bf16.gmra.mxu0 %v832
      %v957 = vpop.f32.mrf.mxu0
      %v958 = vadd.f32 %v763, %v957
      %v959 = vpop.f32.mrf.mxu0
      %v960 = vadd.f32 %v763, %v959
      %961 = vmatmul.bf16.gmra.mxu0 %v833
      %v962 = vpop.f32.mrf.mxu0
      %v963 = vadd.f32 %v763, %v962
      %v964 = vpop.f32.mrf.mxu0
      %v965 = vadd.f32 %v763, %v964
      %966 = vmatmul.bf16.gmra.mxu0 %v834
      %v967 = vpop.f32.mrf.mxu0
      %v968 = vadd.f32 %v763, %v967
      %v969 = vpop.f32.mrf.mxu0
      %v970 = vadd.f32 %v763, %v969
      %971 = vmatmul.bf16.gmra.mxu0 %v835
      %v972 = vpop.f32.mrf.mxu0
      %v973 = vadd.f32 %v763, %v972
      %v974 = vpop.f32.mrf.mxu0
      %v975 = vadd.f32 %v763, %v974
      %976 = vmatmul.bf16.gmra.mxu0 %v836
      %v977 = vpop.f32.mrf.mxu0
      %v978 = vadd.f32 %v763, %v977
      %v979 = vpop.f32.mrf.mxu0
      %v980 = vadd.f32 %v763, %v979
      %981 = vmatmul.bf16.gmra.mxu0 %v837
      %v982 = vpop.f32.mrf.mxu0
      %v983 = vadd.f32 %v763, %v982
      %v984 = vpop.f32.mrf.mxu0
      %v985 = vadd.f32 %v763, %v984
      %986 = vmatmul.bf16.gmra.mxu0 %v838
      %v987 = vpop.f32.mrf.mxu0
      %v988 = vadd.f32 %v763, %v987
      %v989 = vpop.f32.mrf.mxu0
      %v990 = vadd.f32 %v763, %v989
      %991 = vmatmul.bf16.gmra.mxu0 %v839
      %v992 = vpop.f32.mrf.mxu0
      %v993 = vadd.f32 %v763, %v992
      %v994 = vpop.f32.mrf.mxu0
      %v995 = vadd.f32 %v763, %v994
      %996 = vmatmul.bf16.gmra.mxu0 %v840
      %v997 = vpop.f32.mrf.mxu0
      %v998 = vadd.f32 %v763, %v997
      %v999 = vpop.f32.mrf.mxu0
      %v1000 = vadd.f32 %v763, %v999
      %1001 = vmatmul.bf16.gmra.mxu0 %v841
      %v1002 = vpop.f32.mrf.mxu0
      %v1003 = vadd.f32 %v763, %v1002
      %v1004 = vpop.f32.mrf.mxu0
      %v1005 = vadd.f32 %v763, %v1004
      %1006 = vmatmul.bf16.gmra.mxu0 %v842
      %v1007 = vpop.f32.mrf.mxu0
      %v1008 = vadd.f32 %v763, %v1007
      %v1009 = vpop.f32.mrf.mxu0
      %v1010 = vadd.f32 %v763, %v1009
      %1011 = vmatmul.bf16.gmra.mxu0 %v843
      %v1012 = vpop.f32.mrf.mxu0
      %v1013 = vadd.f32 %v763, %v1012
      %v1014 = vpop.f32.mrf.mxu0
      %v1015 = vadd.f32 %v763, %v1014
      %1016 = vmatmul.bf16.gmra.mxu0 %v844
      %v1017 = vpop.f32.mrf.mxu0
      %v1018 = vadd.f32 %v763, %v1017
      %v1019 = vpop.f32.mrf.mxu0
      %v1020 = vadd.f32 %v763, %v1019
      %1021 = vmatmul.bf16.gmra.mxu0 %v845
      %v1022 = vpop.f32.mrf.mxu0
      %v1023 = vadd.f32 %v763, %v1022
      %v1024 = vpop.f32.mrf.mxu0
      %v1025 = vadd.f32 %v763, %v1024
      %1026 = vmatmul.bf16.gmra.mxu0 %v846
      %v1027 = vpop.f32.mrf.mxu0
      %v1028 = vadd.f32 %v763, %v1027
      %v1029 = vpop.f32.mrf.mxu0
      %v1030 = vadd.f32 %v763, %v1029
      %1031 = vdwg.mxu0
      %1032 = vmatpush.bf16.msra.mxu0 %v926
      %1033 = vmatpush.bf16.msra.mxu0 %v924
      %1034 = vmatpush.bf16.msra.mxu0 %v922
      %1035 = vmatpush.bf16.msra.mxu0 %v920
      %1036 = vmatpush.bf16.msra.mxu0 %v918
      %1037 = vmatpush.bf16.msra.mxu0 %v916
      %1038 = vmatpush.bf16.msra.mxu0 %v914
      %1039 = vmatpush.bf16.msra.mxu0 %v912
      %1040 = vmatmul.bf16.gmra.mxu0 %v831
      %v1041 = vpop.f32.mrf.mxu0
      %v1042 = vadd.f32 %v764, %v1041
      %v1043 = vpop.f32.mrf.mxu0
      %v1044 = vadd.f32 %v764, %v1043
      %1045 = vmatmul.bf16.gmra.mxu0 %v832
      %v1046 = vpop.f32.mrf.mxu0
      %v1047 = vadd.f32 %v764, %v1046
      %v1048 = vpop.f32.mrf.mxu0
      %v1049 = vadd.f32 %v764, %v1048
      %1050 = vmatmul.bf16.gmra.mxu0 %v833
      %v1051 = vpop.f32.mrf.mxu0
      %v1052 = vadd.f32 %v764, %v1051
      %v1053 = vpop.f32.mrf.mxu0
      %v1054 = vadd.f32 %v764, %v1053
      %1055 = vmatmul.bf16.gmra.mxu0 %v834
      %v1056 = vpop.f32.mrf.mxu0
      %v1057 = vadd.f32 %v764, %v1056
      %v1058 = vpop.f32.mrf.mxu0
      %v1059 = vadd.f32 %v764, %v1058
      %1060 = vmatmul.bf16.gmra.mxu0 %v835
      %v1061 = vpop.f32.mrf.mxu0
      %v1062 = vadd.f32 %v764, %v1061
      %v1063 = vpop.f32.mrf.mxu0
      %v1064 = vadd.f32 %v764, %v1063
      %1065 = vmatmul.bf16.gmra.mxu0 %v836
      %v1066 = vpop.f32.mrf.mxu0
      %v1067 = vadd.f32 %v764, %v1066
      %v1068 = vpop.f32.mrf.mxu0
      %v1069 = vadd.f32 %v764, %v1068
      %1070 = vmatmul.bf16.gmra.mxu0 %v837
      %v1071 = vpop.f32.mrf.mxu0
      %v1072 = vadd.f32 %v764, %v1071
      %v1073 = vpop.f32.mrf.mxu0
      %v1074 = vadd.f32 %v764, %v1073
      %1075 = vmatmul.bf16.gmra.mxu0 %v838
      %v1076 = vpop.f32.mrf.mxu0
      %v1077 = vadd.f32 %v764, %v1076
      %v1078 = vpop.f32.mrf.mxu0
      %v1079 = vadd.f32 %v764, %v1078
      %1080 = vmatmul.bf16.gmra.mxu0 %v839
      %v1081 = vpop.f32.mrf.mxu0
      %v1082 = vadd.f32 %v764, %v1081
      %v1083 = vpop.f32.mrf.mxu0
      %v1084 = vadd.f32 %v764, %v1083
      %1085 = vmatmul.bf16.gmra.mxu0 %v840
      %v1086 = vpop.f32.mrf.mxu0
      %v1087 = vadd.f32 %v764, %v1086
      %v1088 = vpop.f32.mrf.mxu0
      %v1089 = vadd.f32 %v764, %v1088
      %1090 = vmatmul.bf16.gmra.mxu0 %v841
      %v1091 = vpop.f32.mrf.mxu0
      %v1092 = vadd.f32 %v764, %v1091
      %v1093 = vpop.f32.mrf.mxu0
      %v1094 = vadd.f32 %v764, %v1093
      %1095 = vmatmul.bf16.gmra.mxu0 %v842
      %v1096 = vpop.f32.mrf.mxu0
      %v1097 = vadd.f32 %v764, %v1096
      %v1098 = vpop.f32.mrf.mxu0
      %v1099 = vadd.f32 %v764, %v1098
      %1100 = vmatmul.bf16.gmra.mxu0 %v843
      %v1101 = vpop.f32.mrf.mxu0
      %v1102 = vadd.f32 %v764, %v1101
      %v1103 = vpop.f32.mrf.mxu0
      %v1104 = vadd.f32 %v764, %v1103
      %1105 = vmatmul.bf16.gmra.mxu0 %v844
      %v1106 = vpop.f32.mrf.mxu0
      %v1107 = vadd.f32 %v764, %v1106
      %v1108 = vpop.f32.mrf.mxu0
      %v1109 = vadd.f32 %v764, %v1108
      %1110 = vmatmul.bf16.gmra.mxu0 %v845
      %v1111 = vpop.f32.mrf.mxu0
      %v1112 = vadd.f32 %v764, %v1111
      %v1113 = vpop.f32.mrf.mxu0
      %v1114 = vadd.f32 %v764, %v1113
      %1115 = vmatmul.bf16.gmra.mxu0 %v846
      %v1116 = vpop.f32.mrf.mxu0
      %v1117 = vadd.f32 %v764, %v1116
      %v1118 = vpop.f32.mrf.mxu0
      %v1119 = vadd.f32 %v764, %v1118
      %1120 = vdwg.mxu0
      %v1121 = vpack.c.bf16 %v666, %v666
      %v1122 = vpack.c.bf16 %v668, %v668
      %v1123 = vpack.c.bf16 %v671, %v671
      %v1124 = vpack.c.bf16 %v673, %v673
      %v1125 = vpack.c.bf16 %v676, %v676
      %v1126 = vpack.c.bf16 %v678, %v678
      %v1127 = vpack.c.bf16 %v681, %v681
      %v1128 = vpack.c.bf16 %v683, %v683
      %v1129 = vpack.c.bf16 %v686, %v686
      %v1130 = vpack.c.bf16 %v688, %v688
      %v1131 = vpack.c.bf16 %v691, %v691
      %v1132 = vpack.c.bf16 %v693, %v693
      %v1133 = vpack.c.bf16 %v696, %v696
      %v1134 = vpack.c.bf16 %v698, %v698
      %v1135 = vpack.c.bf16 %v701, %v701
      %v1136 = vpack.c.bf16 %v703, %v703
      %v1137 = vpack.c.bf16 %v706, %v706
      %v1138 = vpack.c.bf16 %v708, %v708
      %v1139 = vpack.c.bf16 %v711, %v711
      %v1140 = vpack.c.bf16 %v713, %v713
      %v1141 = vpack.c.bf16 %v716, %v716
      %v1142 = vpack.c.bf16 %v718, %v718
      %v1143 = vpack.c.bf16 %v721, %v721
      %v1144 = vpack.c.bf16 %v723, %v723
      %v1145 = vpack.c.bf16 %v726, %v726
      %v1146 = vpack.c.bf16 %v728, %v728
      %v1147 = vpack.c.bf16 %v731, %v731
      %v1148 = vpack.c.bf16 %v733, %v733
      %v1149 = vpack.c.bf16 %v736, %v736
      %v1150 = vpack.c.bf16 %v738, %v738
      %v1151 = vpack.c.bf16 %v741, %v741
      %v1152 = vpack.c.bf16 %v743, %v743
      %1153 = vst [vmem:[%s406] sm:$0xf] %v1121
      %1154 = vst [vmem:[%s406 + $0x4] sm:$0xf] %v1122
      %1155 = vst [vmem:[%s406 + $0x8] sm:$0xf] %v1123
      %1156 = vst [vmem:[%s406 + $0xc] sm:$0xf] %v1124
      %1157 = vst [vmem:[%s406 + $0x10] sm:$0xf] %v1125
      %1158 = vst [vmem:[%s406 + $0x14] sm:$0xf] %v1126
      %1159 = vst [vmem:[%s406 + $0x18] sm:$0xf] %v1127
      %1160 = vst [vmem:[%s406 + $0x1c] sm:$0xf] %v1128
      %1161 = vst [vmem:[%s406 + $0x20] sm:$0xf] %v1129
      %1162 = vst [vmem:[%s406 + $0x24] sm:$0xf] %v1130
      %1163 = vst [vmem:[%s406 + $0x28] sm:$0xf] %v1131
      %1164 = vst [vmem:[%s406 + $0x2c] sm:$0xf] %v1132
      %1165 = vst [vmem:[%s406 + $0x30] sm:$0xf] %v1133
      %1166 = vst [vmem:[%s406 + $0x34] sm:$0xf] %v1134
      %1167 = vst [vmem:[%s406 + $0x38] sm:$0xf] %v1135
      %1168 = vst [vmem:[%s406 + $0x3c] sm:$0xf] %v1136
      %1169 = vst [vmem:[%s406 + $0x40] sm:$0xf] %v1137
      %1170 = vst [vmem:[%s406 + $0x44] sm:$0xf] %v1138
      %1171 = vst [vmem:[%s406 + $0x48] sm:$0xf] %v1139
      %1172 = vst [vmem:[%s406 + $0x4c] sm:$0xf] %v1140
      %1173 = vst [vmem:[%s406 + $0x50] sm:$0xf] %v1141
      %1174 = vst [vmem:[%s406 + $0x54] sm:$0xf] %v1142
      %1175 = vst [vmem:[%s406 + $0x58] sm:$0xf] %v1143
      %1176 = vst [vmem:[%s406 + $0x5c] sm:$0xf] %v1144
      %1177 = vst [vmem:[%s406 + $0x60] sm:$0xf] %v1145
      %1178 = vst [vmem:[%s406 + $0x64] sm:$0xf] %v1146
      %1179 = vst [vmem:[%s406 + $0x68] sm:$0xf] %v1147
      %1180 = vst [vmem:[%s406 + $0x6c] sm:$0xf] %v1148
      %1181 = vst [vmem:[%s406 + $0x70] sm:$0xf] %v1149
      %1182 = vst [vmem:[%s406 + $0x74] sm:$0xf] %v1150
      %1183 = vst [vmem:[%s406 + $0x78] sm:$0xf] %v1151
      %1184 = vst [vmem:[%s406 + $0x7c] sm:$0xf] %v1152
      %v1185 = vpack.c.bf16 %v953, %v953
      %v1186 = vpack.c.bf16 %v955, %v955
      %v1187 = vpack.c.bf16 %v958, %v958
      %v1188 = vpack.c.bf16 %v960, %v960
      %v1189 = vpack.c.bf16 %v963, %v963
      %v1190 = vpack.c.bf16 %v965, %v965
      %v1191 = vpack.c.bf16 %v968, %v968
      %v1192 = vpack.c.bf16 %v970, %v970
      %v1193 = vpack.c.bf16 %v973, %v973
      %v1194 = vpack.c.bf16 %v975, %v975
      %v1195 = vpack.c.bf16 %v978, %v978
      %v1196 = vpack.c.bf16 %v980, %v980
      %v1197 = vpack.c.bf16 %v983, %v983
      %v1198 = vpack.c.bf16 %v985, %v985
      %v1199 = vpack.c.bf16 %v988, %v988
      %v1200 = vpack.c.bf16 %v990, %v990
      %v1201 = vpack.c.bf16 %v993, %v993
      %v1202 = vpack.c.bf16 %v995, %v995
      %v1203 = vpack.c.bf16 %v998, %v998
      %v1204 = vpack.c.bf16 %v1000, %v1000
      %v1205 = vpack.c.bf16 %v1003, %v1003
      %v1206 = vpack.c.bf16 %v1005, %v1005
      %v1207 = vpack.c.bf16 %v1008, %v1008
      %v1208 = vpack.c.bf16 %v1010, %v1010
      %v1209 = vpack.c.bf16 %v1013, %v1013
      %v1210 = vpack.c.bf16 %v1015, %v1015
      %v1211 = vpack.c.bf16 %v1018, %v1018
      %v1212 = vpack.c.bf16 %v1020, %v1020
      %v1213 = vpack.c.bf16 %v1023, %v1023
      %v1214 = vpack.c.bf16 %v1025, %v1025
      %v1215 = vpack.c.bf16 %v1028, %v1028
      %v1216 = vpack.c.bf16 %v1030, %v1030
      %1217 = vst [vmem:[%s416] sm:$0xf] %v1185
      %1218 = vst [vmem:[%s416 + $0x4] sm:$0xf] %v1186
      %1219 = vst [vmem:[%s416 + $0x8] sm:$0xf] %v1187
      %1220 = vst [vmem:[%s416 + $0xc] sm:$0xf] %v1188
      %1221 = vst [vmem:[%s416 + $0x10] sm:$0xf] %v1189
      %1222 = vst [vmem:[%s416 + $0x14] sm:$0xf] %v1190
      %1223 = vst [vmem:[%s416 + $0x18] sm:$0xf] %v1191
      %1224 = vst [vmem:[%s416 + $0x1c] sm:$0xf] %v1192
      %1225 = vst [vmem:[%s416 + $0x20] sm:$0xf] %v1193
      %1226 = vst [vmem:[%s416 + $0x24] sm:$0xf] %v1194
      %1227 = vst [vmem:[%s416 + $0x28] sm:$0xf] %v1195
      %1228 = vst [vmem:[%s416 + $0x2c] sm:$0xf] %v1196
      %1229 = vst [vmem:[%s416 + $0x30] sm:$0xf] %v1197
      %1230 = vst [vmem:[%s416 + $0x34] sm:$0xf] %v1198
      %1231 = vst [vmem:[%s416 + $0x38] sm:$0xf] %v1199
      %1232 = vst [vmem:[%s416 + $0x3c] sm:$0xf] %v1200
      %1233 = vst [vmem:[%s416 + $0x40] sm:$0xf] %v1201
      %1234 = vst [vmem:[%s416 + $0x44] sm:$0xf] %v1202
      %1235 = vst [vmem:[%s416 + $0x48] sm:$0xf] %v1203
      %1236 = vst [vmem:[%s416 + $0x4c] sm:$0xf] %v1204
      %1237 = vst [vmem:[%s416 + $0x50] sm:$0xf] %v1205
      %1238 = vst [vmem:[%s416 + $0x54] sm:$0xf] %v1206
      %1239 = vst [vmem:[%s416 + $0x58] sm:$0xf] %v1207
      %1240 = vst [vmem:[%s416 + $0x5c] sm:$0xf] %v1208
      %1241 = vst [vmem:[%s416 + $0x60] sm:$0xf] %v1209
      %1242 = vst [vmem:[%s416 + $0x64] sm:$0xf] %v1210
      %1243 = vst [vmem:[%s416 + $0x68] sm:$0xf] %v1211
      %1244 = vst [vmem:[%s416 + $0x6c] sm:$0xf] %v1212
      %1245 = vst [vmem:[%s416 + $0x70] sm:$0xf] %v1213
      %1246 = vst [vmem:[%s416 + $0x74] sm:$0xf] %v1214
      %1247 = vst [vmem:[%s416 + $0x78] sm:$0xf] %v1215
      %1248 = vst [vmem:[%s416 + $0x7c] sm:$0xf] %v1216
      %v1249 = vpack.c.bf16 %v1042, %v1042
      %v1250 = vpack.c.bf16 %v1044, %v1044
      %v1251 = vpack.c.bf16 %v1047, %v1047
      %v1252 = vpack.c.bf16 %v1049, %v1049
      %v1253 = vpack.c.bf16 %v1052, %v1052
      %v1254 = vpack.c.bf16 %v1054, %v1054
      %v1255 = vpack.c.bf16 %v1057, %v1057
      %v1256 = vpack.c.bf16 %v1059, %v1059
      %v1257 = vpack.c.bf16 %v1062, %v1062
      %v1258 = vpack.c.bf16 %v1064, %v1064
      %v1259 = vpack.c.bf16 %v1067, %v1067
      %v1260 = vpack.c.bf16 %v1069, %v1069
      %v1261 = vpack.c.bf16 %v1072, %v1072
      %v1262 = vpack.c.bf16 %v1074, %v1074
      %v1263 = vpack.c.bf16 %v1077, %v1077
      %v1264 = vpack.c.bf16 %v1079, %v1079
      %v1265 = vpack.c.bf16 %v1082, %v1082
      %v1266 = vpack.c.bf16 %v1084, %v1084
      %v1267 = vpack.c.bf16 %v1087, %v1087
      %v1268 = vpack.c.bf16 %v1089, %v1089
      %v1269 = vpack.c.bf16 %v1092, %v1092
      %v1270 = vpack.c.bf16 %v1094, %v1094
      %v1271 = vpack.c.bf16 %v1097, %v1097
      %v1272 = vpack.c.bf16 %v1099, %v1099
      %v1273 = vpack.c.bf16 %v1102, %v1102
      %v1274 = vpack.c.bf16 %v1104, %v1104
      %v1275 = vpack.c.bf16 %v1107, %v1107
      %v1276 = vpack.c.bf16 %v1109, %v1109
      %v1277 = vpack.c.bf16 %v1112, %v1112
      %v1278 = vpack.c.bf16 %v1114, %v1114
      %v1279 = vpack.c.bf16 %v1117, %v1117
      %v1280 = vpack.c.bf16 %v1119, %v1119
      %1281 = vst [vmem:[%s426] sm:$0xf] %v1249
      %1282 = vst [vmem:[%s426 + $0x4] sm:$0xf] %v1250
      %1283 = vst [vmem:[%s426 + $0x8] sm:$0xf] %v1251
      %1284 = vst [vmem:[%s426 + $0xc] sm:$0xf] %v1252
      %1285 = vst [vmem:[%s426 + $0x10] sm:$0xf] %v1253
      %1286 = vst [vmem:[%s426 + $0x14] sm:$0xf] %v1254
      %1287 = vst [vmem:[%s426 + $0x18] sm:$0xf] %v1255
      %1288 = vst [vmem:[%s426 + $0x1c] sm:$0xf] %v1256
      %1289 = vst [vmem:[%s426 + $0x20] sm:$0xf] %v1257
      %1290 = vst [vmem:[%s426 + $0x24] sm:$0xf] %v1258
      %1291 = vst [vmem:[%s426 + $0x28] sm:$0xf] %v1259
      %1292 = vst [vmem:[%s426 + $0x2c] sm:$0xf] %v1260
      %1293 = vst [vmem:[%s426 + $0x30] sm:$0xf] %v1261
      %1294 = vst [vmem:[%s426 + $0x34] sm:$0xf] %v1262
      %1295 = vst [vmem:[%s426 + $0x38] sm:$0xf] %v1263
      %1296 = vst [vmem:[%s426 + $0x3c] sm:$0xf] %v1264
      %1297 = vst [vmem:[%s426 + $0x40] sm:$0xf] %v1265
      %1298 = vst [vmem:[%s426 + $0x44] sm:$0xf] %v1266
      %1299 = vst [vmem:[%s426 + $0x48] sm:$0xf] %v1267
      %1300 = vst [vmem:[%s426 + $0x4c] sm:$0xf] %v1268
      %1301 = vst [vmem:[%s426 + $0x50] sm:$0xf] %v1269
      %1302 = vst [vmem:[%s426 + $0x54] sm:$0xf] %v1270
      %1303 = vst [vmem:[%s426 + $0x58] sm:$0xf] %v1271
      %1304 = vst [vmem:[%s426 + $0x5c] sm:$0xf] %v1272
      %1305 = vst [vmem:[%s426 + $0x60] sm:$0xf] %v1273
      %1306 = vst [vmem:[%s426 + $0x64] sm:$0xf] %v1274
      %1307 = vst [vmem:[%s426 + $0x68] sm:$0xf] %v1275
      %1308 = vst [vmem:[%s426 + $0x6c] sm:$0xf] %v1276
      %1309 = vst [vmem:[%s426 + $0x70] sm:$0xf] %v1277
      %1310 = vst [vmem:[%s426 + $0x74] sm:$0xf] %v1278
      %1311 = vst [vmem:[%s426 + $0x78] sm:$0xf] %v1279
      %1312 = vst [vmem:[%s426 + $0x7c] sm:$0xf] %v1280
      %s1313 = smul.u32 32, %s25
      %p1314 = scmp.lt.s32.totalorder %s24, 1
      %s1315 = scalar_select %p1314, %s24, 1
      %p1316 = scmp.lt.s32.totalorder %s1313, 31
      %s1317 = scalar_select %p1316, %s1313, 31
      %s1318 = smul.addr %s1315, 32
      %s1319 = sadd.s32 %s1317, %s1318
      %s1320 = smul.addr %s1319, 4
      %s1321 = scalar_lea.vmem %s6, %s1320
      %s1322 = smul.u32 32, %s25
      %p1323 = scmp.lt.s32.totalorder %s24, 1
      %s1324 = scalar_select %p1323, %s24, 1
      %p1325 = scmp.lt.s32.totalorder %s1322, 31
      %s1326 = scalar_select %p1325, %s1322, 31
      %s1327 = smul.addr %s1324, 32
      %s1328 = sadd.s32 %s1326, %s1327
      %s1329 = smul.addr %s1328, 4
      %s1330 = scalar_lea.vmem %s7, %s1329
      %s1331 = smul.u32 32, %s25
      %p1332 = scmp.lt.s32.totalorder %s24, 1
      %s1333 = scalar_select %p1332, %s24, 1
      %p1334 = scmp.lt.s32.totalorder %s1331, 31
      %s1335 = scalar_select %p1334, %s1331, 31
      %s1336 = smul.addr %s1333, 32
      %s1337 = sadd.s32 %s1335, %s1336
      %s1338 = smul.addr %s1337, 4
      %s1339 = scalar_lea.vmem %s8, %s1338
      // Predicated region
      $region45: #{cross_attention.2} parent=43 // pred_check
        %p1340 = pneg %p192
      $region46: #{cross_attention.2} parent=43 // pred_check_branch
        %1342 = sbr.rel (%p1340) target = $region48
      $region47: #{cross_attention.2} parent=43 // pred_region
        %s1343 = smul.u32 32, %s25
      $region48: #{cross_attention.2} parent=43 // pred_fallthru
        _
      // Predicated region
      $region49: #{cross_attention.2} parent=43 // pred_check
        %p1344 = pneg %p220
      $region50: #{cross_attention.2} parent=43 // pred_check_branch
        %1346 = sbr.rel (%p1344) target = $region52
      $region51: #{cross_attention.2} parent=43 // pred_region
        %s1347 = smul.u32 32, %s25
      $region52: #{cross_attention.2} parent=43 // pred_fallthru
        _
      // Predicated region
      $region53: #{cross_attention.2} parent=43 // pred_check
        %p1348 = pneg %p248
      $region54: #{cross_attention.2} parent=43 // pred_check_branch
        %1350 = sbr.rel (%p1348) target = $region56
      $region55: #{cross_attention.2} parent=43 // pred_region
        %s1351 = smul.u32 32, %s25
      $region56: #{cross_attention.2} parent=43 // pred_fallthru
        _
    $region44: #{cross_attention.2} parent=5 // pred_fallthru
      _
    %p1352 = scmp.le.s32.totalorder 2, %s15
    // Predicated region
    $region57: #{cross_attention.2} parent=5 // pred_check
      %p1353 = pneg %p1352
    $region58: #{cross_attention.2} parent=5 // pred_check_branch
      %1355 = sbr.rel (%p1353) target = $region60
    $region59: #{cross_attention.2} parent=5 // pred_region
      %s1356 = ssub.s32 %s15, 2
      // Predicated region
      $region61: #{cross_attention.2} parent=59 // pred_check
        %p1357 = pneg %p198
      $region62: #{cross_attention.2} parent=59 // pred_check_branch
        %1359 = sbr.rel (%p1357) target = $region64
      $region63: #{cross_attention.2} parent=59 // pred_region
        %s1360 = smul.u32 32, %s27
        %p1361 = scmp.lt.s32.totalorder %s26, 1
        %s1362 = scalar_select %p1361, %s26, 1
        %p1363 = scmp.lt.s32.totalorder %s1360, 31
        %s1364 = scalar_select %p1363, %s1360, 31
        %s1365 = smul.addr %s1362, 32
        %s1366 = sadd.s32 %s1364, %s1365
        %s1367 = smul.addr %s1366, 4
        %s1368 = scalar_lea.vmem %s6, %s1367
      $region64: #{cross_attention.2} parent=59 // pred_fallthru
        _
      // Predicated region
      $region65: #{cross_attention.2} parent=59 // pred_check
        %p1369 = pneg %p226
      $region66: #{cross_attention.2} parent=59 // pred_check_branch
        %1371 = sbr.rel (%p1369) target = $region68
      $region67: #{cross_attention.2} parent=59 // pred_region
        %s1372 = smul.u32 32, %s27
        %p1373 = scmp.lt.s32.totalorder %s26, 1
        %s1374 = scalar_select %p1373, %s26, 1
        %p1375 = scmp.lt.s32.totalorder %s1372, 31
        %s1376 = scalar_select %p1375, %s1372, 31
        %s1377 = smul.addr %s1374, 32
        %s1378 = sadd.s32 %s1376, %s1377
        %s1379 = smul.addr %s1378, 4
        %s1380 = scalar_lea.vmem %s7, %s1379
      $region68: #{cross_attention.2} parent=59 // pred_fallthru
        _
      // Predicated region
      $region69: #{cross_attention.2} parent=59 // pred_check
        %p1381 = pneg %p254
      $region70: #{cross_attention.2} parent=59 // pred_check_branch
        %1383 = sbr.rel (%p1381) target = $region72
      $region71: #{cross_attention.2} parent=59 // pred_region
        %s1384 = smul.u32 32, %s27
        %p1385 = scmp.lt.s32.totalorder %s26, 1
        %s1386 = scalar_select %p1385, %s26, 1
        %p1387 = scmp.lt.s32.totalorder %s1384, 31
        %s1388 = scalar_select %p1387, %s1384, 31
        %s1389 = smul.addr %s1386, 32
        %s1390 = sadd.s32 %s1388, %s1389
        %s1391 = smul.addr %s1390, 4
        %s1392 = scalar_lea.vmem %s8, %s1391
      $region72: #{cross_attention.2} parent=59 // pred_fallthru
        _
    $region60: #{cross_attention.2} parent=5 // pred_fallthru
      _
  $region6: #{cross_attention.2} parent=0 // loop_footer
    %s19 = sadd.s32 1, %s15
  $region7: #{cross_attention.2} parent=0 // loop_footer_branch
    %14 = sbr.rel target = $region3
  $region8: #{cross_attention.2} parent=0 // loop_exit
    _

</llo_original>
